<compile_context>
chip_gen: v5e
topology: v5e:2x2
jax: 0.10.0
libtpu: 0.0.40
codegen_flags: <defaults>
</compile_context>

<pallas_src>
import functools
import itertools

import jax
import jax.numpy as jnp
from jax import lax
from jax.experimental import pallas as pl
from jax.experimental.pallas import tpu as pltpu


def _round_up(x, m):
    return (x + m - 1) // m * m


# ----------------------------------------------------------------------------
# Per-chip static configuration (multi-TensorCore? VMEM limit).
# ----------------------------------------------------------------------------
def _chip_config():
    try:
        kind = jax.devices()[0].device_kind.lower()
    except Exception:
        kind = ""
    multi_tc = ("v4" in kind) or ("v5p" in kind) or ("7" in kind)
    if "7" in kind:                 # v7x: 64 MiB physical VMEM -> keep headroom
        vmem_limit = 40 * 1024 * 1024
    elif kind:                      # v5e / v6e / v5p / v4: 128 MiB physical
        vmem_limit = 96 * 1024 * 1024
    else:                           # unknown backend: previous known-good value
        vmem_limit = 48 * 1024 * 1024
    return multi_tc, vmem_limit


_MULTI_TC, _VMEM_LIMIT = _chip_config()


# ----------------------------------------------------------------------------
# Pallas hot-path kernel: tiled bf16 matmul (f32 accumulation) fused with a
# per-channel scale (int8 dequant * folded BN) + shift and optional ReLU.
# ----------------------------------------------------------------------------
def _make_fused_kernel(relu):
    def kernel(x_ref, w_ref, s_ref, b_ref, o_ref):
        # int8 weights are dequantized on the fly; bf16 weights pass through.
        w = w_ref[...].astype(jnp.bfloat16)
        acc = jnp.dot(x_ref[...], w, preferred_element_type=jnp.float32)
        y = acc * s_ref[...] + b_ref[...]
        if relu:
            y = jnp.maximum(y, 0.0)
        o_ref[...] = y.astype(o_ref.dtype)
    return kernel


def _pick_tm(M, K):
    if M >= 2048 and K <= 640:
        # huge-M / small-K stem convs: very large tiles amortize per-step cost;
        # halve on multi-TC chips so both cores keep getting whole tiles.
        return 1024 if _MULTI_TC else 2048
    if M >= 512:
        return 512 if K <= 2048 else 256
    if M >= 256:
        # 17x17 stage (M = 289): split ~evenly across the two TensorCores on
        # multi-TC chips (160/129) instead of 256/33; single fat tile otherwise.
        return _round_up((M + 1) // 2, 16) if _MULTI_TC else 256
    return max(16, _round_up(M, 16))


def _pick_tn(M, K, Np, wbytes):
    if Np % 128 != 0:
        # Only the narrow (<=128-wide) stem/branch heads and the fc take this
        # path; their weights are tiny, so a single full-width tile is safe.
        return Np
    budget = 2 * 1024 * 1024            # per-step weight block (VMEM-safe cap)
    weight_bytes = K * Np * wbytes
    if weight_bytes > 1024 * 1024:
        want = 3                        # pipeline big weight DMAs behind MXU
    elif _MULTI_TC and M <= 128 and Np >= 256:
        want = 2                        # 8x8 stage: feed the second TensorCore
    else:
        want = 1
    for t in (Np, 512, 384, 256, 128):
        if Np % t == 0 and K * t * wbytes <= budget and Np // t >= want:
            return t
    return 128


def fused_matmul_bias(lhs, w, scale, shift, *, relu, out_dtype):
    """lhs: (M, K) float; w: (K, Np) bf16 or int8 with BN scale folded in;
    scale/shift: (1, Np) f32.  Returns (M, Np) out_dtype."""
    M, K = lhs.shape
    Np = w.shape[1]
    wbytes = jnp.dtype(w.dtype).itemsize
    lhs = lhs.astype(jnp.bfloat16)

    tm = _pick_tm(M, K)
    if M < tm:  # only the final FC (M = batch): one small pad, negligible.
        lhs = jnp.pad(lhs, ((0, tm - M), (0, 0)))
    tn = _pick_tn(M, K, Np, wbytes)

    grid = (pl.cdiv(M, tm), Np // tn)
    out_bytes = jnp.dtype(out_dtype).itemsize
    cost = pl.CostEstimate(
        flops=2 * M * K * Np,
        transcendentals=0,
        bytes_accessed=M * K * 2 + K * Np * wbytes + 8 * Np + M * Np * out_bytes)

    out = pl.pallas_call(
        _make_fused_kernel(relu),
        out_shape=jax.ShapeDtypeStruct((max(M, tm), Np), out_dtype),
        grid=grid,
        in_specs=[
            pl.BlockSpec((tm, K), lambda i, j: (i, 0)),   # im2col patches (bf16)
            pl.BlockSpec((K, tn), lambda i, j: (0, j)),   # folded weight (bf16/int8)
            pl.BlockSpec((1, tn), lambda i, j: (0, j)),   # per-channel scale (f32)
            pl.BlockSpec((1, tn), lambda i, j: (0, j)),   # BN shift / bias (f32)
        ],
        out_specs=pl.BlockSpec((tm, tn), lambda i, j: (i, j)),
        compiler_params=pltpu.CompilerParams(
            dimension_semantics=("parallel", "parallel"),
            vmem_limit_bytes=_VMEM_LIMIT,
            allow_input_fusion=[True, False, False, False],
        ),
        cost_estimate=cost,
    )(lhs, w, scale, shift)
    if out.shape[0] != M:
        out = out[:M]
    return out


@functools.partial(jax.jit, static_argnames=("kh", "kw", "stride", "ph", "pw", "n_out"))
def conv_bn_relu(x, w, scale, shift, *, kh, kw, stride, ph, pw, n_out):
    """x: NHWC bf16.  w: (kh*kw*C_in, Np) in (i, j, c_in) row order."""
    n, h, wd, c = x.shape
    if kh == 1 and kw == 1 and stride == 1:
        ho, wo = h, wd
        lhs = x.reshape(n * h * wd, c)                     # no im2col needed
    else:
        xp = jnp.pad(x, ((0, 0), (ph, ph), (pw, pw), (0, 0))) if (ph or pw) else x
        ho = (h + 2 * ph - kh) // stride + 1
        wo = (wd + 2 * pw - kw) // stride + 1
        cols = [xp[:, i:i + stride * (ho - 1) + 1:stride,
                   j:j + stride * (wo - 1) + 1:stride, :]
                for i in range(kh) for j in range(kw)]
        patches = jnp.concatenate(cols, axis=-1) if len(cols) > 1 else cols[0]
        lhs = patches.reshape(n * ho * wo, kh * kw * c)
    out = fused_matmul_bias(lhs, w, scale, shift, relu=True, out_dtype=jnp.bfloat16)
    out = out.reshape(n, ho, wo, out.shape[-1])
    if out.shape[-1] != n_out:
        out = out[..., :n_out]
    return out


@functools.partial(jax.jit, static_argnames=("n_out",))
def linear(x, w, scale, shift, *, n_out):
    out = fused_matmul_bias(x, w, scale, shift, relu=False, out_dtype=jnp.float32)
    return out[:, :n_out] if out.shape[-1] != n_out else out


# ----------------------------------------------------------------------------
# Pooling glue (tiny fraction of FLOPs; kept in plain JAX).
# ----------------------------------------------------------------------------
def avg_pool_3x3_s1_p1(x):   # F.avg_pool2d(k=3, s=1, p=1), count_include_pad=True
    s = lax.reduce_window(x.astype(jnp.float32), 0.0, lax.add,
                          (1, 3, 3, 1), (1, 1, 1, 1),
                          [(0, 0), (1, 1), (1, 1), (0, 0)])
    return (s * (1.0 / 9.0)).astype(x.dtype)


def max_pool_3x3_s2(x):      # F.max_pool2d(k=3, s=2); exact in bf16
    return lax.reduce_window(x, jnp.array(-jnp.inf, x.dtype), lax.max,
                             (1, 3, 3, 1), (1, 2, 2, 1), "VALID")


def avg_pool_8x8(x):         # F.avg_pool2d(k=8), f32 accumulation
    s = lax.reduce_window(x.astype(jnp.float32), 0.0, lax.add,
                          (1, 8, 8, 1), (1, 8, 8, 1), "VALID")
    return s * (1.0 / 64.0)


# ----------------------------------------------------------------------------
# Deterministic synthetic parameters with BatchNorm folded at build time and
# int8 weight-only quantization for the large (bandwidth-bound) weights.
# ----------------------------------------------------------------------------
_ROOT_KEY = jax.random.PRNGKey(0)
_KEY_COUNTER = itertools.count()
_META = {}  # static per-layer metadata (kernel size / stride / pad / splits)
_QUANT_BYTES = 256 * 1024   # fold weights whose bf16 size >= this to int8


def _next_key():
    return jax.random.fold_in(_ROOT_KEY, next(_KEY_COUNTER))


def _fold_bn_conv(c_in, c_out, kh, kw):
    """Returns (kh*kw*c_in, c_out) f32 weight with BN scale folded, and shift."""
    fan_in = c_in * kh * kw
    w = jax.random.normal(_next_key(), (c_out, c_in, kh, kw), jnp.float32)
    w = w * jnp.sqrt(2.0 / fan_in)
    gamma = 1.0 + 0.05 * jax.random.normal(_next_key(), (c_out,), jnp.float32)
    beta = 0.05 * jax.random.normal(_next_key(), (c_out,), jnp.float32)
    eps = 1e-3  # BatchNorm2d(eps=0.001), inference stats: mean=0, var=1
    bn_scale = gamma / jnp.sqrt(jnp.ones((c_out,), jnp.float32) + eps)
    shift = beta
    wm = jnp.transpose(w, (2, 3, 1, 0)).reshape(kh * kw * c_in, c_out)
    return wm * bn_scale[None, :], shift


def _finalize(wm, shift, n):
    """Lane-pad only when n > 128 (narrow stem outputs stay unpadded -> no
    wasted HBM writes + slices); quantize large weights to int8 with the
    per-output-channel dequant scale folded into the epilogue scale."""
    k = wm.shape[0]
    n_pad = n if n <= 128 else _round_up(n, 128)
    if n_pad != n:
        wm = jnp.pad(wm, ((0, 0), (0, n_pad - n)))
        shift = jnp.pad(shift, (0, n_pad - n))
    if k * n_pad * 2 >= _QUANT_BYTES:
        amax = jnp.maximum(jnp.max(jnp.abs(wm), axis=0), 1e-6)
        scale = (amax / 127.0).astype(jnp.float32)
        w_out = jnp.clip(jnp.round(wm / scale[None, :]), -127.0, 127.0).astype(jnp.int8)
    else:
        scale = jnp.ones((n_pad,), jnp.float32)
        w_out = wm.astype(jnp.bfloat16)
    return dict(w=w_out, scale=scale.reshape(1, n_pad),
                shift=shift.reshape(1, n_pad).astype(jnp.float32))


def _register_conv(name, c_in, c_out, k=1, stride=1, pad=0):
    kh, kw = (k, k) if isinstance(k, int) else k
    ph, pw = (pad, pad) if isinstance(pad, int) else pad
    wm, shift = _fold_bn_conv(c_in, c_out, kh, kw)
    _META[name] = dict(kh=kh, kw=kw, stride=stride, ph=ph, pw=pw, n=c_out, splits=None)
    return _finalize(wm, shift, c_out)


def _register_fused_1x1(name, c_in, c_outs):
    ws, ss = zip(*[_fold_bn_conv(c_in, co, 1, 1) for co in c_outs])
    n_tot = sum(c_outs)
    _META[name] = dict(kh=1, kw=1, stride=1, ph=0, pw=0, n=n_tot, splits=tuple(c_outs))
    return _finalize(jnp.concatenate(ws, axis=1), jnp.concatenate(ss), n_tot)


def _register_fc(name, c_in, c_out):
    w = jax.random.normal(_next_key(), (c_out, c_in), jnp.float32) / jnp.sqrt(float(c_in))
    b = 0.01 * jax.random.normal(_next_key(), (c_out,), jnp.float32)
    _META[name] = dict(n=c_out)
    return _finalize(jnp.transpose(w), b, c_out)


def make_params(num_classes=10):
    """The torch model reuses the SAME InceptionA/B/C module for the repeated
    blocks, so the repeats share one set of weights here as well."""
    p = {}

    def conv(name, cin, cout, k=1, stride=1, pad=0):
        p[name] = _register_conv(name, cin, cout, k, stride, pad)

    def fused(name, cin, couts):
        p[name] = _register_fused_1x1(name, cin, couts)

    # stem
    conv("s1", 3, 32, 3, stride=2)
    conv("s2", 32, 32, 3)
    conv("s3", 32, 64, 3, pad=1)
    conv("s4", 64, 96, 3, stride=2)
    fused("s_head", 160, (64, 64))               # Conv2d_5a_1x1 + Conv2d_6a_1x1
    conv("s5b", 64, 96, 3)
    conv("s6b", 64, 64, (7, 1), pad=(3, 0))
    conv("s6c", 64, 64, (1, 7), pad=(0, 3))
    conv("s6d", 64, 96, 3)
    conv("s7", 192, 192, 3, stride=2)
    # InceptionA(384)
    fused("a_head", 384, (96, 64, 64))           # branch1x1 + 3x3_1 + 5x5_1
    conv("a_b3_2", 64, 96, 3, pad=1)
    conv("a_b5_2", 64, 96, 3, pad=1)
    conv("a_b5_3", 96, 96, 3, pad=1)
    conv("a_bp", 384, 96, 1)
    # ReductionA(384)
    conv("ra_b3", 384, 384, 3, stride=2)
    conv("ra_b5_1", 384, 192, 1)
    conv("ra_b5_2", 192, 224, 3, pad=1)
    conv("ra_b5_3", 224, 256, 3, stride=2)
    # InceptionB(1024)
    fused("b_head", 1024, (384, 192, 192))       # branch1x1 + 7x7_1 + 9x9_1
    conv("b_b7_2", 192, 224, (1, 7), pad=(0, 3))
    conv("b_b7_3", 224, 256, (7, 1), pad=(3, 0))
    conv("b_b9_2", 192, 192, (1, 7), pad=(0, 3))
    conv("b_b9_3", 192, 224, (7, 1), pad=(3, 0))
    conv("b_b9_4", 224, 224, (1, 7), pad=(0, 3))
    conv("b_b9_5", 224, 256, (7, 1), pad=(3, 0))
    conv("b_bp", 1024, 128, 1)
    # ReductionB(1024)
    fused("rb_head", 1024, (192, 256))           # branch3x3_1 + 7x7_1
    conv("rb_b3_2", 192, 192, 3, stride=2)
    conv("rb_b7_2", 256, 256, (1, 7), pad=(0, 3))
    conv("rb_b7_3", 256, 320, (7, 1), pad=(3, 0))
    conv("rb_b7_4", 320, 320, 3, stride=2)
    # InceptionC(1536)
    fused("c_head", 1536, (256, 384, 384))       # branch1x1 + 3x3_1 + 5x5_1
    conv("c_b3_2a", 384, 256, (1, 3), pad=(0, 1))
    conv("c_b3_2b", 384, 256, (3, 1), pad=(1, 0))
    conv("c_b5_2", 384, 448, (1, 3), pad=(0, 1))
    conv("c_b5_3", 448, 512, (3, 1), pad=(1, 0))
    conv("c_b5_4a", 512, 256, (3, 1), pad=(1, 0))
    conv("c_b5_4b", 512, 256, (1, 3), pad=(0, 1))
    conv("c_bp", 1536, 256, 1)
    # classifier
    p["fc"] = _register_fc("fc", 1536, num_classes)
    return p


def _conv(params, name, x):
    m = _META[name]
    pr = params[name]
    return conv_bn_relu(x, pr["w"], pr["scale"], pr["shift"],
                        kh=m["kh"], kw=m["kw"], stride=m["stride"],
                        ph=m["ph"], pw=m["pw"], n_out=m["n"])


def _conv_split(params, name, x):
    y = _conv(params, name, x)
    outs, off = [], 0
    for c in _META[name]["splits"]:
        outs.append(y[..., off:off + c])
        off += c
    return outs


# ----------------------------------------------------------------------------
# Forward pass (matches Inception_v4.forward with transform_input=False).
# ----------------------------------------------------------------------------
def inception_v4_forward(params, x_nchw):
    # transform_input=False -> self.up (nn.Upsample) is never used.
    x = jnp.transpose(x_nchw, (0, 2, 3, 1)).astype(jnp.bfloat16)  # NCHW -> NHWC

    # ---- stem ----
    x = _conv(params, "s1", x)
    x = _conv(params, "s2", x)
    x = _conv(params, "s3", x)
    x = jnp.concatenate([_conv(params, "s4", x), max_pool_3x3_s2(x)], axis=-1)
    h5, h6 = _conv_split(params, "s_head", x)
    x1 = _conv(params, "s5b", h5)
    x2 = _conv(params, "s6d", _conv(params, "s6c", _conv(params, "s6b", h6)))
    x = jnp.concatenate([x1, x2], axis=-1)
    x = jnp.concatenate([_conv(params, "s7", x), max_pool_3x3_s2(x)], axis=-1)

    # ---- 4 x InceptionA ----
    for _ in range(4):
        b1, b3, b5 = _conv_split(params, "a_head", x)
        b3 = _conv(params, "a_b3_2", b3)
        b5 = _conv(params, "a_b5_3", _conv(params, "a_b5_2", b5))
        bp = _conv(params, "a_bp", avg_pool_3x3_s1_p1(x))
        x = jnp.concatenate([b1, b3, b5, bp], axis=-1)

    # ---- ReductionA ----
    b3 = _conv(params, "ra_b3", x)
    b5 = _conv(params, "ra_b5_3",
               _conv(params, "ra_b5_2", _conv(params, "ra_b5_1", x)))
    x = jnp.concatenate([b3, b5, max_pool_3x3_s2(x)], axis=-1)

    # ---- 7 x InceptionB ----
    for _ in range(7):
        b1, b7, b9 = _conv_split(params, "b_head", x)
        b7 = _conv(params, "b_b7_3", _conv(params, "b_b7_2", b7))
        b9 = _conv(params, "b_b9_2", b9)
        b9 = _conv(params, "b_b9_3", b9)
        b9 = _conv(params, "b_b9_4", b9)
        b9 = _conv(params, "b_b9_5", b9)
        bp = _conv(params, "b_bp", avg_pool_3x3_s1_p1(x))
        x = jnp.concatenate([b1, b7, b9, bp], axis=-1)

    # ---- ReductionB ----
    b3h, b7h = _conv_split(params, "rb_head", x)
    b3 = _conv(params, "rb_b3_2", b3h)
    b7 = _conv(params, "rb_b7_4",
               _conv(params, "rb_b7_3", _conv(params, "rb_b7_2", b7h)))
    x = jnp.concatenate([b3, b7, max_pool_3x3_s2(x)], axis=-1)

    # ---- 3 x InceptionC ----
    for _ in range(3):
        b1, b3h, b5h = _conv_split(params, "c_head", x)
        b3 = jnp.concatenate([_conv(params, "c_b3_2a", b3h),
                              _conv(params, "c_b3_2b", b3h)], axis=-1)
        b5 = _conv(params, "c_b5_3", _conv(params, "c_b5_2", b5h))
        b5 = jnp.concatenate([_conv(params, "c_b5_4a", b5),
                              _conv(params, "c_b5_4b", b5)], axis=-1)
        bp = _conv(params, "c_bp", avg_pool_3x3_s1_p1(x))
        x = jnp.concatenate([b1, b3, b5, bp], axis=-1)

    # ---- head ----
    x = avg_pool_8x8(x)                       # (N, 1, 1, 1536) f32
    # TODO(synk): F.dropout(p=0.8) is stochastic; evaluated in inference mode (identity).
    x = x.reshape(x.shape[0], -1)             # (N, 1536)
    fc = params["fc"]
    return linear(x, fc["w"], fc["scale"], fc["shift"], n_out=_META["fc"]["n"])


if __name__ == "__main__":
    params = make_params(num_classes=10)
    # 299x299 is the smallest input consistent with avg_pool2d(kernel_size=8)
    # followed by Linear(1536, 10); batch kept at 1 to stay small.
    x = jax.random.normal(jax.random.PRNGKey(0), (1, 3, 299, 299), jnp.float32)
    out = inception_v4_forward(params, x)
    out = jax.block_until_ready(out)
    assert out.shape == (1, 10), out.shape
    assert bool(jnp.all(jnp.isfinite(out)))
    print("KERNEL_OK")
</pallas_src>

<mosaic_0001>
module attributes {stable_mosaic.version = 11 : i64} {
  func.func @kernel(%arg0: i32, %arg1: i32, %arg2: memref<2048x27xbf16, #tpu.memory_space<vmem>>, %arg3: memref<27x32xbf16, #tpu.memory_space<vmem>>, %arg4: memref<1x32xf32, #tpu.memory_space<vmem>>, %arg5: memref<1x32xf32, #tpu.memory_space<vmem>>, %arg6: memref<2048x32xbf16, #tpu.memory_space<vmem>>) attributes {dimension_semantics = [#tpu.dimension_semantics<parallel>, #tpu.dimension_semantics<parallel>], iteration_bounds = array<i64: 11, 1>, scalar_prefetch = 0 : i64, scratch_operands = 0 : i64, tpu.core_type = #tpu.core_type<tc>, window_params = [{transform_indices = @transform_0, window_bounds = array<i64: 2048, 27>}, {transform_indices = @transform_1, window_bounds = array<i64: 27, 32>}, {transform_indices = @transform_2, window_bounds = array<i64: 1, 32>}, {transform_indices = @transform_3, window_bounds = array<i64: 1, 32>}, {transform_indices = @transform_4, window_bounds = array<i64: 2048, 32>}]} {
    %c0 = arith.constant 0 : index
    %c0_0 = arith.constant 0 : index
    %0 = vector.load %arg3[%c0, %c0_0] : memref<27x32xbf16, #tpu.memory_space<vmem>>, vector<27x32xbf16>
    %c0_1 = arith.constant 0 : index
    %c0_2 = arith.constant 0 : index
    %1 = vector.load %arg2[%c0_1, %c0_2] : memref<2048x27xbf16, #tpu.memory_space<vmem>>, vector<2048x27xbf16>
    %cst = arith.constant dense<0.000000e+00> : vector<2048x32xf32>
    %2 = tpu.matmul %1, %0, %cst {dimension_numbers = #tpu.dot_dimension_numbers<[1], [0], [0], [1], [0, 0, 1, 1], [], []>} : vector<2048x27xbf16>, vector<27x32xbf16>, vector<2048x32xf32> -> vector<2048x32xf32>
    %c0_3 = arith.constant 0 : index
    %c0_4 = arith.constant 0 : index
    %3 = vector.load %arg4[%c0_3, %c0_4] : memref<1x32xf32, #tpu.memory_space<vmem>>, vector<1x32xf32>
    %4 = vector.broadcast %3 : vector<1x32xf32> to vector<2048x32xf32>
    %5 = arith.mulf %2, %4 : vector<2048x32xf32>
    %c0_5 = arith.constant 0 : index
    %c0_6 = arith.constant 0 : index
    %6 = vector.load %arg5[%c0_5, %c0_6] : memref<1x32xf32, #tpu.memory_space<vmem>>, vector<1x32xf32>
    %7 = vector.broadcast %6 : vector<1x32xf32> to vector<2048x32xf32>
    %8 = arith.addf %5, %7 : vector<2048x32xf32>
    %cst_7 = arith.constant 0.000000e+00 : f32
    %9 = vector.broadcast %cst_7 : f32 to vector<2048x32xf32>
    %10 = arith.maximumf %8, %9 : vector<2048x32xf32>
    %11 = arith.truncf %10 : vector<2048x32xf32> to vector<2048x32xbf16>
    %c0_8 = arith.constant 0 : index
    %c0_9 = arith.constant 0 : index
    %12 = vector.load %arg6[%c0_8, %c0_9] : memref<2048x32xbf16, #tpu.memory_space<vmem>>, vector<2048x32xbf16>
    tpu.vector_store %arg6[%c0_8, %c0_9], %11 {strides = array<i32>} : memref<2048x32xbf16, #tpu.memory_space<vmem>>, vector<2048x32xbf16>,
    return
  }
  func.func @transform_0(%arg0: i32, %arg1: i32) -> (i32, i32) {
    %c0_i32 = arith.constant 0 : i32
    %c0_i32_0 = arith.constant 0 : i32
    return %arg0, %c0_i32 : i32, i32
  }
  func.func @transform_1(%arg0: i32, %arg1: i32) -> (i32, i32) {
    %c0_i32 = arith.constant 0 : i32
    %c0_i32_0 = arith.constant 0 : i32
    return %c0_i32, %arg1 : i32, i32
  }
  func.func @transform_2(%arg0: i32, %arg1: i32) -> (i32, i32) {
    %c0_i32 = arith.constant 0 : i32
    %c0_i32_0 = arith.constant 0 : i32
    return %c0_i32, %arg1 : i32, i32
  }
  func.func @transform_3(%arg0: i32, %arg1: i32) -> (i32, i32) {
    %c0_i32 = arith.constant 0 : i32
    %c0_i32_0 = arith.constant 0 : i32
    return %c0_i32, %arg1 : i32, i32
  }
  func.func @transform_4(%arg0: i32, %arg1: i32) -> (i32, i32) {
    %c0_i32 = arith.constant 0 : i32
    return %arg0, %arg1 : i32, i32
  }
}

</mosaic_0001>

<llo_original>
// kernel: conv_bn_relu.1
$region0: #{conv_bn_relu.1}
  #allocation0 [shape = 'u32[]', space=smem, size = 0x4, offset = 0x4, fixed_abs, tag = 'smem constant byte address 0x4 - core index']
  #allocation1 [shape = 'u32[72,128]{1,0:T(1,128)}', space=vmem, size = 0x9000, scoped, tag = 'internal scratch']
  %s0 = inlined_call_operand.vmem [shape: bf16[22201,27], index: 0, kind: input, shape index: {}]
  %s1 = inlined_call_operand.vmem [shape: bf16[27,32], index: 1, kind: input, shape index: {}]
  %s2 = inlined_call_operand.vmem [shape: f32[1,32], index: 2, kind: input, shape index: {}]
  %s3 = inlined_call_operand.vmem [shape: f32[1,32], index: 3, kind: input, shape index: {}]
  %s4 = inlined_call_operand.vmem [shape: bf16[22201,32], index: 4, kind: output, shape index: {}]
  %s5 = sld [smem:[#allocation0]]
  $region93: #{conv_bn_relu.1} parent=0
    _
  %s7 = ssub.s32 1, %s5
  %s8 = scalar_select 0, %s7, %s5
  $region1: #{conv_bn_relu.1} parent=0
    #allocation2 [shape = 'u8[1048576]{0}', space=vmem, size = 0x100000, scoped, tag = 'output window, operand 0']
    loop: start=0, step=1, limit=13
    $region2: #{conv_bn_relu.1} parent=1 // loop_pre_header
      _
    $region3: #{conv_bn_relu.1} parent=1 // loop_header
      %s10 = sphi 0, %s14
      %p11 = scmp.ge.s32.totalorder %s10, 13
      %s17 = sphi 0, %s29
      %s18 = sphi 0, %s25
      %s19 = sphi 0, %s17
      %s20 = sphi 0, %s18
      %s21 = sphi 0, %s19
      %s22 = sphi 0, %s20
      %s32 = sphi 0, %s34
      %s35 = sphi 0, %s32
      %s36 = sphi 0, %s35
      %s52 = sphi 0, %s36
      %s58 = sphi 0, %s60
      %s61 = sphi 0, %s58
      %s62 = sphi 0, %s61
      %s78 = sphi 0, %s62
      %s84 = sphi 0, %s86
      %s87 = sphi 0, %s84
      %s88 = sphi 0, %s87
      %s104 = sphi 0, %s88
      %s110 = sphi 0, %s112
      %s113 = sphi 0, %s110
      %s114 = sphi 0, %s113
      %s130 = sphi 0, %s114
      %s138 = sphi 0, %s140
      %s141 = sphi 0, %s138
      %s142 = sphi 0, %s141
      %s158 = sphi 0, %s142
    $region4: #{conv_bn_relu.1} parent=1 // loop_header_branch
      %13 = sbr.rel (%p11) target = $region8
    $region5: #{conv_bn_relu.1} parent=1 // loop_body
      %s15 = ssub.s32 %s10, 1
      %s16 = ssub.s32 %s10, 2
      %s23 = sadd.s32 1, %s18
      %p24 = scmp.ge.s32.totalorder %s23, 1
      %s25 = scalar_select %p24, 0, %s23
      %s26 = sadd.s32 1, %s17
      %s27 = scalar_select %p24, %s26, %s17
      %p28 = scmp.ge.s32.totalorder %s27, 11
      %s29 = scalar_select %p28, 0, %s27
      %s30 = ssub.s32 %s17, %s29
      %p31 = scmp.eq.s32.totalorder %s30, 0
      %s33 = sadd.s32 %s32, 1
      %s34 = scalar_select %p31, %s32, %s33
      %p37 = pneg %p31
      %p38 = scmp.eq.s32.totalorder %s10, 10
      %p39 = por %p37, %p38
      %p40 = scmp.ne.s32.totalorder %s32, %s35
      %p41 = scmp.eq.s32.totalorder %s10, 0
      %p42 = por %p40, %p41
      %p43 = scmp.ne.s32.totalorder %s32, %s35
      %p44 = scmp.eq.s32.totalorder %s15, 10
      %p45 = por %p43, %p44
      %p46 = scmp.ne.s32.totalorder %s35, %s36
      %p47 = scmp.eq.s32.totalorder %s15, 0
      %p48 = por %p46, %p47
      %p49 = scmp.ne.s32.totalorder %s35, %s36
      %p50 = scmp.eq.s32.totalorder %s16, 10
      %p51 = por %p49, %p50
      %p53 = scmp.ne.s32.totalorder %s36, %s52
      %p54 = scmp.eq.s32.totalorder %s16, 0
      %p55 = por %p53, %p54
      %s56 = ssub.s32 %s18, %s25
      %p57 = scmp.eq.s32.totalorder %s56, 0
      %s59 = sadd.s32 %s58, 1
      %s60 = scalar_select %p57, %s58, %s59
      %p63 = pneg %p57
      %p64 = scmp.eq.s32.totalorder %s10, 10
      %p65 = por %p63, %p64
      %p66 = scmp.ne.s32.totalorder %s58, %s61
      %p67 = scmp.eq.s32.totalorder %s10, 0
      %p68 = por %p66, %p67
      %p69 = scmp.ne.s32.totalorder %s58, %s61
      %p70 = scmp.eq.s32.totalorder %s15, 10
      %p71 = por %p69, %p70
      %p72 = scmp.ne.s32.totalorder %s61, %s62
      %p73 = scmp.eq.s32.totalorder %s15, 0
      %p74 = por %p72, %p73
      %p75 = scmp.ne.s32.totalorder %s61, %s62
      %p76 = scmp.eq.s32.totalorder %s16, 10
      %p77 = por %p75, %p76
      %p79 = scmp.ne.s32.totalorder %s62, %s78
      %p80 = scmp.eq.s32.totalorder %s16, 0
      %p81 = por %p79, %p80
      %s82 = ssub.s32 %s18, %s25
      %p83 = scmp.eq.s32.totalorder %s82, 0
      %s85 = sadd.s32 %s84, 1
      %s86 = scalar_select %p83, %s84, %s85
      %p89 = pneg %p83
      %p90 = scmp.eq.s32.totalorder %s10, 10
      %p91 = por %p89, %p90
      %p92 = scmp.ne.s32.totalorder %s84, %s87
      %p93 = scmp.eq.s32.totalorder %s10, 0
      %p94 = por %p92, %p93
      %p95 = scmp.ne.s32.totalorder %s84, %s87
      %p96 = scmp.eq.s32.totalorder %s15, 10
      %p97 = por %p95, %p96
      %p98 = scmp.ne.s32.totalorder %s87, %s88
      %p99 = scmp.eq.s32.totalorder %s15, 0
      %p100 = por %p98, %p99
      %p101 = scmp.ne.s32.totalorder %s87, %s88
      %p102 = scmp.eq.s32.totalorder %s16, 10
      %p103 = por %p101, %p102
      %p105 = scmp.ne.s32.totalorder %s88, %s104
      %p106 = scmp.eq.s32.totalorder %s16, 0
      %p107 = por %p105, %p106
      %s108 = ssub.s32 %s18, %s25
      %p109 = scmp.eq.s32.totalorder %s108, 0
      %s111 = sadd.s32 %s110, 1
      %s112 = scalar_select %p109, %s110, %s111
      %p115 = pneg %p109
      %p116 = scmp.eq.s32.totalorder %s10, 10
      %p117 = por %p115, %p116
      %p118 = scmp.ne.s32.totalorder %s110, %s113
      %p119 = scmp.eq.s32.totalorder %s10, 0
      %p120 = por %p118, %p119
      %p121 = scmp.ne.s32.totalorder %s110, %s113
      %p122 = scmp.eq.s32.totalorder %s15, 10
      %p123 = por %p121, %p122
      %p124 = scmp.ne.s32.totalorder %s113, %s114
      %p125 = scmp.eq.s32.totalorder %s15, 0
      %p126 = por %p124, %p125
      %p127 = scmp.ne.s32.totalorder %s113, %s114
      %p128 = scmp.eq.s32.totalorder %s16, 10
      %p129 = por %p127, %p128
      %p131 = scmp.ne.s32.totalorder %s114, %s130
      %p132 = scmp.eq.s32.totalorder %s16, 0
      %p133 = por %p131, %p132
      %s134 = ssub.s32 %s17, %s29
      %s135 = ssub.s32 %s18, %s25
      %s136 = sor.u32 %s134, %s135
      %p137 = scmp.eq.s32.totalorder %s136, 0
      %s139 = sadd.s32 %s138, 1
      %s140 = scalar_select %p137, %s138, %s139
      %p143 = pneg %p137
      %p144 = scmp.eq.s32.totalorder %s10, 10
      %p145 = por %p143, %p144
      %p146 = scmp.ne.s32.totalorder %s138, %s141
      %p147 = scmp.eq.s32.totalorder %s10, 0
      %p148 = por %p146, %p147
      %p149 = scmp.ne.s32.totalorder %s138, %s141
      %p150 = scmp.eq.s32.totalorder %s15, 10
      %p151 = por %p149, %p150
      %p152 = scmp.ne.s32.totalorder %s141, %s142
      %p153 = scmp.eq.s32.totalorder %s15, 0
      %p154 = por %p152, %p153
      %p155 = scmp.ne.s32.totalorder %s141, %s142
      %p156 = scmp.eq.s32.totalorder %s16, 10
      %p157 = por %p155, %p156
      %p159 = scmp.ne.s32.totalorder %s142, %s158
      %p160 = scmp.eq.s32.totalorder %s16, 0
      %p161 = por %p159, %p160
      %p162 = scmp.le.s32.totalorder 1, %s10
      %p163 = scmp.lt.s32.totalorder %s10, 12
      %p164 = pnand %p162, %p163
      %p165 = pneg %p164
      // Predicated region
      $region9: #{conv_bn_relu.1} parent=5 // pred_check
        _
      $region10: #{conv_bn_relu.1} parent=5 // pred_check_branch
        %167 = sbr.rel (%p164) target = $region12
      $region11: #{conv_bn_relu.1} parent=5 // pred_region
        %s168 = ssub.s32 %s10, 1
        // Predicated region
        $region13: #{conv_bn_relu.1} parent=11 // pred_check
          %p169 = pneg %p74
        $region14: #{conv_bn_relu.1} parent=11 // pred_check_branch
          %171 = sbr.rel (%p169) target = $region16
        $region15: #{conv_bn_relu.1} parent=11 // pred_region
          %p172 = scmp.lt.s32.totalorder %s20, 0
          %s173 = scalar_select %p172, %s20, 0
          %s174 = smul.addr %s173, 4
          %s175 = scalar_lea.vmem %s1, %s174
        $region16: #{conv_bn_relu.1} parent=11 // pred_fallthru
          _
        // Predicated region
        $region17: #{conv_bn_relu.1} parent=11 // pred_check
          %p176 = pneg %p100
        $region18: #{conv_bn_relu.1} parent=11 // pred_check_branch
          %178 = sbr.rel (%p176) target = $region20
        $region19: #{conv_bn_relu.1} parent=11 // pred_region
          %p179 = scmp.lt.s32.totalorder %s20, 0
          %s180 = scalar_select %p179, %s20, 0
          %s181 = scalar_lea.vmem %s2, %s180
        $region20: #{conv_bn_relu.1} parent=11 // pred_fallthru
          _
        // Predicated region
        $region21: #{conv_bn_relu.1} parent=11 // pred_check
          %p182 = pneg %p126
        $region22: #{conv_bn_relu.1} parent=11 // pred_check_branch
          %184 = sbr.rel (%p182) target = $region24
        $region23: #{conv_bn_relu.1} parent=11 // pred_region
          %p185 = scmp.lt.s32.totalorder %s20, 0
          %s186 = scalar_select %p185, %s20, 0
          %s187 = scalar_lea.vmem %s3, %s186
        $region24: #{conv_bn_relu.1} parent=11 // pred_fallthru
          _
      $region12: #{conv_bn_relu.1} parent=5 // pred_fallthru
        _
      %p188 = scmp.lt.s32.totalorder %s10, 11
      // Predicated region
      $region25: #{conv_bn_relu.1} parent=5 // pred_check
        %p189 = pneg %p188
      $region26: #{conv_bn_relu.1} parent=5 // pred_check_branch
        %191 = sbr.rel (%p189) target = $region28
      $region27: #{conv_bn_relu.1} parent=5 // pred_region
        // Predicated region
        $region29: #{conv_bn_relu.1} parent=27 // pred_check
          %p192 = pneg %p42
        $region30: #{conv_bn_relu.1} parent=27 // pred_check_branch
          %194 = sbr.rel (%p192) target = $region32
        $region31: #{conv_bn_relu.1} parent=27 // pred_region
          %s195 = smul.u32 256, %s17
          %s196 = ssub.s32 2776, %s195
          %p197 = scmp.lt.s32.totalorder %s196, 256
          %s198 = scalar_select %p197, %s196, 256
          %s199 = smul.u32 4, %s198
          %p200 = scmp.lt.s32.totalorder %s195, 2775
          %s201 = scalar_select %p200, %s195, 2775
          %s202 = smul.addr %s201, 4
          %s203 = scalar_lea.vmem %s0, %s202
          %s204 = smul.u32 256, %s17
          %s205 = ssub.s32 2776, %s204
          %p206 = scmp.lt.s32.totalorder %s205, 256
          %s207 = scalar_select %p206, %s205, 256
          %s208 = smul.u32 4, %s207
        $region32: #{conv_bn_relu.1} parent=27 // pred_fallthru
          _
      $region28: #{conv_bn_relu.1} parent=5 // pred_fallthru
        _
      %p209 = scmp.le.s32.totalorder 1, %s10
      %p210 = scmp.lt.s32.totalorder %s10, 12
      %p211 = pnand %p209, %p210
      %p212 = pneg %p211
      // Predicated region
      $region33: #{conv_bn_relu.1} parent=5 // pred_check
        _
      $region34: #{conv_bn_relu.1} parent=5 // pred_check_branch
        %214 = sbr.rel (%p211) target = $region36
      $region35: #{conv_bn_relu.1} parent=5 // pred_region
        %s215 = ssub.s32 %s10, 1
        %s216 = smul.u32 256, %s19
        %s217 = ssub.s32 2776, %s216
        %p218 = scmp.lt.s32.totalorder %s217, 256
        %s219 = scalar_select %p218, %s217, 256
        %s220 = smul.u32 4, %s219
        %p221 = scmp.lt.s32.totalorder %s216, 2775
        %s222 = scalar_select %p221, %s216, 2775
        %s223 = smul.addr %s222, 4
        %s224 = scalar_lea.vmem %s0, %s223
        %p225 = pneg %p48
        %p226 = pneg %p45
        %p227 = scmp.lt.s32.totalorder %s20, 0
        %s228 = scalar_select %p227, %s20, 0
        %s229 = smul.addr %s228, 4
        %s230 = scalar_lea.vmem %s1, %s229
        %p231 = pneg %p74
        %p232 = pneg %p71
        %p233 = scmp.lt.s32.totalorder %s20, 0
        %s234 = scalar_select %p233, %s20, 0
        %s235 = scalar_lea.vmem %s2, %s234
        %p236 = pneg %p100
        %p237 = pneg %p97
        %p238 = scmp.lt.s32.totalorder %s20, 0
        %s239 = scalar_select %p238, %s20, 0
        %s240 = scalar_lea.vmem %s3, %s239
        %p241 = pneg %p126
        %p242 = pneg %p123
        %p243 = pneg %p154
        %p244 = pneg %p151
        %s245 = sand.u32 %s141, 1
        %s246 = sand.u32 %s141, 1
        %s247 = smul.addr %s246, 1024
        %s248 = scalar_lea.vmem [#allocation2], %s247
        %s249 = smul.u32 256, %s19
        %s250 = ssub.s32 2776, %s249
        %p251 = scmp.lt.s32.totalorder %s250, 256
        %s252 = scalar_select %p251, %s250, 256
        %s253 = smul.u32 4, %s252
        %p254 = scmp.lt.s32.totalorder %s249, 2775
        %s255 = scalar_select %p254, %s249, 2775
        %s256 = smul.addr %s255, 4
        %s257 = scalar_lea.vmem %s0, %s256
        %s258 = smul.u32 256, %s19
        %s259 = ssub.s32 2776, %s258
        %p260 = scmp.lt.s32.totalorder %s259, 256
        %s261 = scalar_select %p260, %s259, 256
        %s262 = smul.u32 4, %s261
        %p263 = scmp.lt.s32.totalorder %s20, 0
        %s264 = scalar_select %p263, %s20, 0
        %s265 = smul.addr %s264, 4
        %s266 = scalar_lea.vmem %s1, %s265
        %p267 = scmp.lt.s32.totalorder %s20, 0
        %s268 = scalar_select %p267, %s20, 0
        %s269 = scalar_lea.vmem %s2, %s268
        %p270 = scmp.lt.s32.totalorder %s20, 0
        %s271 = scalar_select %p270, %s20, 0
        %s272 = scalar_lea.vmem %s3, %s271
        %s273 = smul.u32 256, %s19
        %s274 = ssub.s32 2776, %s273
        %p275 = scmp.lt.s32.totalorder %s274, 256
        %s276 = scalar_select %p275, %s274, 256
        %s277 = smul.u32 4, %s276
        %v279 = vld [vmem:[%s266] sm:$0xf]
        %v280 = vld [vmem:[%s266 + $0x4] sm:$0xf]
        %v281 = vld [vmem:[%s266 + $0x8] sm:$0xf]
        %v282 = vld [vmem:[%s266 + $0xc] sm:$0x3]
        %v283 = vld [vmem:[%s257] sm:$0xf]
        %v284 = vld [vmem:[%s257 + $0x4] sm:$0xf]
        %v285 = vld [vmem:[%s257 + $0x8] sm:$0xf]
        %v286 = vld [vmem:[%s257 + $0xc] sm:$0xf]
        %v287 = vld [vmem:[%s257 + $0x10] sm:$0xf]
        %v288 = vld [vmem:[%s257 + $0x14] sm:$0xf]
        %v289 = vld [vmem:[%s257 + $0x18] sm:$0xf]
        %v290 = vld [vmem:[%s257 + $0x1c] sm:$0xf]
        %v291 = vld [vmem:[%s257 + $0x20] sm:$0xf]
        %v292 = vld [vmem:[%s257 + $0x24] sm:$0xf]
        %v293 = vld [vmem:[%s257 + $0x28] sm:$0xf]
        %v294 = vld [vmem:[%s257 + $0x2c] sm:$0xf]
        %v295 = vld [vmem:[%s257 + $0x30] sm:$0xf]
        %v296 = vld [vmem:[%s257 + $0x34] sm:$0xf]
        %v297 = vld [vmem:[%s257 + $0x38] sm:$0xf]
        %v298 = vld [vmem:[%s257 + $0x3c] sm:$0xf]
        %v299 = vld [vmem:[%s257 + $0x40] sm:$0xf]
        %v300 = vld [vmem:[%s257 + $0x44] sm:$0xf]
        %v301 = vld [vmem:[%s257 + $0x48] sm:$0xf]
        %v302 = vld [vmem:[%s257 + $0x4c] sm:$0xf]
        %v303 = vld [vmem:[%s257 + $0x50] sm:$0xf]
        %v304 = vld [vmem:[%s257 + $0x54] sm:$0xf]
        %v305 = vld [vmem:[%s257 + $0x58] sm:$0xf]
        %v306 = vld [vmem:[%s257 + $0x5c] sm:$0xf]
        %v307 = vld [vmem:[%s257 + $0x60] sm:$0xf]
        %v308 = vld [vmem:[%s257 + $0x64] sm:$0xf]
        %v309 = vld [vmem:[%s257 + $0x68] sm:$0xf]
        %v310 = vld [vmem:[%s257 + $0x6c] sm:$0xf]
        %v311 = vld [vmem:[%s257 + $0x70] sm:$0xf]
        %v312 = vld [vmem:[%s257 + $0x74] sm:$0xf]
        %v313 = vld [vmem:[%s257 + $0x78] sm:$0xf]
        %v314 = vld [vmem:[%s257 + $0x7c] sm:$0xf]
        %v315 = vld [vmem:[%s257 + $0x80] sm:$0xf]
        %v316 = vld [vmem:[%s257 + $0x84] sm:$0xf]
        %v317 = vld [vmem:[%s257 + $0x88] sm:$0xf]
        %v318 = vld [vmem:[%s257 + $0x8c] sm:$0xf]
        %v319 = vld [vmem:[%s257 + $0x90] sm:$0xf]
        %v320 = vld [vmem:[%s257 + $0x94] sm:$0xf]
        %v321 = vld [vmem:[%s257 + $0x98] sm:$0xf]
        %v322 = vld [vmem:[%s257 + $0x9c] sm:$0xf]
        %v323 = vld [vmem:[%s257 + $0xa0] sm:$0xf]
        %v324 = vld [vmem:[%s257 + $0xa4] sm:$0xf]
        %v325 = vld [vmem:[%s257 + $0xa8] sm:$0xf]
        %v326 = vld [vmem:[%s257 + $0xac] sm:$0xf]
        %v327 = vld [vmem:[%s257 + $0xb0] sm:$0xf]
        %v328 = vld [vmem:[%s257 + $0xb4] sm:$0xf]
        %v329 = vld [vmem:[%s257 + $0xb8] sm:$0xf]
        %v330 = vld [vmem:[%s257 + $0xbc] sm:$0xf]
        %v331 = vld [vmem:[%s257 + $0xc0] sm:$0xf]
        %v332 = vld [vmem:[%s257 + $0xc4] sm:$0xf]
        %v333 = vld [vmem:[%s257 + $0xc8] sm:$0xf]
        %v334 = vld [vmem:[%s257 + $0xcc] sm:$0xf]
        %v335 = vld [vmem:[%s257 + $0xd0] sm:$0xf]
        %v336 = vld [vmem:[%s257 + $0xd4] sm:$0xf]
        %v337 = vld [vmem:[%s257 + $0xd8] sm:$0xf]
        %v338 = vld [vmem:[%s257 + $0xdc] sm:$0xf]
        %v339 = vld [vmem:[%s257 + $0xe0] sm:$0xf]
        %v340 = vld [vmem:[%s257 + $0xe4] sm:$0xf]
        %v341 = vld [vmem:[%s257 + $0xe8] sm:$0xf]
        %v342 = vld [vmem:[%s257 + $0xec] sm:$0xf]
        %v343 = vld [vmem:[%s257 + $0xf0] sm:$0xf]
        %v344 = vld [vmem:[%s257 + $0xf4] sm:$0xf]
        %v345 = vld [vmem:[%s257 + $0xf8] sm:$0xf]
        %v346 = vld [vmem:[%s257 + $0xfc] sm:$0xf]
        %v347 = vld [vmem:[%s257 + $0x100] sm:$0xf]
        %v348 = vld [vmem:[%s257 + $0x104] sm:$0xf]
        %v349 = vld [vmem:[%s257 + $0x108] sm:$0xf]
        %v350 = vld [vmem:[%s257 + $0x10c] sm:$0xf]
        %v351 = vld [vmem:[%s257 + $0x110] sm:$0xf]
        %v352 = vld [vmem:[%s257 + $0x114] sm:$0xf]
        %v353 = vld [vmem:[%s257 + $0x118] sm:$0xf]
        %v354 = vld [vmem:[%s257 + $0x11c] sm:$0xf]
        %v355 = vld [vmem:[%s257 + $0x120] sm:$0xf]
        %v356 = vld [vmem:[%s257 + $0x124] sm:$0xf]
        %v357 = vld [vmem:[%s257 + $0x128] sm:$0xf]
        %v358 = vld [vmem:[%s257 + $0x12c] sm:$0xf]
        %v359 = vld [vmem:[%s257 + $0x130] sm:$0xf]
        %v360 = vld [vmem:[%s257 + $0x134] sm:$0xf]
        %v361 = vld [vmem:[%s257 + $0x138] sm:$0xf]
        %v362 = vld [vmem:[%s257 + $0x13c] sm:$0xf]
        %v363 = vld [vmem:[%s257 + $0x140] sm:$0xf]
        %v364 = vld [vmem:[%s257 + $0x144] sm:$0xf]
        %v365 = vld [vmem:[%s257 + $0x148] sm:$0xf]
        %v366 = vld [vmem:[%s257 + $0x14c] sm:$0xf]
        %v367 = vld [vmem:[%s257 + $0x150] sm:$0xf]
        %v368 = vld [vmem:[%s257 + $0x154] sm:$0xf]
        %v369 = vld [vmem:[%s257 + $0x158] sm:$0xf]
        %v370 = vld [vmem:[%s257 + $0x15c] sm:$0xf]
        %v371 = vld [vmem:[%s257 + $0x160] sm:$0xf]
        %v372 = vld [vmem:[%s257 + $0x164] sm:$0xf]
        %v373 = vld [vmem:[%s257 + $0x168] sm:$0xf]
        %v374 = vld [vmem:[%s257 + $0x16c] sm:$0xf]
        %v375 = vld [vmem:[%s257 + $0x170] sm:$0xf]
        %v376 = vld [vmem:[%s257 + $0x174] sm:$0xf]
        %v377 = vld [vmem:[%s257 + $0x178] sm:$0xf]
        %v378 = vld [vmem:[%s257 + $0x17c] sm:$0xf]
        %v379 = vld [vmem:[%s257 + $0x180] sm:$0xf]
        %v380 = vld [vmem:[%s257 + $0x184] sm:$0xf]
        %v381 = vld [vmem:[%s257 + $0x188] sm:$0xf]
        %v382 = vld [vmem:[%s257 + $0x18c] sm:$0xf]
        %v383 = vld [vmem:[%s257 + $0x190] sm:$0xf]
        %v384 = vld [vmem:[%s257 + $0x194] sm:$0xf]
        %v385 = vld [vmem:[%s257 + $0x198] sm:$0xf]
        %v386 = vld [vmem:[%s257 + $0x19c] sm:$0xf]
        %v387 = vld [vmem:[%s257 + $0x1a0] sm:$0xf]
        %v388 = vld [vmem:[%s257 + $0x1a4] sm:$0xf]
        %v389 = vld [vmem:[%s257 + $0x1a8] sm:$0xf]
        %v390 = vld [vmem:[%s257 + $0x1ac] sm:$0xf]
        %v391 = vld [vmem:[%s257 + $0x1b0] sm:$0xf]
        %v392 = vld [vmem:[%s257 + $0x1b4] sm:$0xf]
        %v393 = vld [vmem:[%s257 + $0x1b8] sm:$0xf]
        %v394 = vld [vmem:[%s257 + $0x1bc] sm:$0xf]
        %v395 = vld [vmem:[%s257 + $0x1c0] sm:$0xf]
        %v396 = vld [vmem:[%s257 + $0x1c4] sm:$0xf]
        %v397 = vld [vmem:[%s257 + $0x1c8] sm:$0xf]
        %v398 = vld [vmem:[%s257 + $0x1cc] sm:$0xf]
        %v399 = vld [vmem:[%s257 + $0x1d0] sm:$0xf]
        %v400 = vld [vmem:[%s257 + $0x1d4] sm:$0xf]
        %v401 = vld [vmem:[%s257 + $0x1d8] sm:$0xf]
        %v402 = vld [vmem:[%s257 + $0x1dc] sm:$0xf]
        %v403 = vld [vmem:[%s257 + $0x1e0] sm:$0xf]
        %v404 = vld [vmem:[%s257 + $0x1e4] sm:$0xf]
        %v405 = vld [vmem:[%s257 + $0x1e8] sm:$0xf]
        %v406 = vld [vmem:[%s257 + $0x1ec] sm:$0xf]
        %v407 = vld [vmem:[%s257 + $0x1f0] sm:$0xf]
        %v408 = vld [vmem:[%s257 + $0x1f4] sm:$0xf]
        %v409 = vld [vmem:[%s257 + $0x1f8] sm:$0xf]
        %v410 = vld [vmem:[%s257 + $0x1fc] sm:$0xf]
        %v411 = vld [vmem:[%s257 + $0x200] sm:$0xf]
        %v412 = vld [vmem:[%s257 + $0x204] sm:$0xf]
        %v413 = vld [vmem:[%s257 + $0x208] sm:$0xf]
        %v414 = vld [vmem:[%s257 + $0x20c] sm:$0xf]
        %v415 = vld [vmem:[%s257 + $0x210] sm:$0xf]
        %v416 = vld [vmem:[%s257 + $0x214] sm:$0xf]
        %v417 = vld [vmem:[%s257 + $0x218] sm:$0xf]
        %v418 = vld [vmem:[%s257 + $0x21c] sm:$0xf]
        %v419 = vld [vmem:[%s257 + $0x220] sm:$0xf]
        %v420 = vld [vmem:[%s257 + $0x224] sm:$0xf]
        %v421 = vld [vmem:[%s257 + $0x228] sm:$0xf]
        %v422 = vld [vmem:[%s257 + $0x22c] sm:$0xf]
        %v423 = vld [vmem:[%s257 + $0x230] sm:$0xf]
        %v424 = vld [vmem:[%s257 + $0x234] sm:$0xf]
        %v425 = vld [vmem:[%s257 + $0x238] sm:$0xf]
        %v426 = vld [vmem:[%s257 + $0x23c] sm:$0xf]
        %v427 = vld [vmem:[%s257 + $0x240] sm:$0xf]
        %v428 = vld [vmem:[%s257 + $0x244] sm:$0xf]
        %v429 = vld [vmem:[%s257 + $0x248] sm:$0xf]
        %v430 = vld [vmem:[%s257 + $0x24c] sm:$0xf]
        %v431 = vld [vmem:[%s257 + $0x250] sm:$0xf]
        %v432 = vld [vmem:[%s257 + $0x254] sm:$0xf]
        %v433 = vld [vmem:[%s257 + $0x258] sm:$0xf]
        %v434 = vld [vmem:[%s257 + $0x25c] sm:$0xf]
        %v435 = vld [vmem:[%s257 + $0x260] sm:$0xf]
        %v436 = vld [vmem:[%s257 + $0x264] sm:$0xf]
        %v437 = vld [vmem:[%s257 + $0x268] sm:$0xf]
        %v438 = vld [vmem:[%s257 + $0x26c] sm:$0xf]
        %v439 = vld [vmem:[%s257 + $0x270] sm:$0xf]
        %v440 = vld [vmem:[%s257 + $0x274] sm:$0xf]
        %v441 = vld [vmem:[%s257 + $0x278] sm:$0xf]
        %v442 = vld [vmem:[%s257 + $0x27c] sm:$0xf]
        %v443 = vld [vmem:[%s257 + $0x280] sm:$0xf]
        %v444 = vld [vmem:[%s257 + $0x284] sm:$0xf]
        %v445 = vld [vmem:[%s257 + $0x288] sm:$0xf]
        %v446 = vld [vmem:[%s257 + $0x28c] sm:$0xf]
        %v447 = vld [vmem:[%s257 + $0x290] sm:$0xf]
        %v448 = vld [vmem:[%s257 + $0x294] sm:$0xf]
        %v449 = vld [vmem:[%s257 + $0x298] sm:$0xf]
        %v450 = vld [vmem:[%s257 + $0x29c] sm:$0xf]
        %v451 = vld [vmem:[%s257 + $0x2a0] sm:$0xf]
        %v452 = vld [vmem:[%s257 + $0x2a4] sm:$0xf]
        %v453 = vld [vmem:[%s257 + $0x2a8] sm:$0xf]
        %v454 = vld [vmem:[%s257 + $0x2ac] sm:$0xf]
        %v455 = vld [vmem:[%s257 + $0x2b0] sm:$0xf]
        %v456 = vld [vmem:[%s257 + $0x2b4] sm:$0xf]
        %v457 = vld [vmem:[%s257 + $0x2b8] sm:$0xf]
        %v458 = vld [vmem:[%s257 + $0x2bc] sm:$0xf]
        %v459 = vld [vmem:[%s257 + $0x2c0] sm:$0xf]
        %v460 = vld [vmem:[%s257 + $0x2c4] sm:$0xf]
        %v461 = vld [vmem:[%s257 + $0x2c8] sm:$0xf]
        %v462 = vld [vmem:[%s257 + $0x2cc] sm:$0xf]
        %v463 = vld [vmem:[%s257 + $0x2d0] sm:$0xf]
        %v464 = vld [vmem:[%s257 + $0x2d4] sm:$0xf]
        %v465 = vld [vmem:[%s257 + $0x2d8] sm:$0xf]
        %v466 = vld [vmem:[%s257 + $0x2dc] sm:$0xf]
        %v467 = vld [vmem:[%s257 + $0x2e0] sm:$0xf]
        %v468 = vld [vmem:[%s257 + $0x2e4] sm:$0xf]
        %v469 = vld [vmem:[%s257 + $0x2e8] sm:$0xf]
        %v470 = vld [vmem:[%s257 + $0x2ec] sm:$0xf]
        %v471 = vld [vmem:[%s257 + $0x2f0] sm:$0xf]
        %v472 = vld [vmem:[%s257 + $0x2f4] sm:$0xf]
        %v473 = vld [vmem:[%s257 + $0x2f8] sm:$0xf]
        %v474 = vld [vmem:[%s257 + $0x2fc] sm:$0xf]
        %v475 = vld [vmem:[%s257 + $0x300] sm:$0xf]
        %v476 = vld [vmem:[%s257 + $0x304] sm:$0xf]
        %v477 = vld [vmem:[%s257 + $0x308] sm:$0xf]
        %v478 = vld [vmem:[%s257 + $0x30c] sm:$0xf]
        %v479 = vld [vmem:[%s257 + $0x310] sm:$0xf]
        %v480 = vld [vmem:[%s257 + $0x314] sm:$0xf]
        %v481 = vld [vmem:[%s257 + $0x318] sm:$0xf]
        %v482 = vld [vmem:[%s257 + $0x31c] sm:$0xf]
        %v483 = vld [vmem:[%s257 + $0x320] sm:$0xf]
        %v484 = vld [vmem:[%s257 + $0x324] sm:$0xf]
        %v485 = vld [vmem:[%s257 + $0x328] sm:$0xf]
        %v486 = vld [vmem:[%s257 + $0x32c] sm:$0xf]
        %v487 = vld [vmem:[%s257 + $0x330] sm:$0xf]
        %v488 = vld [vmem:[%s257 + $0x334] sm:$0xf]
        %v489 = vld [vmem:[%s257 + $0x338] sm:$0xf]
        %v490 = vld [vmem:[%s257 + $0x33c] sm:$0xf]
        %v491 = vld [vmem:[%s257 + $0x340] sm:$0xf]
        %v492 = vld [vmem:[%s257 + $0x344] sm:$0xf]
        %v493 = vld [vmem:[%s257 + $0x348] sm:$0xf]
        %v494 = vld [vmem:[%s257 + $0x34c] sm:$0xf]
        %v495 = vld [vmem:[%s257 + $0x350] sm:$0xf]
        %v496 = vld [vmem:[%s257 + $0x354] sm:$0xf]
        %v497 = vld [vmem:[%s257 + $0x358] sm:$0xf]
        %v498 = vld [vmem:[%s257 + $0x35c] sm:$0xf]
        %v499 = vld [vmem:[%s257 + $0x360] sm:$0xf]
        %v500 = vld [vmem:[%s257 + $0x364] sm:$0xf]
        %v501 = vld [vmem:[%s257 + $0x368] sm:$0xf]
        %v502 = vld [vmem:[%s257 + $0x36c] sm:$0xf]
        %v503 = vld [vmem:[%s257 + $0x370] sm:$0xf]
        %v504 = vld [vmem:[%s257 + $0x374] sm:$0xf]
        %v505 = vld [vmem:[%s257 + $0x378] sm:$0xf]
        %v506 = vld [vmem:[%s257 + $0x37c] sm:$0xf]
        %v507 = vld [vmem:[%s257 + $0x380] sm:$0xf]
        %v508 = vld [vmem:[%s257 + $0x384] sm:$0xf]
        %v509 = vld [vmem:[%s257 + $0x388] sm:$0xf]
        %v510 = vld [vmem:[%s257 + $0x38c] sm:$0xf]
        %v511 = vld [vmem:[%s257 + $0x390] sm:$0xf]
        %v512 = vld [vmem:[%s257 + $0x394] sm:$0xf]
        %v513 = vld [vmem:[%s257 + $0x398] sm:$0xf]
        %v514 = vld [vmem:[%s257 + $0x39c] sm:$0xf]
        %v515 = vld [vmem:[%s257 + $0x3a0] sm:$0xf]
        %v516 = vld [vmem:[%s257 + $0x3a4] sm:$0xf]
        %v517 = vld [vmem:[%s257 + $0x3a8] sm:$0xf]
        %v518 = vld [vmem:[%s257 + $0x3ac] sm:$0xf]
        %v519 = vld [vmem:[%s257 + $0x3b0] sm:$0xf]
        %v520 = vld [vmem:[%s257 + $0x3b4] sm:$0xf]
        %v521 = vld [vmem:[%s257 + $0x3b8] sm:$0xf]
        %v522 = vld [vmem:[%s257 + $0x3bc] sm:$0xf]
        %v523 = vld [vmem:[%s257 + $0x3c0] sm:$0xf]
        %v524 = vld [vmem:[%s257 + $0x3c4] sm:$0xf]
        %v525 = vld [vmem:[%s257 + $0x3c8] sm:$0xf]
        %v526 = vld [vmem:[%s257 + $0x3cc] sm:$0xf]
        %v527 = vld [vmem:[%s257 + $0x3d0] sm:$0xf]
        %v528 = vld [vmem:[%s257 + $0x3d4] sm:$0xf]
        %v529 = vld [vmem:[%s257 + $0x3d8] sm:$0xf]
        %v530 = vld [vmem:[%s257 + $0x3dc] sm:$0xf]
        %v531 = vld [vmem:[%s257 + $0x3e0] sm:$0xf]
        %v532 = vld [vmem:[%s257 + $0x3e4] sm:$0xf]
        %v533 = vld [vmem:[%s257 + $0x3e8] sm:$0xf]
        %v534 = vld [vmem:[%s257 + $0x3ec] sm:$0xf]
        %v535 = vld [vmem:[%s257 + $0x3f0] sm:$0xf]
        %v536 = vld [vmem:[%s257 + $0x3f4] sm:$0xf]
        %v537 = vld [vmem:[%s257 + $0x3f8] sm:$0xf]
        %v538 = vld [vmem:[%s257 + $0x3fc] sm:$0xf]
        %v795 = vunpack.c.l.b16 %v283
        %v796 = vunpack.c.l.b16 %v284
        %v797 = vunpack.c.l.b16 %v285
        %v798 = vunpack.c.l.b16 %v286
        %v799 = vunpack.c.l.b16 %v287
        %v800 = vunpack.c.l.b16 %v288
        %v801 = vunpack.c.l.b16 %v289
        %v802 = vunpack.c.l.b16 %v290
        %v803 = vunpack.c.l.b16 %v291
        %v804 = vunpack.c.l.b16 %v292
        %v805 = vunpack.c.l.b16 %v293
        %v806 = vunpack.c.l.b16 %v294
        %v807 = vunpack.c.l.b16 %v295
        %v808 = vunpack.c.l.b16 %v296
        %v809 = vunpack.c.l.b16 %v297
        %v810 = vunpack.c.l.b16 %v298
        %v811 = vunpack.c.l.b16 %v299
        %v812 = vunpack.c.l.b16 %v300
        %v813 = vunpack.c.l.b16 %v301
        %v814 = vunpack.c.l.b16 %v302
        %v815 = vunpack.c.l.b16 %v303
        %v816 = vunpack.c.l.b16 %v304
        %v817 = vunpack.c.l.b16 %v305
        %v818 = vunpack.c.l.b16 %v306
        %v819 = vunpack.c.l.b16 %v307
        %v820 = vunpack.c.l.b16 %v308
        %v821 = vunpack.c.l.b16 %v309
        %v822 = vunpack.c.l.b16 %v310
        %v823 = vunpack.c.l.b16 %v311
        %v824 = vunpack.c.l.b16 %v312
        %v825 = vunpack.c.l.b16 %v313
        %v826 = vunpack.c.l.b16 %v314
        %v827 = vunpack.c.l.b16 %v315
        %v828 = vunpack.c.l.b16 %v316
        %v829 = vunpack.c.l.b16 %v317
        %v830 = vunpack.c.l.b16 %v318
        %v831 = vunpack.c.l.b16 %v319
        %v832 = vunpack.c.l.b16 %v320
        %v833 = vunpack.c.l.b16 %v321
        %v834 = vunpack.c.l.b16 %v322
        %v835 = vunpack.c.l.b16 %v323
        %v836 = vunpack.c.l.b16 %v324
        %v837 = vunpack.c.l.b16 %v325
        %v838 = vunpack.c.l.b16 %v326
        %v839 = vunpack.c.l.b16 %v327
        %v840 = vunpack.c.l.b16 %v328
        %v841 = vunpack.c.l.b16 %v329
        %v842 = vunpack.c.l.b16 %v330
        %v843 = vunpack.c.l.b16 %v331
        %v844 = vunpack.c.l.b16 %v332
        %v845 = vunpack.c.l.b16 %v333
        %v846 = vunpack.c.l.b16 %v334
        %v847 = vunpack.c.l.b16 %v335
        %v848 = vunpack.c.l.b16 %v336
        %v849 = vunpack.c.l.b16 %v337
        %v850 = vunpack.c.l.b16 %v338
        %v851 = vunpack.c.l.b16 %v339
        %v852 = vunpack.c.l.b16 %v340
        %v853 = vunpack.c.l.b16 %v341
        %v854 = vunpack.c.l.b16 %v342
        %v855 = vunpack.c.l.b16 %v343
        %v856 = vunpack.c.l.b16 %v344
        %v857 = vunpack.c.l.b16 %v345
        %v858 = vunpack.c.l.b16 %v346
        %v859 = vunpack.c.l.b16 %v347
        %v860 = vunpack.c.l.b16 %v348
        %v861 = vunpack.c.l.b16 %v349
        %v862 = vunpack.c.l.b16 %v350
        %v863 = vunpack.c.l.b16 %v351
        %v864 = vunpack.c.l.b16 %v352
        %v865 = vunpack.c.l.b16 %v353
        %v866 = vunpack.c.l.b16 %v354
        %v867 = vunpack.c.l.b16 %v355
        %v868 = vunpack.c.l.b16 %v356
        %v869 = vunpack.c.l.b16 %v357
        %v870 = vunpack.c.l.b16 %v358
        %v871 = vunpack.c.l.b16 %v359
        %v872 = vunpack.c.l.b16 %v360
        %v873 = vunpack.c.l.b16 %v361
        %v874 = vunpack.c.l.b16 %v362
        %v875 = vunpack.c.l.b16 %v363
        %v876 = vunpack.c.l.b16 %v364
        %v877 = vunpack.c.l.b16 %v365
        %v878 = vunpack.c.l.b16 %v366
        %v879 = vunpack.c.l.b16 %v367
        %v880 = vunpack.c.l.b16 %v368
        %v881 = vunpack.c.l.b16 %v369
        %v882 = vunpack.c.l.b16 %v370
        %v883 = vunpack.c.l.b16 %v371
        %v884 = vunpack.c.l.b16 %v372
        %v885 = vunpack.c.l.b16 %v373
        %v886 = vunpack.c.l.b16 %v374
        %v887 = vunpack.c.l.b16 %v375
        %v888 = vunpack.c.l.b16 %v376
        %v889 = vunpack.c.l.b16 %v377
        %v890 = vunpack.c.l.b16 %v378
        %v891 = vunpack.c.l.b16 %v379
        %v892 = vunpack.c.l.b16 %v380
        %v893 = vunpack.c.l.b16 %v381
        %v894 = vunpack.c.l.b16 %v382
        %v895 = vunpack.c.l.b16 %v383
        %v896 = vunpack.c.l.b16 %v384
        %v897 = vunpack.c.l.b16 %v385
        %v898 = vunpack.c.l.b16 %v386
        %v899 = vunpack.c.l.b16 %v387
        %v900 = vunpack.c.l.b16 %v388
        %v901 = vunpack.c.l.b16 %v389
        %v902 = vunpack.c.l.b16 %v390
        %v903 = vunpack.c.l.b16 %v391
        %v904 = vunpack.c.l.b16 %v392
        %v905 = vunpack.c.l.b16 %v393
        %v906 = vunpack.c.l.b16 %v394
        %v907 = vunpack.c.l.b16 %v395
        %v908 = vunpack.c.l.b16 %v396
        %v909 = vunpack.c.l.b16 %v397
        %v910 = vunpack.c.l.b16 %v398
        %v911 = vunpack.c.l.b16 %v399
        %v912 = vunpack.c.l.b16 %v400
        %v913 = vunpack.c.l.b16 %v401
        %v914 = vunpack.c.l.b16 %v402
        %v915 = vunpack.c.l.b16 %v403
        %v916 = vunpack.c.l.b16 %v404
        %v917 = vunpack.c.l.b16 %v405
        %v918 = vunpack.c.l.b16 %v406
        %v919 = vunpack.c.l.b16 %v407
        %v920 = vunpack.c.l.b16 %v408
        %v921 = vunpack.c.l.b16 %v409
        %v922 = vunpack.c.l.b16 %v410
        %v923 = vunpack.c.l.b16 %v411
        %v924 = vunpack.c.l.b16 %v412
        %v925 = vunpack.c.l.b16 %v413
        %v926 = vunpack.c.l.b16 %v414
        %v927 = vunpack.c.l.b16 %v415
        %v928 = vunpack.c.l.b16 %v416
        %v929 = vunpack.c.l.b16 %v417
        %v930 = vunpack.c.l.b16 %v418
        %v931 = vunpack.c.l.b16 %v419
        %v932 = vunpack.c.l.b16 %v420
        %v933 = vunpack.c.l.b16 %v421
        %v934 = vunpack.c.l.b16 %v422
        %v935 = vunpack.c.l.b16 %v423
        %v936 = vunpack.c.l.b16 %v424
        %v937 = vunpack.c.l.b16 %v425
        %v938 = vunpack.c.l.b16 %v426
        %v939 = vunpack.c.l.b16 %v427
        %v940 = vunpack.c.l.b16 %v428
        %v941 = vunpack.c.l.b16 %v429
        %v942 = vunpack.c.l.b16 %v430
        %v943 = vunpack.c.l.b16 %v431
        %v944 = vunpack.c.l.b16 %v432
        %v945 = vunpack.c.l.b16 %v433
        %v946 = vunpack.c.l.b16 %v434
        %v947 = vunpack.c.l.b16 %v435
        %v948 = vunpack.c.l.b16 %v436
        %v949 = vunpack.c.l.b16 %v437
        %v950 = vunpack.c.l.b16 %v438
        %v951 = vunpack.c.l.b16 %v439
        %v952 = vunpack.c.l.b16 %v440
        %v953 = vunpack.c.l.b16 %v441
        %v954 = vunpack.c.l.b16 %v442
        %v955 = vunpack.c.l.b16 %v443
        %v956 = vunpack.c.l.b16 %v444
        %v957 = vunpack.c.l.b16 %v445
        %v958 = vunpack.c.l.b16 %v446
        %v959 = vunpack.c.l.b16 %v447
        %v960 = vunpack.c.l.b16 %v448
        %v961 = vunpack.c.l.b16 %v449
        %v962 = vunpack.c.l.b16 %v450
        %v963 = vunpack.c.l.b16 %v451
        %v964 = vunpack.c.l.b16 %v452
        %v965 = vunpack.c.l.b16 %v453
        %v966 = vunpack.c.l.b16 %v454
        %v967 = vunpack.c.l.b16 %v455
        %v968 = vunpack.c.l.b16 %v456
        %v969 = vunpack.c.l.b16 %v457
        %v970 = vunpack.c.l.b16 %v458
        %v971 = vunpack.c.l.b16 %v459
        %v972 = vunpack.c.l.b16 %v460
        %v973 = vunpack.c.l.b16 %v461
        %v974 = vunpack.c.l.b16 %v462
        %v975 = vunpack.c.l.b16 %v463
        %v976 = vunpack.c.l.b16 %v464
        %v977 = vunpack.c.l.b16 %v465
        %v978 = vunpack.c.l.b16 %v466
        %v979 = vunpack.c.l.b16 %v467
        %v980 = vunpack.c.l.b16 %v468
        %v981 = vunpack.c.l.b16 %v469
        %v982 = vunpack.c.l.b16 %v470
        %v983 = vunpack.c.l.b16 %v471
        %v984 = vunpack.c.l.b16 %v472
        %v985 = vunpack.c.l.b16 %v473
        %v986 = vunpack.c.l.b16 %v474
        %v987 = vunpack.c.l.b16 %v475
        %v988 = vunpack.c.l.b16 %v476
        %v989 = vunpack.c.l.b16 %v477
        %v990 = vunpack.c.l.b16 %v478
        %v991 = vunpack.c.l.b16 %v479
        %v992 = vunpack.c.l.b16 %v480
        %v993 = vunpack.c.l.b16 %v481
        %v994 = vunpack.c.l.b16 %v482
        %v995 = vunpack.c.l.b16 %v483
        %v996 = vunpack.c.l.b16 %v484
        %v997 = vunpack.c.l.b16 %v485
        %v998 = vunpack.c.l.b16 %v486
        %v999 = vunpack.c.l.b16 %v487
        %v1000 = vunpack.c.l.b16 %v488
        %v1001 = vunpack.c.l.b16 %v489
        %v1002 = vunpack.c.l.b16 %v490
        %v1003 = vunpack.c.l.b16 %v491
        %v1004 = vunpack.c.l.b16 %v492
        %v1005 = vunpack.c.l.b16 %v493
        %v1006 = vunpack.c.l.b16 %v494
        %v1007 = vunpack.c.l.b16 %v495
        %v1008 = vunpack.c.l.b16 %v496
        %v1009 = vunpack.c.l.b16 %v497
        %v1010 = vunpack.c.l.b16 %v498
        %v1011 = vunpack.c.l.b16 %v499
        %v1012 = vunpack.c.l.b16 %v500
        %v1013 = vunpack.c.l.b16 %v501
        %v1014 = vunpack.c.l.b16 %v502
        %v1015 = vunpack.c.l.b16 %v503
        %v1016 = vunpack.c.l.b16 %v504
        %v1017 = vunpack.c.l.b16 %v505
        %v1018 = vunpack.c.l.b16 %v506
        %v1019 = vunpack.c.l.b16 %v507
        %v1020 = vunpack.c.l.b16 %v508
        %v1021 = vunpack.c.l.b16 %v509
        %v1022 = vunpack.c.l.b16 %v510
        %v1023 = vunpack.c.l.b16 %v511
        %v1024 = vunpack.c.l.b16 %v512
        %v1025 = vunpack.c.l.b16 %v513
        %v1026 = vunpack.c.l.b16 %v514
        %v1027 = vunpack.c.l.b16 %v515
        %v1028 = vunpack.c.l.b16 %v516
        %v1029 = vunpack.c.l.b16 %v517
        %v1030 = vunpack.c.l.b16 %v518
        %v1031 = vunpack.c.l.b16 %v519
        %v1032 = vunpack.c.l.b16 %v520
        %v1033 = vunpack.c.l.b16 %v521
        %v1034 = vunpack.c.l.b16 %v522
        %v1035 = vunpack.c.l.b16 %v523
        %v1036 = vunpack.c.l.b16 %v524
        %v1037 = vunpack.c.l.b16 %v525
        %v1038 = vunpack.c.l.b16 %v526
        %v1039 = vunpack.c.l.b16 %v527
        %v1040 = vunpack.c.l.b16 %v528
        %v1041 = vunpack.c.l.b16 %v529
        %v1042 = vunpack.c.l.b16 %v530
        %v1043 = vunpack.c.l.b16 %v531
        %v1044 = vunpack.c.l.b16 %v532
        %v1045 = vunpack.c.l.b16 %v533
        %v1046 = vunpack.c.l.b16 %v534
        %v1047 = vunpack.c.l.b16 %v535
        %v1048 = vunpack.c.l.b16 %v536
        %v1049 = vunpack.c.l.b16 %v537
        %v1050 = vunpack.c.l.b16 %v538
        %v1051 = vpack.c.b16 %v796, %v795
        %v1052 = vpack.c.b16 %v798, %v797
        %v1053 = vpack.c.b16 %v800, %v799
        %v1054 = vpack.c.b16 %v802, %v801
        %v1055 = vpack.c.b16 %v804, %v803
        %v1056 = vpack.c.b16 %v806, %v805
        %v1057 = vpack.c.b16 %v808, %v807
        %v1058 = vpack.c.b16 %v810, %v809
        %v1059 = vpack.c.b16 %v812, %v811
        %v1060 = vpack.c.b16 %v814, %v813
        %v1061 = vpack.c.b16 %v816, %v815
        %v1062 = vpack.c.b16 %v818, %v817
        %v1063 = vpack.c.b16 %v820, %v819
        %v1064 = vpack.c.b16 %v822, %v821
        %v1065 = vpack.c.b16 %v824, %v823
        %v1066 = vpack.c.b16 %v826, %v825
        %v1067 = vpack.c.b16 %v828, %v827
        %v1068 = vpack.c.b16 %v830, %v829
        %v1069 = vpack.c.b16 %v832, %v831
        %v1070 = vpack.c.b16 %v834, %v833
        %v1071 = vpack.c.b16 %v836, %v835
        %v1072 = vpack.c.b16 %v838, %v837
        %v1073 = vpack.c.b16 %v840, %v839
        %v1074 = vpack.c.b16 %v842, %v841
        %v1075 = vpack.c.b16 %v844, %v843
        %v1076 = vpack.c.b16 %v846, %v845
        %v1077 = vpack.c.b16 %v848, %v847
        %v1078 = vpack.c.b16 %v850, %v849
        %v1079 = vpack.c.b16 %v852, %v851
        %v1080 = vpack.c.b16 %v854, %v853
        %v1081 = vpack.c.b16 %v856, %v855
        %v1082 = vpack.c.b16 %v858, %v857
        %v1083 = vpack.c.b16 %v860, %v859
        %v1084 = vpack.c.b16 %v862, %v861
        %v1085 = vpack.c.b16 %v864, %v863
        %v1086 = vpack.c.b16 %v866, %v865
        %v1087 = vpack.c.b16 %v868, %v867
        %v1088 = vpack.c.b16 %v870, %v869
        %v1089 = vpack.c.b16 %v872, %v871
        %v1090 = vpack.c.b16 %v874, %v873
        %v1091 = vpack.c.b16 %v876, %v875
        %v1092 = vpack.c.b16 %v878, %v877
        %v1093 = vpack.c.b16 %v880, %v879
        %v1094 = vpack.c.b16 %v882, %v881
        %v1095 = vpack.c.b16 %v884, %v883
        %v1096 = vpack.c.b16 %v886, %v885
        %v1097 = vpack.c.b16 %v888, %v887
        %v1098 = vpack.c.b16 %v890, %v889
        %v1099 = vpack.c.b16 %v892, %v891
        %v1100 = vpack.c.b16 %v894, %v893
        %v1101 = vpack.c.b16 %v896, %v895
        %v1102 = vpack.c.b16 %v898, %v897
        %v1103 = vpack.c.b16 %v900, %v899
        %v1104 = vpack.c.b16 %v902, %v901
        %v1105 = vpack.c.b16 %v904, %v903
        %v1106 = vpack.c.b16 %v906, %v905
        %v1107 = vpack.c.b16 %v908, %v907
        %v1108 = vpack.c.b16 %v910, %v909
        %v1109 = vpack.c.b16 %v912, %v911
        %v1110 = vpack.c.b16 %v914, %v913
        %v1111 = vpack.c.b16 %v916, %v915
        %v1112 = vpack.c.b16 %v918, %v917
        %v1113 = vpack.c.b16 %v920, %v919
        %v1114 = vpack.c.b16 %v922, %v921
        %v1115 = vpack.c.b16 %v924, %v923
        %v1116 = vpack.c.b16 %v926, %v925
        %v1117 = vpack.c.b16 %v928, %v927
        %v1118 = vpack.c.b16 %v930, %v929
        %v1119 = vpack.c.b16 %v932, %v931
        %v1120 = vpack.c.b16 %v934, %v933
        %v1121 = vpack.c.b16 %v936, %v935
        %v1122 = vpack.c.b16 %v938, %v937
        %v1123 = vpack.c.b16 %v940, %v939
        %v1124 = vpack.c.b16 %v942, %v941
        %v1125 = vpack.c.b16 %v944, %v943
        %v1126 = vpack.c.b16 %v946, %v945
        %v1127 = vpack.c.b16 %v948, %v947
        %v1128 = vpack.c.b16 %v950, %v949
        %v1129 = vpack.c.b16 %v952, %v951
        %v1130 = vpack.c.b16 %v954, %v953
        %v1131 = vpack.c.b16 %v956, %v955
        %v1132 = vpack.c.b16 %v958, %v957
        %v1133 = vpack.c.b16 %v960, %v959
        %v1134 = vpack.c.b16 %v962, %v961
        %v1135 = vpack.c.b16 %v964, %v963
        %v1136 = vpack.c.b16 %v966, %v965
        %v1137 = vpack.c.b16 %v968, %v967
        %v1138 = vpack.c.b16 %v970, %v969
        %v1139 = vpack.c.b16 %v972, %v971
        %v1140 = vpack.c.b16 %v974, %v973
        %v1141 = vpack.c.b16 %v976, %v975
        %v1142 = vpack.c.b16 %v978, %v977
        %v1143 = vpack.c.b16 %v980, %v979
        %v1144 = vpack.c.b16 %v982, %v981
        %v1145 = vpack.c.b16 %v984, %v983
        %v1146 = vpack.c.b16 %v986, %v985
        %v1147 = vpack.c.b16 %v988, %v987
        %v1148 = vpack.c.b16 %v990, %v989
        %v1149 = vpack.c.b16 %v992, %v991
        %v1150 = vpack.c.b16 %v994, %v993
        %v1151 = vpack.c.b16 %v996, %v995
        %v1152 = vpack.c.b16 %v998, %v997
        %v1153 = vpack.c.b16 %v1000, %v999
        %v1154 = vpack.c.b16 %v1002, %v1001
        %v1155 = vpack.c.b16 %v1004, %v1003
        %v1156 = vpack.c.b16 %v1006, %v1005
        %v1157 = vpack.c.b16 %v1008, %v1007
        %v1158 = vpack.c.b16 %v1010, %v1009
        %v1159 = vpack.c.b16 %v1012, %v1011
        %v1160 = vpack.c.b16 %v1014, %v1013
        %v1161 = vpack.c.b16 %v1016, %v1015
        %v1162 = vpack.c.b16 %v1018, %v1017
        %v1163 = vpack.c.b16 %v1020, %v1019
        %v1164 = vpack.c.b16 %v1022, %v1021
        %v1165 = vpack.c.b16 %v1024, %v1023
        %v1166 = vpack.c.b16 %v1026, %v1025
        %v1167 = vpack.c.b16 %v1028, %v1027
        %v1168 = vpack.c.b16 %v1030, %v1029
        %v1169 = vpack.c.b16 %v1032, %v1031
        %v1170 = vpack.c.b16 %v1034, %v1033
        %v1171 = vpack.c.b16 %v1036, %v1035
        %v1172 = vpack.c.b16 %v1038, %v1037
        %v1173 = vpack.c.b16 %v1040, %v1039
        %v1174 = vpack.c.b16 %v1042, %v1041
        %v1175 = vpack.c.b16 %v1044, %v1043
        %v1176 = vpack.c.b16 %v1046, %v1045
        %v1177 = vpack.c.b16 %v1048, %v1047
        %v1178 = vpack.c.b16 %v1050, %v1049
        %v1183 = vunpack.c.l.b16 %v279
        %v1184 = vunpack.c.l.b16 %v280
        %v1185 = vunpack.c.l.b16 %v281
        %v1186 = vunpack.c.l.b16 %v282
        %v1187 = vpack.c.b16 %v1184, %v1183
        %v1188 = vpack.c.b16 %v1186, %v1185
        %vm1190 = vcmask 220160
        %v1192 = vsel %vm1190, %v1051, 0
        %v1195 = vsel %vm1190, %v1052, 0
        %v1198 = vsel %vm1190, %v1053, 0
        %v1201 = vsel %vm1190, %v1054, 0
        %v1204 = vsel %vm1190, %v1055, 0
        %v1207 = vsel %vm1190, %v1056, 0
        %v1210 = vsel %vm1190, %v1057, 0
        %v1213 = vsel %vm1190, %v1058, 0
        %v1216 = vsel %vm1190, %v1059, 0
        %v1219 = vsel %vm1190, %v1060, 0
        %v1222 = vsel %vm1190, %v1061, 0
        %v1225 = vsel %vm1190, %v1062, 0
        %v1228 = vsel %vm1190, %v1063, 0
        %v1231 = vsel %vm1190, %v1064, 0
        %v1234 = vsel %vm1190, %v1065, 0
        %v1237 = vsel %vm1190, %v1066, 0
        %v1240 = vsel %vm1190, %v1067, 0
        %v1243 = vsel %vm1190, %v1068, 0
        %v1246 = vsel %vm1190, %v1069, 0
        %v1249 = vsel %vm1190, %v1070, 0
        %v1252 = vsel %vm1190, %v1071, 0
        %v1255 = vsel %vm1190, %v1072, 0
        %v1258 = vsel %vm1190, %v1073, 0
        %v1261 = vsel %vm1190, %v1074, 0
        %v1264 = vsel %vm1190, %v1075, 0
        %v1267 = vsel %vm1190, %v1076, 0
        %v1270 = vsel %vm1190, %v1077, 0
        %v1273 = vsel %vm1190, %v1078, 0
        %v1276 = vsel %vm1190, %v1079, 0
        %v1279 = vsel %vm1190, %v1080, 0
        %v1282 = vsel %vm1190, %v1081, 0
        %v1285 = vsel %vm1190, %v1082, 0
        %v1288 = vsel %vm1190, %v1083, 0
        %v1291 = vsel %vm1190, %v1084, 0
        %v1294 = vsel %vm1190, %v1085, 0
        %v1297 = vsel %vm1190, %v1086, 0
        %v1300 = vsel %vm1190, %v1087, 0
        %v1303 = vsel %vm1190, %v1088, 0
        %v1306 = vsel %vm1190, %v1089, 0
        %v1309 = vsel %vm1190, %v1090, 0
        %v1312 = vsel %vm1190, %v1091, 0
        %v1315 = vsel %vm1190, %v1092, 0
        %v1318 = vsel %vm1190, %v1093, 0
        %v1321 = vsel %vm1190, %v1094, 0
        %v1324 = vsel %vm1190, %v1095, 0
        %v1327 = vsel %vm1190, %v1096, 0
        %v1330 = vsel %vm1190, %v1097, 0
        %v1333 = vsel %vm1190, %v1098, 0
        %v1336 = vsel %vm1190, %v1099, 0
        %v1339 = vsel %vm1190, %v1100, 0
        %v1342 = vsel %vm1190, %v1101, 0
        %v1345 = vsel %vm1190, %v1102, 0
        %v1348 = vsel %vm1190, %v1103, 0
        %v1351 = vsel %vm1190, %v1104, 0
        %v1354 = vsel %vm1190, %v1105, 0
        %v1357 = vsel %vm1190, %v1106, 0
        %v1360 = vsel %vm1190, %v1107, 0
        %v1363 = vsel %vm1190, %v1108, 0
        %v1366 = vsel %vm1190, %v1109, 0
        %v1369 = vsel %vm1190, %v1110, 0
        %v1372 = vsel %vm1190, %v1111, 0
        %v1375 = vsel %vm1190, %v1112, 0
        %v1378 = vsel %vm1190, %v1113, 0
        %v1381 = vsel %vm1190, %v1114, 0
        %v1384 = vsel %vm1190, %v1115, 0
        %v1387 = vsel %vm1190, %v1116, 0
        %v1390 = vsel %vm1190, %v1117, 0
        %v1393 = vsel %vm1190, %v1118, 0
        %v1396 = vsel %vm1190, %v1119, 0
        %v1399 = vsel %vm1190, %v1120, 0
        %v1402 = vsel %vm1190, %v1121, 0
        %v1405 = vsel %vm1190, %v1122, 0
        %v1408 = vsel %vm1190, %v1123, 0
        %v1411 = vsel %vm1190, %v1124, 0
        %v1414 = vsel %vm1190, %v1125, 0
        %v1417 = vsel %vm1190, %v1126, 0
        %v1420 = vsel %vm1190, %v1127, 0
        %v1423 = vsel %vm1190, %v1128, 0
        %v1426 = vsel %vm1190, %v1129, 0
        %v1429 = vsel %vm1190, %v1130, 0
        %v1432 = vsel %vm1190, %v1131, 0
        %v1435 = vsel %vm1190, %v1132, 0
        %v1438 = vsel %vm1190, %v1133, 0
        %v1441 = vsel %vm1190, %v1134, 0
        %v1444 = vsel %vm1190, %v1135, 0
        %v1447 = vsel %vm1190, %v1136, 0
        %v1450 = vsel %vm1190, %v1137, 0
        %v1453 = vsel %vm1190, %v1138, 0
        %v1456 = vsel %vm1190, %v1139, 0
        %v1459 = vsel %vm1190, %v1140, 0
        %v1462 = vsel %vm1190, %v1141, 0
        %v1465 = vsel %vm1190, %v1142, 0
        %v1468 = vsel %vm1190, %v1143, 0
        %v1471 = vsel %vm1190, %v1144, 0
        %v1474 = vsel %vm1190, %v1145, 0
        %v1477 = vsel %vm1190, %v1146, 0
        %v1480 = vsel %vm1190, %v1147, 0
        %v1483 = vsel %vm1190, %v1148, 0
        %v1486 = vsel %vm1190, %v1149, 0
        %v1489 = vsel %vm1190, %v1150, 0
        %v1492 = vsel %vm1190, %v1151, 0
        %v1495 = vsel %vm1190, %v1152, 0
        %v1498 = vsel %vm1190, %v1153, 0
        %v1501 = vsel %vm1190, %v1154, 0
        %v1504 = vsel %vm1190, %v1155, 0
        %v1507 = vsel %vm1190, %v1156, 0
        %v1510 = vsel %vm1190, %v1157, 0
        %v1513 = vsel %vm1190, %v1158, 0
        %v1516 = vsel %vm1190, %v1159, 0
        %v1519 = vsel %vm1190, %v1160, 0
        %v1522 = vsel %vm1190, %v1161, 0
        %v1525 = vsel %vm1190, %v1162, 0
        %v1528 = vsel %vm1190, %v1163, 0
        %v1531 = vsel %vm1190, %v1164, 0
        %v1534 = vsel %vm1190, %v1165, 0
        %v1537 = vsel %vm1190, %v1166, 0
        %v1540 = vsel %vm1190, %v1167, 0
        %v1543 = vsel %vm1190, %v1168, 0
        %v1546 = vsel %vm1190, %v1169, 0
        %v1549 = vsel %vm1190, %v1170, 0
        %v1552 = vsel %vm1190, %v1171, 0
        %v1555 = vsel %vm1190, %v1172, 0
        %v1558 = vsel %vm1190, %v1173, 0
        %v1561 = vsel %vm1190, %v1174, 0
        %v1564 = vsel %vm1190, %v1175, 0
        %v1567 = vsel %vm1190, %v1176, 0
        %v1570 = vsel %vm1190, %v1177, 0
        %v1573 = vsel %vm1190, %v1178, 0
        %vm1575 = vcmask 1044480
        %vm1576 = vcmask 1045504
        %v1577 = vsel %vm1575, 4294967295, 65535
        %v1578 = vsel %vm1576, %v1577, 0
        %v1580 = vand.u32 %v1188, %v1578
        %1582 = vmatpush.bf16.msra.mxu0 0
        %1583 = vmatpush.bf16.msra.mxu0 0
        %1584 = vmatpush.bf16.msra.mxu0 0
        %1585 = vmatpush.bf16.msra.mxu0 0
        %1586 = vmatpush.bf16.msra.mxu0 0
        %1587 = vmatpush.bf16.msra.mxu0 0
        %1588 = vmatpush.bf16.msra.mxu0 %v1580
        %1589 = vmatpush.bf16.msra.mxu0 %v1187
        %1590 = vmatmul.bf16.gmra.mxu0 %v1192
        %v1591 = vpop.f32.mrf.mxu0
        %v1592 = vadd.f32 0.0, %v1591
        %v1593 = vpop.f32.mrf.mxu0
        %v1594 = vadd.f32 0.0, %v1593
        %1595 = vmatmul.bf16.gmra.mxu0 %v1195
        %v1596 = vpop.f32.mrf.mxu0
        %v1597 = vadd.f32 0.0, %v1596
        %v1598 = vpop.f32.mrf.mxu0
        %v1599 = vadd.f32 0.0, %v1598
        %1600 = vmatmul.bf16.gmra.mxu0 %v1198
        %v1601 = vpop.f32.mrf.mxu0
        %v1602 = vadd.f32 0.0, %v1601
        %v1603 = vpop.f32.mrf.mxu0
        %v1604 = vadd.f32 0.0, %v1603
        %1605 = vmatmul.bf16.gmra.mxu0 %v1201
        %v1606 = vpop.f32.mrf.mxu0
        %v1607 = vadd.f32 0.0, %v1606
        %v1608 = vpop.f32.mrf.mxu0
        %v1609 = vadd.f32 0.0, %v1608
        %1610 = vmatmul.bf16.gmra.mxu0 %v1204
        %v1611 = vpop.f32.mrf.mxu0
        %v1612 = vadd.f32 0.0, %v1611
        %v1613 = vpop.f32.mrf.mxu0
        %v1614 = vadd.f32 0.0, %v1613
        %1615 = vmatmul.bf16.gmra.mxu0 %v1207
        %v1616 = vpop.f32.mrf.mxu0
        %v1617 = vadd.f32 0.0, %v1616
        %v1618 = vpop.f32.mrf.mxu0
        %v1619 = vadd.f32 0.0, %v1618
        %1620 = vmatmul.bf16.gmra.mxu0 %v1210
        %v1621 = vpop.f32.mrf.mxu0
        %v1622 = vadd.f32 0.0, %v1621
        %v1623 = vpop.f32.mrf.mxu0
        %v1624 = vadd.f32 0.0, %v1623
        %1625 = vmatmul.bf16.gmra.mxu0 %v1213
        %v1626 = vpop.f32.mrf.mxu0
        %v1627 = vadd.f32 0.0, %v1626
        %v1628 = vpop.f32.mrf.mxu0
        %v1629 = vadd.f32 0.0, %v1628
        %1630 = vmatmul.bf16.gmra.mxu0 %v1216
        %v1631 = vpop.f32.mrf.mxu0
        %v1632 = vadd.f32 0.0, %v1631
        %v1633 = vpop.f32.mrf.mxu0
        %v1634 = vadd.f32 0.0, %v1633
        %1635 = vmatmul.bf16.gmra.mxu0 %v1219
        %v1636 = vpop.f32.mrf.mxu0
        %v1637 = vadd.f32 0.0, %v1636
        %v1638 = vpop.f32.mrf.mxu0
        %v1639 = vadd.f32 0.0, %v1638
        %1640 = vmatmul.bf16.gmra.mxu0 %v1222
        %v1641 = vpop.f32.mrf.mxu0
        %v1642 = vadd.f32 0.0, %v1641
        %v1643 = vpop.f32.mrf.mxu0
        %v1644 = vadd.f32 0.0, %v1643
        %1645 = vmatmul.bf16.gmra.mxu0 %v1225
        %v1646 = vpop.f32.mrf.mxu0
        %v1647 = vadd.f32 0.0, %v1646
        %v1648 = vpop.f32.mrf.mxu0
        %v1649 = vadd.f32 0.0, %v1648
        %1650 = vmatmul.bf16.gmra.mxu0 %v1228
        %v1651 = vpop.f32.mrf.mxu0
        %v1652 = vadd.f32 0.0, %v1651
        %v1653 = vpop.f32.mrf.mxu0
        %v1654 = vadd.f32 0.0, %v1653
        %1655 = vmatmul.bf16.gmra.mxu0 %v1231
        %v1656 = vpop.f32.mrf.mxu0
        %v1657 = vadd.f32 0.0, %v1656
        %v1658 = vpop.f32.mrf.mxu0
        %v1659 = vadd.f32 0.0, %v1658
        %1660 = vmatmul.bf16.gmra.mxu0 %v1234
        %v1661 = vpop.f32.mrf.mxu0
        %v1662 = vadd.f32 0.0, %v1661
        %v1663 = vpop.f32.mrf.mxu0
        %v1664 = vadd.f32 0.0, %v1663
        %1665 = vmatmul.bf16.gmra.mxu0 %v1237
        %v1666 = vpop.f32.mrf.mxu0
        %v1667 = vadd.f32 0.0, %v1666
        %v1668 = vpop.f32.mrf.mxu0
        %v1669 = vadd.f32 0.0, %v1668
        %1670 = vmatmul.bf16.gmra.mxu0 %v1240
        %v1671 = vpop.f32.mrf.mxu0
        %v1672 = vadd.f32 0.0, %v1671
        %v1673 = vpop.f32.mrf.mxu0
        %v1674 = vadd.f32 0.0, %v1673
        %1675 = vmatmul.bf16.gmra.mxu0 %v1243
        %v1676 = vpop.f32.mrf.mxu0
        %v1677 = vadd.f32 0.0, %v1676
        %v1678 = vpop.f32.mrf.mxu0
        %v1679 = vadd.f32 0.0, %v1678
        %1680 = vmatmul.bf16.gmra.mxu0 %v1246
        %v1681 = vpop.f32.mrf.mxu0
        %v1682 = vadd.f32 0.0, %v1681
        %v1683 = vpop.f32.mrf.mxu0
        %v1684 = vadd.f32 0.0, %v1683
        %1685 = vmatmul.bf16.gmra.mxu0 %v1249
        %v1686 = vpop.f32.mrf.mxu0
        %v1687 = vadd.f32 0.0, %v1686
        %v1688 = vpop.f32.mrf.mxu0
        %v1689 = vadd.f32 0.0, %v1688
        %1690 = vmatmul.bf16.gmra.mxu0 %v1252
        %v1691 = vpop.f32.mrf.mxu0
        %v1692 = vadd.f32 0.0, %v1691
        %v1693 = vpop.f32.mrf.mxu0
        %v1694 = vadd.f32 0.0, %v1693
        %1695 = vmatmul.bf16.gmra.mxu0 %v1255
        %v1696 = vpop.f32.mrf.mxu0
        %v1697 = vadd.f32 0.0, %v1696
        %v1698 = vpop.f32.mrf.mxu0
        %v1699 = vadd.f32 0.0, %v1698
        %1700 = vmatmul.bf16.gmra.mxu0 %v1258
        %v1701 = vpop.f32.mrf.mxu0
        %v1702 = vadd.f32 0.0, %v1701
        %v1703 = vpop.f32.mrf.mxu0
        %v1704 = vadd.f32 0.0, %v1703
        %1705 = vmatmul.bf16.gmra.mxu0 %v1261
        %v1706 = vpop.f32.mrf.mxu0
        %v1707 = vadd.f32 0.0, %v1706
        %v1708 = vpop.f32.mrf.mxu0
        %v1709 = vadd.f32 0.0, %v1708
        %1710 = vmatmul.bf16.gmra.mxu0 %v1264
        %v1711 = vpop.f32.mrf.mxu0
        %v1712 = vadd.f32 0.0, %v1711
        %v1713 = vpop.f32.mrf.mxu0
        %v1714 = vadd.f32 0.0, %v1713
        %1715 = vmatmul.bf16.gmra.mxu0 %v1267
        %v1716 = vpop.f32.mrf.mxu0
        %v1717 = vadd.f32 0.0, %v1716
        %v1718 = vpop.f32.mrf.mxu0
        %v1719 = vadd.f32 0.0, %v1718
        %1720 = vmatmul.bf16.gmra.mxu0 %v1270
        %v1721 = vpop.f32.mrf.mxu0
        %v1722 = vadd.f32 0.0, %v1721
        %v1723 = vpop.f32.mrf.mxu0
        %v1724 = vadd.f32 0.0, %v1723
        %1725 = vmatmul.bf16.gmra.mxu0 %v1273
        %v1726 = vpop.f32.mrf.mxu0
        %v1727 = vadd.f32 0.0, %v1726
        %v1728 = vpop.f32.mrf.mxu0
        %v1729 = vadd.f32 0.0, %v1728
        %1730 = vmatmul.bf16.gmra.mxu0 %v1276
        %v1731 = vpop.f32.mrf.mxu0
        %v1732 = vadd.f32 0.0, %v1731
        %v1733 = vpop.f32.mrf.mxu0
        %v1734 = vadd.f32 0.0, %v1733
        %1735 = vmatmul.bf16.gmra.mxu0 %v1279
        %v1736 = vpop.f32.mrf.mxu0
        %v1737 = vadd.f32 0.0, %v1736
        %v1738 = vpop.f32.mrf.mxu0
        %v1739 = vadd.f32 0.0, %v1738
        %1740 = vmatmul.bf16.gmra.mxu0 %v1282
        %v1741 = vpop.f32.mrf.mxu0
        %v1742 = vadd.f32 0.0, %v1741
        %v1743 = vpop.f32.mrf.mxu0
        %v1744 = vadd.f32 0.0, %v1743
        %1745 = vmatmul.bf16.gmra.mxu0 %v1285
        %v1746 = vpop.f32.mrf.mxu0
        %v1747 = vadd.f32 0.0, %v1746
        %v1748 = vpop.f32.mrf.mxu0
        %v1749 = vadd.f32 0.0, %v1748
        %1750 = vmatmul.bf16.gmra.mxu0 %v1288
        %v1751 = vpop.f32.mrf.mxu0
        %v1752 = vadd.f32 0.0, %v1751
        %v1753 = vpop.f32.mrf.mxu0
        %v1754 = vadd.f32 0.0, %v1753
        %1755 = vmatmul.bf16.gmra.mxu0 %v1291
        %v1756 = vpop.f32.mrf.mxu0
        %v1757 = vadd.f32 0.0, %v1756
        %v1758 = vpop.f32.mrf.mxu0
        %v1759 = vadd.f32 0.0, %v1758
        %1760 = vmatmul.bf16.gmra.mxu0 %v1294
        %v1761 = vpop.f32.mrf.mxu0
        %v1762 = vadd.f32 0.0, %v1761
        %v1763 = vpop.f32.mrf.mxu0
        %v1764 = vadd.f32 0.0, %v1763
        %1765 = vmatmul.bf16.gmra.mxu0 %v1297
        %v1766 = vpop.f32.mrf.mxu0
        %v1767 = vadd.f32 0.0, %v1766
        %v1768 = vpop.f32.mrf.mxu0
        %v1769 = vadd.f32 0.0, %v1768
        %1770 = vmatmul.bf16.gmra.mxu0 %v1300
        %v1771 = vpop.f32.mrf.mxu0
        %v1772 = vadd.f32 0.0, %v1771
        %v1773 = vpop.f32.mrf.mxu0
        %v1774 = vadd.f32 0.0, %v1773
        %1775 = vmatmul.bf16.gmra.mxu0 %v1303
        %v1776 = vpop.f32.mrf.mxu0
        %v1777 = vadd.f32 0.0, %v1776
        %v1778 = vpop.f32.mrf.mxu0
        %v1779 = vadd.f32 0.0, %v1778
        %1780 = vmatmul.bf16.gmra.mxu0 %v1306
        %v1781 = vpop.f32.mrf.mxu0
        %v1782 = vadd.f32 0.0, %v1781
        %v1783 = vpop.f32.mrf.mxu0
        %v1784 = vadd.f32 0.0, %v1783
        %1785 = vmatmul.bf16.gmra.mxu0 %v1309
        %v1786 = vpop.f32.mrf.mxu0
        %v1787 = vadd.f32 0.0, %v1786
        %v1788 = vpop.f32.mrf.mxu0
        %v1789 = vadd.f32 0.0, %v1788
        %1790 = vmatmul.bf16.gmra.mxu0 %v1312
        %v1791 = vpop.f32.mrf.mxu0
        %v1792 = vadd.f32 0.0, %v1791
        %v1793 = vpop.f32.mrf.mxu0
        %v1794 = vadd.f32 0.0, %v1793
        %1795 = vmatmul.bf16.gmra.mxu0 %v1315
        %v1796 = vpop.f32.mrf.mxu0
        %v1797 = vadd.f32 0.0, %v1796
        %v1798 = vpop.f32.mrf.mxu0
        %v1799 = vadd.f32 0.0, %v1798
        %1800 = vmatmul.bf16.gmra.mxu0 %v1318
        %v1801 = vpop.f32.mrf.mxu0
        %v1802 = vadd.f32 0.0, %v1801
        %v1803 = vpop.f32.mrf.mxu0
        %v1804 = vadd.f32 0.0, %v1803
        %1805 = vmatmul.bf16.gmra.mxu0 %v1321
        %v1806 = vpop.f32.mrf.mxu0
        %v1807 = vadd.f32 0.0, %v1806
        %v1808 = vpop.f32.mrf.mxu0
        %v1809 = vadd.f32 0.0, %v1808
        %1810 = vmatmul.bf16.gmra.mxu0 %v1324
        %v1811 = vpop.f32.mrf.mxu0
        %v1812 = vadd.f32 0.0, %v1811
        %v1813 = vpop.f32.mrf.mxu0
        %v1814 = vadd.f32 0.0, %v1813
        %1815 = vmatmul.bf16.gmra.mxu0 %v1327
        %v1816 = vpop.f32.mrf.mxu0
        %v1817 = vadd.f32 0.0, %v1816
        %v1818 = vpop.f32.mrf.mxu0
        %v1819 = vadd.f32 0.0, %v1818
        %1820 = vmatmul.bf16.gmra.mxu0 %v1330
        %v1821 = vpop.f32.mrf.mxu0
        %v1822 = vadd.f32 0.0, %v1821
        %v1823 = vpop.f32.mrf.mxu0
        %v1824 = vadd.f32 0.0, %v1823
        %1825 = vmatmul.bf16.gmra.mxu0 %v1333
        %v1826 = vpop.f32.mrf.mxu0
        %v1827 = vadd.f32 0.0, %v1826
        %v1828 = vpop.f32.mrf.mxu0
        %v1829 = vadd.f32 0.0, %v1828
        %1830 = vmatmul.bf16.gmra.mxu0 %v1336
        %v1831 = vpop.f32.mrf.mxu0
        %v1832 = vadd.f32 0.0, %v1831
        %v1833 = vpop.f32.mrf.mxu0
        %v1834 = vadd.f32 0.0, %v1833
        %1835 = vmatmul.bf16.gmra.mxu0 %v1339
        %v1836 = vpop.f32.mrf.mxu0
        %v1837 = vadd.f32 0.0, %v1836
        %v1838 = vpop.f32.mrf.mxu0
        %v1839 = vadd.f32 0.0, %v1838
        %1840 = vmatmul.bf16.gmra.mxu0 %v1342
        %v1841 = vpop.f32.mrf.mxu0
        %v1842 = vadd.f32 0.0, %v1841
        %v1843 = vpop.f32.mrf.mxu0
        %v1844 = vadd.f32 0.0, %v1843
        %1845 = vmatmul.bf16.gmra.mxu0 %v1345
        %v1846 = vpop.f32.mrf.mxu0
        %v1847 = vadd.f32 0.0, %v1846
        %v1848 = vpop.f32.mrf.mxu0
        %v1849 = vadd.f32 0.0, %v1848
        %1850 = vmatmul.bf16.gmra.mxu0 %v1348
        %v1851 = vpop.f32.mrf.mxu0
        %v1852 = vadd.f32 0.0, %v1851
        %v1853 = vpop.f32.mrf.mxu0
        %v1854 = vadd.f32 0.0, %v1853
        %1855 = vmatmul.bf16.gmra.mxu0 %v1351
        %v1856 = vpop.f32.mrf.mxu0
        %v1857 = vadd.f32 0.0, %v1856
        %v1858 = vpop.f32.mrf.mxu0
        %v1859 = vadd.f32 0.0, %v1858
        %1860 = vmatmul.bf16.gmra.mxu0 %v1354
        %v1861 = vpop.f32.mrf.mxu0
        %v1862 = vadd.f32 0.0, %v1861
        %v1863 = vpop.f32.mrf.mxu0
        %v1864 = vadd.f32 0.0, %v1863
        %1865 = vmatmul.bf16.gmra.mxu0 %v1357
        %v1866 = vpop.f32.mrf.mxu0
        %v1867 = vadd.f32 0.0, %v1866
        %v1868 = vpop.f32.mrf.mxu0
        %v1869 = vadd.f32 0.0, %v1868
        %1870 = vmatmul.bf16.gmra.mxu0 %v1360
        %v1871 = vpop.f32.mrf.mxu0
        %v1872 = vadd.f32 0.0, %v1871
        %v1873 = vpop.f32.mrf.mxu0
        %v1874 = vadd.f32 0.0, %v1873
        %1875 = vmatmul.bf16.gmra.mxu0 %v1363
        %v1876 = vpop.f32.mrf.mxu0
        %v1877 = vadd.f32 0.0, %v1876
        %v1878 = vpop.f32.mrf.mxu0
        %v1879 = vadd.f32 0.0, %v1878
        %1880 = vmatmul.bf16.gmra.mxu0 %v1366
        %v1881 = vpop.f32.mrf.mxu0
        %v1882 = vadd.f32 0.0, %v1881
        %v1883 = vpop.f32.mrf.mxu0
        %v1884 = vadd.f32 0.0, %v1883
        %1885 = vmatmul.bf16.gmra.mxu0 %v1369
        %v1886 = vpop.f32.mrf.mxu0
        %v1887 = vadd.f32 0.0, %v1886
        %v1888 = vpop.f32.mrf.mxu0
        %v1889 = vadd.f32 0.0, %v1888
        %1890 = vmatmul.bf16.gmra.mxu0 %v1372
        %v1891 = vpop.f32.mrf.mxu0
        %v1892 = vadd.f32 0.0, %v1891
        %v1893 = vpop.f32.mrf.mxu0
        %v1894 = vadd.f32 0.0, %v1893
        %1895 = vmatmul.bf16.gmra.mxu0 %v1375
        %v1896 = vpop.f32.mrf.mxu0
        %v1897 = vadd.f32 0.0, %v1896
        %v1898 = vpop.f32.mrf.mxu0
        %v1899 = vadd.f32 0.0, %v1898
        %1900 = vmatmul.bf16.gmra.mxu0 %v1378
        %v1901 = vpop.f32.mrf.mxu0
        %v1902 = vadd.f32 0.0, %v1901
        %v1903 = vpop.f32.mrf.mxu0
        %v1904 = vadd.f32 0.0, %v1903
        %1905 = vmatmul.bf16.gmra.mxu0 %v1381
        %v1906 = vpop.f32.mrf.mxu0
        %v1907 = vadd.f32 0.0, %v1906
        %v1908 = vpop.f32.mrf.mxu0
        %v1909 = vadd.f32 0.0, %v1908
        %1910 = vmatmul.bf16.gmra.mxu0 %v1384
        %v1911 = vpop.f32.mrf.mxu0
        %v1912 = vadd.f32 0.0, %v1911
        %v1913 = vpop.f32.mrf.mxu0
        %v1914 = vadd.f32 0.0, %v1913
        %1915 = vmatmul.bf16.gmra.mxu0 %v1387
        %v1916 = vpop.f32.mrf.mxu0
        %v1917 = vadd.f32 0.0, %v1916
        %v1918 = vpop.f32.mrf.mxu0
        %v1919 = vadd.f32 0.0, %v1918
        %1920 = vmatmul.bf16.gmra.mxu0 %v1390
        %v1921 = vpop.f32.mrf.mxu0
        %v1922 = vadd.f32 0.0, %v1921
        %v1923 = vpop.f32.mrf.mxu0
        %v1924 = vadd.f32 0.0, %v1923
        %1925 = vmatmul.bf16.gmra.mxu0 %v1393
        %v1926 = vpop.f32.mrf.mxu0
        %v1927 = vadd.f32 0.0, %v1926
        %v1928 = vpop.f32.mrf.mxu0
        %v1929 = vadd.f32 0.0, %v1928
        %1930 = vmatmul.bf16.gmra.mxu0 %v1396
        %v1931 = vpop.f32.mrf.mxu0
        %v1932 = vadd.f32 0.0, %v1931
        %v1933 = vpop.f32.mrf.mxu0
        %v1934 = vadd.f32 0.0, %v1933
        %1935 = vmatmul.bf16.gmra.mxu0 %v1399
        %v1936 = vpop.f32.mrf.mxu0
        %v1937 = vadd.f32 0.0, %v1936
        %v1938 = vpop.f32.mrf.mxu0
        %v1939 = vadd.f32 0.0, %v1938
        %1940 = vmatmul.bf16.gmra.mxu0 %v1402
        %v1941 = vpop.f32.mrf.mxu0
        %v1942 = vadd.f32 0.0, %v1941
        %v1943 = vpop.f32.mrf.mxu0
        %v1944 = vadd.f32 0.0, %v1943
        %1945 = vmatmul.bf16.gmra.mxu0 %v1405
        %v1946 = vpop.f32.mrf.mxu0
        %v1947 = vadd.f32 0.0, %v1946
        %v1948 = vpop.f32.mrf.mxu0
        %v1949 = vadd.f32 0.0, %v1948
        %1950 = vmatmul.bf16.gmra.mxu0 %v1408
        %v1951 = vpop.f32.mrf.mxu0
        %v1952 = vadd.f32 0.0, %v1951
        %v1953 = vpop.f32.mrf.mxu0
        %v1954 = vadd.f32 0.0, %v1953
        %1955 = vmatmul.bf16.gmra.mxu0 %v1411
        %v1956 = vpop.f32.mrf.mxu0
        %v1957 = vadd.f32 0.0, %v1956
        %v1958 = vpop.f32.mrf.mxu0
        %v1959 = vadd.f32 0.0, %v1958
        %1960 = vmatmul.bf16.gmra.mxu0 %v1414
        %v1961 = vpop.f32.mrf.mxu0
        %v1962 = vadd.f32 0.0, %v1961
        %v1963 = vpop.f32.mrf.mxu0
        %v1964 = vadd.f32 0.0, %v1963
        %1965 = vmatmul.bf16.gmra.mxu0 %v1417
        %v1966 = vpop.f32.mrf.mxu0
        %v1967 = vadd.f32 0.0, %v1966
        %v1968 = vpop.f32.mrf.mxu0
        %v1969 = vadd.f32 0.0, %v1968
        %1970 = vmatmul.bf16.gmra.mxu0 %v1420
        %v1971 = vpop.f32.mrf.mxu0
        %v1972 = vadd.f32 0.0, %v1971
        %v1973 = vpop.f32.mrf.mxu0
        %v1974 = vadd.f32 0.0, %v1973
        %1975 = vmatmul.bf16.gmra.mxu0 %v1423
        %v1976 = vpop.f32.mrf.mxu0
        %v1977 = vadd.f32 0.0, %v1976
        %v1978 = vpop.f32.mrf.mxu0
        %v1979 = vadd.f32 0.0, %v1978
        %1980 = vmatmul.bf16.gmra.mxu0 %v1426
        %v1981 = vpop.f32.mrf.mxu0
        %v1982 = vadd.f32 0.0, %v1981
        %v1983 = vpop.f32.mrf.mxu0
        %v1984 = vadd.f32 0.0, %v1983
        %1985 = vmatmul.bf16.gmra.mxu0 %v1429
        %v1986 = vpop.f32.mrf.mxu0
        %v1987 = vadd.f32 0.0, %v1986
        %v1988 = vpop.f32.mrf.mxu0
        %v1989 = vadd.f32 0.0, %v1988
        %1990 = vmatmul.bf16.gmra.mxu0 %v1432
        %v1991 = vpop.f32.mrf.mxu0
        %v1992 = vadd.f32 0.0, %v1991
        %v1993 = vpop.f32.mrf.mxu0
        %v1994 = vadd.f32 0.0, %v1993
        %1995 = vmatmul.bf16.gmra.mxu0 %v1435
        %v1996 = vpop.f32.mrf.mxu0
        %v1997 = vadd.f32 0.0, %v1996
        %v1998 = vpop.f32.mrf.mxu0
        %v1999 = vadd.f32 0.0, %v1998
        %2000 = vmatmul.bf16.gmra.mxu0 %v1438
        %v2001 = vpop.f32.mrf.mxu0
        %v2002 = vadd.f32 0.0, %v2001
        %v2003 = vpop.f32.mrf.mxu0
        %v2004 = vadd.f32 0.0, %v2003
        %2005 = vmatmul.bf16.gmra.mxu0 %v1441
        %v2006 = vpop.f32.mrf.mxu0
        %v2007 = vadd.f32 0.0, %v2006
        %v2008 = vpop.f32.mrf.mxu0
        %v2009 = vadd.f32 0.0, %v2008
        %2010 = vmatmul.bf16.gmra.mxu0 %v1444
        %v2011 = vpop.f32.mrf.mxu0
        %v2012 = vadd.f32 0.0, %v2011
        %v2013 = vpop.f32.mrf.mxu0
        %v2014 = vadd.f32 0.0, %v2013
        %2015 = vmatmul.bf16.gmra.mxu0 %v1447
        %v2016 = vpop.f32.mrf.mxu0
        %v2017 = vadd.f32 0.0, %v2016
        %v2018 = vpop.f32.mrf.mxu0
        %v2019 = vadd.f32 0.0, %v2018
        %2020 = vmatmul.bf16.gmra.mxu0 %v1450
        %v2021 = vpop.f32.mrf.mxu0
        %v2022 = vadd.f32 0.0, %v2021
        %v2023 = vpop.f32.mrf.mxu0
        %v2024 = vadd.f32 0.0, %v2023
        %2025 = vmatmul.bf16.gmra.mxu0 %v1453
        %v2026 = vpop.f32.mrf.mxu0
        %v2027 = vadd.f32 0.0, %v2026
        %v2028 = vpop.f32.mrf.mxu0
        %v2029 = vadd.f32 0.0, %v2028
        %2030 = vmatmul.bf16.gmra.mxu0 %v1456
        %v2031 = vpop.f32.mrf.mxu0
        %v2032 = vadd.f32 0.0, %v2031
        %v2033 = vpop.f32.mrf.mxu0
        %v2034 = vadd.f32 0.0, %v2033
        %2035 = vmatmul.bf16.gmra.mxu0 %v1459
        %v2036 = vpop.f32.mrf.mxu0
        %v2037 = vadd.f32 0.0, %v2036
        %v2038 = vpop.f32.mrf.mxu0
        %v2039 = vadd.f32 0.0, %v2038
        %2040 = vmatmul.bf16.gmra.mxu0 %v1462
        %v2041 = vpop.f32.mrf.mxu0
        %v2042 = vadd.f32 0.0, %v2041
        %v2043 = vpop.f32.mrf.mxu0
        %v2044 = vadd.f32 0.0, %v2043
        %2045 = vmatmul.bf16.gmra.mxu0 %v1465
        %v2046 = vpop.f32.mrf.mxu0
        %v2047 = vadd.f32 0.0, %v2046
        %v2048 = vpop.f32.mrf.mxu0
        %v2049 = vadd.f32 0.0, %v2048
        %2050 = vmatmul.bf16.gmra.mxu0 %v1468
        %v2051 = vpop.f32.mrf.mxu0
        %v2052 = vadd.f32 0.0, %v2051
        %v2053 = vpop.f32.mrf.mxu0
        %v2054 = vadd.f32 0.0, %v2053
        %2055 = vmatmul.bf16.gmra.mxu0 %v1471
        %v2056 = vpop.f32.mrf.mxu0
        %v2057 = vadd.f32 0.0, %v2056
        %v2058 = vpop.f32.mrf.mxu0
        %v2059 = vadd.f32 0.0, %v2058
        %2060 = vmatmul.bf16.gmra.mxu0 %v1474
        %v2061 = vpop.f32.mrf.mxu0
        %v2062 = vadd.f32 0.0, %v2061
        %v2063 = vpop.f32.mrf.mxu0
        %v2064 = vadd.f32 0.0, %v2063
        %2065 = vmatmul.bf16.gmra.mxu0 %v1477
        %v2066 = vpop.f32.mrf.mxu0
        %v2067 = vadd.f32 0.0, %v2066
        %v2068 = vpop.f32.mrf.mxu0
        %v2069 = vadd.f32 0.0, %v2068
        %2070 = vmatmul.bf16.gmra.mxu0 %v1480
        %v2071 = vpop.f32.mrf.mxu0
        %v2072 = vadd.f32 0.0, %v2071
        %v2073 = vpop.f32.mrf.mxu0
        %v2074 = vadd.f32 0.0, %v2073
        %2075 = vmatmul.bf16.gmra.mxu0 %v1483
        %v2076 = vpop.f32.mrf.mxu0
        %v2077 = vadd.f32 0.0, %v2076
        %v2078 = vpop.f32.mrf.mxu0
        %v2079 = vadd.f32 0.0, %v2078
        %2080 = vmatmul.bf16.gmra.mxu0 %v1486
        %v2081 = vpop.f32.mrf.mxu0
        %v2082 = vadd.f32 0.0, %v2081
        %v2083 = vpop.f32.mrf.mxu0
        %v2084 = vadd.f32 0.0, %v2083
        %2085 = vmatmul.bf16.gmra.mxu0 %v1489
        %v2086 = vpop.f32.mrf.mxu0
        %v2087 = vadd.f32 0.0, %v2086
        %v2088 = vpop.f32.mrf.mxu0
        %v2089 = vadd.f32 0.0, %v2088
        %2090 = vmatmul.bf16.gmra.mxu0 %v1492
        %v2091 = vpop.f32.mrf.mxu0
        %v2092 = vadd.f32 0.0, %v2091
        %v2093 = vpop.f32.mrf.mxu0
        %v2094 = vadd.f32 0.0, %v2093
        %2095 = vmatmul.bf16.gmra.mxu0 %v1495
        %v2096 = vpop.f32.mrf.mxu0
        %v2097 = vadd.f32 0.0, %v2096
        %v2098 = vpop.f32.mrf.mxu0
        %v2099 = vadd.f32 0.0, %v2098
        %2100 = vmatmul.bf16.gmra.mxu0 %v1498
        %v2101 = vpop.f32.mrf.mxu0
        %v2102 = vadd.f32 0.0, %v2101
        %v2103 = vpop.f32.mrf.mxu0
        %v2104 = vadd.f32 0.0, %v2103
        %2105 = vmatmul.bf16.gmra.mxu0 %v1501
        %v2106 = vpop.f32.mrf.mxu0
        %v2107 = vadd.f32 0.0, %v2106
        %v2108 = vpop.f32.mrf.mxu0
        %v2109 = vadd.f32 0.0, %v2108
        %2110 = vmatmul.bf16.gmra.mxu0 %v1504
        %v2111 = vpop.f32.mrf.mxu0
        %v2112 = vadd.f32 0.0, %v2111
        %v2113 = vpop.f32.mrf.mxu0
        %v2114 = vadd.f32 0.0, %v2113
        %2115 = vmatmul.bf16.gmra.mxu0 %v1507
        %v2116 = vpop.f32.mrf.mxu0
        %v2117 = vadd.f32 0.0, %v2116
        %v2118 = vpop.f32.mrf.mxu0
        %v2119 = vadd.f32 0.0, %v2118
        %2120 = vmatmul.bf16.gmra.mxu0 %v1510
        %v2121 = vpop.f32.mrf.mxu0
        %v2122 = vadd.f32 0.0, %v2121
        %v2123 = vpop.f32.mrf.mxu0
        %v2124 = vadd.f32 0.0, %v2123
        %2125 = vmatmul.bf16.gmra.mxu0 %v1513
        %v2126 = vpop.f32.mrf.mxu0
        %v2127 = vadd.f32 0.0, %v2126
        %v2128 = vpop.f32.mrf.mxu0
        %v2129 = vadd.f32 0.0, %v2128
        %2130 = vmatmul.bf16.gmra.mxu0 %v1516
        %v2131 = vpop.f32.mrf.mxu0
        %v2132 = vadd.f32 0.0, %v2131
        %v2133 = vpop.f32.mrf.mxu0
        %v2134 = vadd.f32 0.0, %v2133
        %2135 = vmatmul.bf16.gmra.mxu0 %v1519
        %v2136 = vpop.f32.mrf.mxu0
        %v2137 = vadd.f32 0.0, %v2136
        %v2138 = vpop.f32.mrf.mxu0
        %v2139 = vadd.f32 0.0, %v2138
        %2140 = vmatmul.bf16.gmra.mxu0 %v1522
        %v2141 = vpop.f32.mrf.mxu0
        %v2142 = vadd.f32 0.0, %v2141
        %v2143 = vpop.f32.mrf.mxu0
        %v2144 = vadd.f32 0.0, %v2143
        %2145 = vmatmul.bf16.gmra.mxu0 %v1525
        %v2146 = vpop.f32.mrf.mxu0
        %v2147 = vadd.f32 0.0, %v2146
        %v2148 = vpop.f32.mrf.mxu0
        %v2149 = vadd.f32 0.0, %v2148
        %2150 = vmatmul.bf16.gmra.mxu0 %v1528
        %v2151 = vpop.f32.mrf.mxu0
        %v2152 = vadd.f32 0.0, %v2151
        %v2153 = vpop.f32.mrf.mxu0
        %v2154 = vadd.f32 0.0, %v2153
        %2155 = vmatmul.bf16.gmra.mxu0 %v1531
        %v2156 = vpop.f32.mrf.mxu0
        %v2157 = vadd.f32 0.0, %v2156
        %v2158 = vpop.f32.mrf.mxu0
        %v2159 = vadd.f32 0.0, %v2158
        %2160 = vmatmul.bf16.gmra.mxu0 %v1534
        %v2161 = vpop.f32.mrf.mxu0
        %v2162 = vadd.f32 0.0, %v2161
        %v2163 = vpop.f32.mrf.mxu0
        %v2164 = vadd.f32 0.0, %v2163
        %2165 = vmatmul.bf16.gmra.mxu0 %v1537
        %v2166 = vpop.f32.mrf.mxu0
        %v2167 = vadd.f32 0.0, %v2166
        %v2168 = vpop.f32.mrf.mxu0
        %v2169 = vadd.f32 0.0, %v2168
        %2170 = vmatmul.bf16.gmra.mxu0 %v1540
        %v2171 = vpop.f32.mrf.mxu0
        %v2172 = vadd.f32 0.0, %v2171
        %v2173 = vpop.f32.mrf.mxu0
        %v2174 = vadd.f32 0.0, %v2173
        %2175 = vmatmul.bf16.gmra.mxu0 %v1543
        %v2176 = vpop.f32.mrf.mxu0
        %v2177 = vadd.f32 0.0, %v2176
        %v2178 = vpop.f32.mrf.mxu0
        %v2179 = vadd.f32 0.0, %v2178
        %2180 = vmatmul.bf16.gmra.mxu0 %v1546
        %v2181 = vpop.f32.mrf.mxu0
        %v2182 = vadd.f32 0.0, %v2181
        %v2183 = vpop.f32.mrf.mxu0
        %v2184 = vadd.f32 0.0, %v2183
        %2185 = vmatmul.bf16.gmra.mxu0 %v1549
        %v2186 = vpop.f32.mrf.mxu0
        %v2187 = vadd.f32 0.0, %v2186
        %v2188 = vpop.f32.mrf.mxu0
        %v2189 = vadd.f32 0.0, %v2188
        %2190 = vmatmul.bf16.gmra.mxu0 %v1552
        %v2191 = vpop.f32.mrf.mxu0
        %v2192 = vadd.f32 0.0, %v2191
        %v2193 = vpop.f32.mrf.mxu0
        %v2194 = vadd.f32 0.0, %v2193
        %2195 = vmatmul.bf16.gmra.mxu0 %v1555
        %v2196 = vpop.f32.mrf.mxu0
        %v2197 = vadd.f32 0.0, %v2196
        %v2198 = vpop.f32.mrf.mxu0
        %v2199 = vadd.f32 0.0, %v2198
        %2200 = vmatmul.bf16.gmra.mxu0 %v1558
        %v2201 = vpop.f32.mrf.mxu0
        %v2202 = vadd.f32 0.0, %v2201
        %v2203 = vpop.f32.mrf.mxu0
        %v2204 = vadd.f32 0.0, %v2203
        %2205 = vmatmul.bf16.gmra.mxu0 %v1561
        %v2206 = vpop.f32.mrf.mxu0
        %v2207 = vadd.f32 0.0, %v2206
        %v2208 = vpop.f32.mrf.mxu0
        %v2209 = vadd.f32 0.0, %v2208
        %2210 = vmatmul.bf16.gmra.mxu0 %v1564
        %v2211 = vpop.f32.mrf.mxu0
        %v2212 = vadd.f32 0.0, %v2211
        %v2213 = vpop.f32.mrf.mxu0
        %v2214 = vadd.f32 0.0, %v2213
        %2215 = vmatmul.bf16.gmra.mxu0 %v1567
        %v2216 = vpop.f32.mrf.mxu0
        %v2217 = vadd.f32 0.0, %v2216
        %v2218 = vpop.f32.mrf.mxu0
        %v2219 = vadd.f32 0.0, %v2218
        %2220 = vmatmul.bf16.gmra.mxu0 %v1570
        %v2221 = vpop.f32.mrf.mxu0
        %v2222 = vadd.f32 0.0, %v2221
        %v2223 = vpop.f32.mrf.mxu0
        %v2224 = vadd.f32 0.0, %v2223
        %2225 = vmatmul.bf16.gmra.mxu0 %v1573
        %v2226 = vpop.f32.mrf.mxu0
        %v2227 = vadd.f32 0.0, %v2226
        %v2228 = vpop.f32.mrf.mxu0
        %v2229 = vadd.f32 0.0, %v2228
        %2230 = vdwg.mxu0
        %v2231 = vld [vmem:[%s269] sm:$0x1]
        %v2233 = vperm.slane %v2231, 0
        %v2235 = vmul.f32 %v1592, %v2233
        %v2236 = vmul.f32 %v1594, %v2233
        %v2237 = vmul.f32 %v1597, %v2233
        %v2238 = vmul.f32 %v1599, %v2233
        %v2239 = vmul.f32 %v1602, %v2233
        %v2240 = vmul.f32 %v1604, %v2233
        %v2241 = vmul.f32 %v1607, %v2233
        %v2242 = vmul.f32 %v1609, %v2233
        %v2243 = vmul.f32 %v1612, %v2233
        %v2244 = vmul.f32 %v1614, %v2233
        %v2245 = vmul.f32 %v1617, %v2233
        %v2246 = vmul.f32 %v1619, %v2233
        %v2247 = vmul.f32 %v1622, %v2233
        %v2248 = vmul.f32 %v1624, %v2233
        %v2249 = vmul.f32 %v1627, %v2233
        %v2250 = vmul.f32 %v1629, %v2233
        %v2251 = vmul.f32 %v1632, %v2233
        %v2252 = vmul.f32 %v1634, %v2233
        %v2253 = vmul.f32 %v1637, %v2233
        %v2254 = vmul.f32 %v1639, %v2233
        %v2255 = vmul.f32 %v1642, %v2233
        %v2256 = vmul.f32 %v1644, %v2233
        %v2257 = vmul.f32 %v1647, %v2233
        %v2258 = vmul.f32 %v1649, %v2233
        %v2259 = vmul.f32 %v1652, %v2233
        %v2260 = vmul.f32 %v1654, %v2233
        %v2261 = vmul.f32 %v1657, %v2233
        %v2262 = vmul.f32 %v1659, %v2233
        %v2263 = vmul.f32 %v1662, %v2233
        %v2264 = vmul.f32 %v1664, %v2233
        %v2265 = vmul.f32 %v1667, %v2233
        %v2266 = vmul.f32 %v1669, %v2233
        %v2267 = vmul.f32 %v1672, %v2233
        %v2268 = vmul.f32 %v1674, %v2233
        %v2269 = vmul.f32 %v1677, %v2233
        %v2270 = vmul.f32 %v1679, %v2233
        %v2271 = vmul.f32 %v1682, %v2233
        %v2272 = vmul.f32 %v1684, %v2233
        %v2273 = vmul.f32 %v1687, %v2233
        %v2274 = vmul.f32 %v1689, %v2233
        %v2275 = vmul.f32 %v1692, %v2233
        %v2276 = vmul.f32 %v1694, %v2233
        %v2277 = vmul.f32 %v1697, %v2233
        %v2278 = vmul.f32 %v1699, %v2233
        %v2279 = vmul.f32 %v1702, %v2233
        %v2280 = vmul.f32 %v1704, %v2233
        %v2281 = vmul.f32 %v1707, %v2233
        %v2282 = vmul.f32 %v1709, %v2233
        %v2283 = vmul.f32 %v1712, %v2233
        %v2284 = vmul.f32 %v1714, %v2233
        %v2285 = vmul.f32 %v1717, %v2233
        %v2286 = vmul.f32 %v1719, %v2233
        %v2287 = vmul.f32 %v1722, %v2233
        %v2288 = vmul.f32 %v1724, %v2233
        %v2289 = vmul.f32 %v1727, %v2233
        %v2290 = vmul.f32 %v1729, %v2233
        %v2291 = vmul.f32 %v1732, %v2233
        %v2292 = vmul.f32 %v1734, %v2233
        %v2293 = vmul.f32 %v1737, %v2233
        %v2294 = vmul.f32 %v1739, %v2233
        %v2295 = vmul.f32 %v1742, %v2233
        %v2296 = vmul.f32 %v1744, %v2233
        %v2297 = vmul.f32 %v1747, %v2233
        %v2298 = vmul.f32 %v1749, %v2233
        %v2299 = vmul.f32 %v1752, %v2233
        %v2300 = vmul.f32 %v1754, %v2233
        %v2301 = vmul.f32 %v1757, %v2233
        %v2302 = vmul.f32 %v1759, %v2233
        %v2303 = vmul.f32 %v1762, %v2233
        %v2304 = vmul.f32 %v1764, %v2233
        %v2305 = vmul.f32 %v1767, %v2233
        %v2306 = vmul.f32 %v1769, %v2233
        %v2307 = vmul.f32 %v1772, %v2233
        %v2308 = vmul.f32 %v1774, %v2233
        %v2309 = vmul.f32 %v1777, %v2233
        %v2310 = vmul.f32 %v1779, %v2233
        %v2311 = vmul.f32 %v1782, %v2233
        %v2312 = vmul.f32 %v1784, %v2233
        %v2313 = vmul.f32 %v1787, %v2233
        %v2314 = vmul.f32 %v1789, %v2233
        %v2315 = vmul.f32 %v1792, %v2233
        %v2316 = vmul.f32 %v1794, %v2233
        %v2317 = vmul.f32 %v1797, %v2233
        %v2318 = vmul.f32 %v1799, %v2233
        %v2319 = vmul.f32 %v1802, %v2233
        %v2320 = vmul.f32 %v1804, %v2233
        %v2321 = vmul.f32 %v1807, %v2233
        %v2322 = vmul.f32 %v1809, %v2233
        %v2323 = vmul.f32 %v1812, %v2233
        %v2324 = vmul.f32 %v1814, %v2233
        %v2325 = vmul.f32 %v1817, %v2233
        %v2326 = vmul.f32 %v1819, %v2233
        %v2327 = vmul.f32 %v1822, %v2233
        %v2328 = vmul.f32 %v1824, %v2233
        %v2329 = vmul.f32 %v1827, %v2233
        %v2330 = vmul.f32 %v1829, %v2233
        %v2331 = vmul.f32 %v1832, %v2233
        %v2332 = vmul.f32 %v1834, %v2233
        %v2333 = vmul.f32 %v1837, %v2233
        %v2334 = vmul.f32 %v1839, %v2233
        %v2335 = vmul.f32 %v1842, %v2233
        %v2336 = vmul.f32 %v1844, %v2233
        %v2337 = vmul.f32 %v1847, %v2233
        %v2338 = vmul.f32 %v1849, %v2233
        %v2339 = vmul.f32 %v1852, %v2233
        %v2340 = vmul.f32 %v1854, %v2233
        %v2341 = vmul.f32 %v1857, %v2233
        %v2342 = vmul.f32 %v1859, %v2233
        %v2343 = vmul.f32 %v1862, %v2233
        %v2344 = vmul.f32 %v1864, %v2233
        %v2345 = vmul.f32 %v1867, %v2233
        %v2346 = vmul.f32 %v1869, %v2233
        %v2347 = vmul.f32 %v1872, %v2233
        %v2348 = vmul.f32 %v1874, %v2233
        %v2349 = vmul.f32 %v1877, %v2233
        %v2350 = vmul.f32 %v1879, %v2233
        %v2351 = vmul.f32 %v1882, %v2233
        %v2352 = vmul.f32 %v1884, %v2233
        %v2353 = vmul.f32 %v1887, %v2233
        %v2354 = vmul.f32 %v1889, %v2233
        %v2355 = vmul.f32 %v1892, %v2233
        %v2356 = vmul.f32 %v1894, %v2233
        %v2357 = vmul.f32 %v1897, %v2233
        %v2358 = vmul.f32 %v1899, %v2233
        %v2359 = vmul.f32 %v1902, %v2233
        %v2360 = vmul.f32 %v1904, %v2233
        %v2361 = vmul.f32 %v1907, %v2233
        %v2362 = vmul.f32 %v1909, %v2233
        %v2363 = vmul.f32 %v1912, %v2233
        %v2364 = vmul.f32 %v1914, %v2233
        %v2365 = vmul.f32 %v1917, %v2233
        %v2366 = vmul.f32 %v1919, %v2233
        %v2367 = vmul.f32 %v1922, %v2233
        %v2368 = vmul.f32 %v1924, %v2233
        %v2369 = vmul.f32 %v1927, %v2233
        %v2370 = vmul.f32 %v1929, %v2233
        %v2371 = vmul.f32 %v1932, %v2233
        %v2372 = vmul.f32 %v1934, %v2233
        %v2373 = vmul.f32 %v1937, %v2233
        %v2374 = vmul.f32 %v1939, %v2233
        %v2375 = vmul.f32 %v1942, %v2233
        %v2376 = vmul.f32 %v1944, %v2233
        %v2377 = vmul.f32 %v1947, %v2233
        %v2378 = vmul.f32 %v1949, %v2233
        %v2379 = vmul.f32 %v1952, %v2233
        %v2380 = vmul.f32 %v1954, %v2233
        %v2381 = vmul.f32 %v1957, %v2233
        %v2382 = vmul.f32 %v1959, %v2233
        %v2383 = vmul.f32 %v1962, %v2233
        %v2384 = vmul.f32 %v1964, %v2233
        %v2385 = vmul.f32 %v1967, %v2233
        %v2386 = vmul.f32 %v1969, %v2233
        %v2387 = vmul.f32 %v1972, %v2233
        %v2388 = vmul.f32 %v1974, %v2233
        %v2389 = vmul.f32 %v1977, %v2233
        %v2390 = vmul.f32 %v1979, %v2233
        %v2391 = vmul.f32 %v1982, %v2233
        %v2392 = vmul.f32 %v1984, %v2233
        %v2393 = vmul.f32 %v1987, %v2233
        %v2394 = vmul.f32 %v1989, %v2233
        %v2395 = vmul.f32 %v1992, %v2233
        %v2396 = vmul.f32 %v1994, %v2233
        %v2397 = vmul.f32 %v1997, %v2233
        %v2398 = vmul.f32 %v1999, %v2233
        %v2399 = vmul.f32 %v2002, %v2233
        %v2400 = vmul.f32 %v2004, %v2233
        %v2401 = vmul.f32 %v2007, %v2233
        %v2402 = vmul.f32 %v2009, %v2233
        %v2403 = vmul.f32 %v2012, %v2233
        %v2404 = vmul.f32 %v2014, %v2233
        %v2405 = vmul.f32 %v2017, %v2233
        %v2406 = vmul.f32 %v2019, %v2233
        %v2407 = vmul.f32 %v2022, %v2233
        %v2408 = vmul.f32 %v2024, %v2233
        %v2409 = vmul.f32 %v2027, %v2233
        %v2410 = vmul.f32 %v2029, %v2233
        %v2411 = vmul.f32 %v2032, %v2233
        %v2412 = vmul.f32 %v2034, %v2233
        %v2413 = vmul.f32 %v2037, %v2233
        %v2414 = vmul.f32 %v2039, %v2233
        %v2415 = vmul.f32 %v2042, %v2233
        %v2416 = vmul.f32 %v2044, %v2233
        %v2417 = vmul.f32 %v2047, %v2233
        %v2418 = vmul.f32 %v2049, %v2233
        %v2419 = vmul.f32 %v2052, %v2233
        %v2420 = vmul.f32 %v2054, %v2233
        %v2421 = vmul.f32 %v2057, %v2233
        %v2422 = vmul.f32 %v2059, %v2233
        %v2423 = vmul.f32 %v2062, %v2233
        %v2424 = vmul.f32 %v2064, %v2233
        %v2425 = vmul.f32 %v2067, %v2233
        %v2426 = vmul.f32 %v2069, %v2233
        %v2427 = vmul.f32 %v2072, %v2233
        %v2428 = vmul.f32 %v2074, %v2233
        %v2429 = vmul.f32 %v2077, %v2233
        %v2430 = vmul.f32 %v2079, %v2233
        %v2431 = vmul.f32 %v2082, %v2233
        %v2432 = vmul.f32 %v2084, %v2233
        %v2433 = vmul.f32 %v2087, %v2233
        %v2434 = vmul.f32 %v2089, %v2233
        %v2435 = vmul.f32 %v2092, %v2233
        %v2436 = vmul.f32 %v2094, %v2233
        %v2437 = vmul.f32 %v2097, %v2233
        %v2438 = vmul.f32 %v2099, %v2233
        %v2439 = vmul.f32 %v2102, %v2233
        %v2440 = vmul.f32 %v2104, %v2233
        %v2441 = vmul.f32 %v2107, %v2233
        %v2442 = vmul.f32 %v2109, %v2233
        %v2443 = vmul.f32 %v2112, %v2233
        %v2444 = vmul.f32 %v2114, %v2233
        %v2445 = vmul.f32 %v2117, %v2233
        %v2446 = vmul.f32 %v2119, %v2233
        %v2447 = vmul.f32 %v2122, %v2233
        %v2448 = vmul.f32 %v2124, %v2233
        %v2449 = vmul.f32 %v2127, %v2233
        %v2450 = vmul.f32 %v2129, %v2233
        %v2451 = vmul.f32 %v2132, %v2233
        %v2452 = vmul.f32 %v2134, %v2233
        %v2453 = vmul.f32 %v2137, %v2233
        %v2454 = vmul.f32 %v2139, %v2233
        %v2455 = vmul.f32 %v2142, %v2233
        %v2456 = vmul.f32 %v2144, %v2233
        %v2457 = vmul.f32 %v2147, %v2233
        %v2458 = vmul.f32 %v2149, %v2233
        %v2459 = vmul.f32 %v2152, %v2233
        %v2460 = vmul.f32 %v2154, %v2233
        %v2461 = vmul.f32 %v2157, %v2233
        %v2462 = vmul.f32 %v2159, %v2233
        %v2463 = vmul.f32 %v2162, %v2233
        %v2464 = vmul.f32 %v2164, %v2233
        %v2465 = vmul.f32 %v2167, %v2233
        %v2466 = vmul.f32 %v2169, %v2233
        %v2467 = vmul.f32 %v2172, %v2233
        %v2468 = vmul.f32 %v2174, %v2233
        %v2469 = vmul.f32 %v2177, %v2233
        %v2470 = vmul.f32 %v2179, %v2233
        %v2471 = vmul.f32 %v2182, %v2233
        %v2472 = vmul.f32 %v2184, %v2233
        %v2473 = vmul.f32 %v2187, %v2233
        %v2474 = vmul.f32 %v2189, %v2233
        %v2475 = vmul.f32 %v2192, %v2233
        %v2476 = vmul.f32 %v2194, %v2233
        %v2477 = vmul.f32 %v2197, %v2233
        %v2478 = vmul.f32 %v2199, %v2233
        %v2479 = vmul.f32 %v2202, %v2233
        %v2480 = vmul.f32 %v2204, %v2233
        %v2481 = vmul.f32 %v2207, %v2233
        %v2482 = vmul.f32 %v2209, %v2233
        %v2483 = vmul.f32 %v2212, %v2233
        %v2484 = vmul.f32 %v2214, %v2233
        %v2485 = vmul.f32 %v2217, %v2233
        %v2486 = vmul.f32 %v2219, %v2233
        %v2487 = vmul.f32 %v2222, %v2233
        %v2488 = vmul.f32 %v2224, %v2233
        %v2489 = vmul.f32 %v2227, %v2233
        %v2490 = vmul.f32 %v2229, %v2233
        %v2491 = vld [vmem:[%s272] sm:$0x1]
        %v2493 = vperm.slane %v2491, 0
        %v2495 = vadd.f32 %v2235, %v2493
        %v2496 = vadd.f32 %v2236, %v2493
        %v2497 = vadd.f32 %v2237, %v2493
        %v2498 = vadd.f32 %v2238, %v2493
        %v2499 = vadd.f32 %v2239, %v2493
        %v2500 = vadd.f32 %v2240, %v2493
        %v2501 = vadd.f32 %v2241, %v2493
        %v2502 = vadd.f32 %v2242, %v2493
        %v2503 = vadd.f32 %v2243, %v2493
        %v2504 = vadd.f32 %v2244, %v2493
        %v2505 = vadd.f32 %v2245, %v2493
        %v2506 = vadd.f32 %v2246, %v2493
        %v2507 = vadd.f32 %v2247, %v2493
        %v2508 = vadd.f32 %v2248, %v2493
        %v2509 = vadd.f32 %v2249, %v2493
        %v2510 = vadd.f32 %v2250, %v2493
        %v2511 = vadd.f32 %v2251, %v2493
        %v2512 = vadd.f32 %v2252, %v2493
        %v2513 = vadd.f32 %v2253, %v2493
        %v2514 = vadd.f32 %v2254, %v2493
        %v2515 = vadd.f32 %v2255, %v2493
        %v2516 = vadd.f32 %v2256, %v2493
        %v2517 = vadd.f32 %v2257, %v2493
        %v2518 = vadd.f32 %v2258, %v2493
        %v2519 = vadd.f32 %v2259, %v2493
        %v2520 = vadd.f32 %v2260, %v2493
        %v2521 = vadd.f32 %v2261, %v2493
        %v2522 = vadd.f32 %v2262, %v2493
        %v2523 = vadd.f32 %v2263, %v2493
        %v2524 = vadd.f32 %v2264, %v2493
        %v2525 = vadd.f32 %v2265, %v2493
        %v2526 = vadd.f32 %v2266, %v2493
        %v2527 = vadd.f32 %v2267, %v2493
        %v2528 = vadd.f32 %v2268, %v2493
        %v2529 = vadd.f32 %v2269, %v2493
        %v2530 = vadd.f32 %v2270, %v2493
        %v2531 = vadd.f32 %v2271, %v2493
        %v2532 = vadd.f32 %v2272, %v2493
        %v2533 = vadd.f32 %v2273, %v2493
        %v2534 = vadd.f32 %v2274, %v2493
        %v2535 = vadd.f32 %v2275, %v2493
        %v2536 = vadd.f32 %v2276, %v2493
        %v2537 = vadd.f32 %v2277, %v2493
        %v2538 = vadd.f32 %v2278, %v2493
        %v2539 = vadd.f32 %v2279, %v2493
        %v2540 = vadd.f32 %v2280, %v2493
        %v2541 = vadd.f32 %v2281, %v2493
        %v2542 = vadd.f32 %v2282, %v2493
        %v2543 = vadd.f32 %v2283, %v2493
        %v2544 = vadd.f32 %v2284, %v2493
        %v2545 = vadd.f32 %v2285, %v2493
        %v2546 = vadd.f32 %v2286, %v2493
        %v2547 = vadd.f32 %v2287, %v2493
        %v2548 = vadd.f32 %v2288, %v2493
        %v2549 = vadd.f32 %v2289, %v2493
        %v2550 = vadd.f32 %v2290, %v2493
        %v2551 = vadd.f32 %v2291, %v2493
        %v2552 = vadd.f32 %v2292, %v2493
        %v2553 = vadd.f32 %v2293, %v2493
        %v2554 = vadd.f32 %v2294, %v2493
        %v2555 = vadd.f32 %v2295, %v2493
        %v2556 = vadd.f32 %v2296, %v2493
        %v2557 = vadd.f32 %v2297, %v2493
        %v2558 = vadd.f32 %v2298, %v2493
        %v2559 = vadd.f32 %v2299, %v2493
        %v2560 = vadd.f32 %v2300, %v2493
        %v2561 = vadd.f32 %v2301, %v2493
        %v2562 = vadd.f32 %v2302, %v2493
        %v2563 = vadd.f32 %v2303, %v2493
        %v2564 = vadd.f32 %v2304, %v2493
        %v2565 = vadd.f32 %v2305, %v2493
        %v2566 = vadd.f32 %v2306, %v2493
        %v2567 = vadd.f32 %v2307, %v2493
        %v2568 = vadd.f32 %v2308, %v2493
        %v2569 = vadd.f32 %v2309, %v2493
        %v2570 = vadd.f32 %v2310, %v2493
        %v2571 = vadd.f32 %v2311, %v2493
        %v2572 = vadd.f32 %v2312, %v2493
        %v2573 = vadd.f32 %v2313, %v2493
        %v2574 = vadd.f32 %v2314, %v2493
        %v2575 = vadd.f32 %v2315, %v2493
        %v2576 = vadd.f32 %v2316, %v2493
        %v2577 = vadd.f32 %v2317, %v2493
        %v2578 = vadd.f32 %v2318, %v2493
        %v2579 = vadd.f32 %v2319, %v2493
        %v2580 = vadd.f32 %v2320, %v2493
        %v2581 = vadd.f32 %v2321, %v2493
        %v2582 = vadd.f32 %v2322, %v2493
        %v2583 = vadd.f32 %v2323, %v2493
        %v2584 = vadd.f32 %v2324, %v2493
        %v2585 = vadd.f32 %v2325, %v2493
        %v2586 = vadd.f32 %v2326, %v2493
        %v2587 = vadd.f32 %v2327, %v2493
        %v2588 = vadd.f32 %v2328, %v2493
        %v2589 = vadd.f32 %v2329, %v2493
        %v2590 = vadd.f32 %v2330, %v2493
        %v2591 = vadd.f32 %v2331, %v2493
        %v2592 = vadd.f32 %v2332, %v2493
        %v2593 = vadd.f32 %v2333, %v2493
        %v2594 = vadd.f32 %v2334, %v2493
        %v2595 = vadd.f32 %v2335, %v2493
        %v2596 = vadd.f32 %v2336, %v2493
        %v2597 = vadd.f32 %v2337, %v2493
        %v2598 = vadd.f32 %v2338, %v2493
        %v2599 = vadd.f32 %v2339, %v2493
        %v2600 = vadd.f32 %v2340, %v2493
        %v2601 = vadd.f32 %v2341, %v2493
        %v2602 = vadd.f32 %v2342, %v2493
        %v2603 = vadd.f32 %v2343, %v2493
        %v2604 = vadd.f32 %v2344, %v2493
        %v2605 = vadd.f32 %v2345, %v2493
        %v2606 = vadd.f32 %v2346, %v2493
        %v2607 = vadd.f32 %v2347, %v2493
        %v2608 = vadd.f32 %v2348, %v2493
        %v2609 = vadd.f32 %v2349, %v2493
        %v2610 = vadd.f32 %v2350, %v2493
        %v2611 = vadd.f32 %v2351, %v2493
        %v2612 = vadd.f32 %v2352, %v2493
        %v2613 = vadd.f32 %v2353, %v2493
        %v2614 = vadd.f32 %v2354, %v2493
        %v2615 = vadd.f32 %v2355, %v2493
        %v2616 = vadd.f32 %v2356, %v2493
        %v2617 = vadd.f32 %v2357, %v2493
        %v2618 = vadd.f32 %v2358, %v2493
        %v2619 = vadd.f32 %v2359, %v2493
        %v2620 = vadd.f32 %v2360, %v2493
        %v2621 = vadd.f32 %v2361, %v2493
        %v2622 = vadd.f32 %v2362, %v2493
        %v2623 = vadd.f32 %v2363, %v2493
        %v2624 = vadd.f32 %v2364, %v2493
        %v2625 = vadd.f32 %v2365, %v2493
        %v2626 = vadd.f32 %v2366, %v2493
        %v2627 = vadd.f32 %v2367, %v2493
        %v2628 = vadd.f32 %v2368, %v2493
        %v2629 = vadd.f32 %v2369, %v2493
        %v2630 = vadd.f32 %v2370, %v2493
        %v2631 = vadd.f32 %v2371, %v2493
        %v2632 = vadd.f32 %v2372, %v2493
        %v2633 = vadd.f32 %v2373, %v2493
        %v2634 = vadd.f32 %v2374, %v2493
        %v2635 = vadd.f32 %v2375, %v2493
        %v2636 = vadd.f32 %v2376, %v2493
        %v2637 = vadd.f32 %v2377, %v2493
        %v2638 = vadd.f32 %v2378, %v2493
        %v2639 = vadd.f32 %v2379, %v2493
        %v2640 = vadd.f32 %v2380, %v2493
        %v2641 = vadd.f32 %v2381, %v2493
        %v2642 = vadd.f32 %v2382, %v2493
        %v2643 = vadd.f32 %v2383, %v2493
        %v2644 = vadd.f32 %v2384, %v2493
        %v2645 = vadd.f32 %v2385, %v2493
        %v2646 = vadd.f32 %v2386, %v2493
        %v2647 = vadd.f32 %v2387, %v2493
        %v2648 = vadd.f32 %v2388, %v2493
        %v2649 = vadd.f32 %v2389, %v2493
        %v2650 = vadd.f32 %v2390, %v2493
        %v2651 = vadd.f32 %v2391, %v2493
        %v2652 = vadd.f32 %v2392, %v2493
        %v2653 = vadd.f32 %v2393, %v2493
        %v2654 = vadd.f32 %v2394, %v2493
        %v2655 = vadd.f32 %v2395, %v2493
        %v2656 = vadd.f32 %v2396, %v2493
        %v2657 = vadd.f32 %v2397, %v2493
        %v2658 = vadd.f32 %v2398, %v2493
        %v2659 = vadd.f32 %v2399, %v2493
        %v2660 = vadd.f32 %v2400, %v2493
        %v2661 = vadd.f32 %v2401, %v2493
        %v2662 = vadd.f32 %v2402, %v2493
        %v2663 = vadd.f32 %v2403, %v2493
        %v2664 = vadd.f32 %v2404, %v2493
        %v2665 = vadd.f32 %v2405, %v2493
        %v2666 = vadd.f32 %v2406, %v2493
        %v2667 = vadd.f32 %v2407, %v2493
        %v2668 = vadd.f32 %v2408, %v2493
        %v2669 = vadd.f32 %v2409, %v2493
        %v2670 = vadd.f32 %v2410, %v2493
        %v2671 = vadd.f32 %v2411, %v2493
        %v2672 = vadd.f32 %v2412, %v2493
        %v2673 = vadd.f32 %v2413, %v2493
        %v2674 = vadd.f32 %v2414, %v2493
        %v2675 = vadd.f32 %v2415, %v2493
        %v2676 = vadd.f32 %v2416, %v2493
        %v2677 = vadd.f32 %v2417, %v2493
        %v2678 = vadd.f32 %v2418, %v2493
        %v2679 = vadd.f32 %v2419, %v2493
        %v2680 = vadd.f32 %v2420, %v2493
        %v2681 = vadd.f32 %v2421, %v2493
        %v2682 = vadd.f32 %v2422, %v2493
        %v2683 = vadd.f32 %v2423, %v2493
        %v2684 = vadd.f32 %v2424, %v2493
        %v2685 = vadd.f32 %v2425, %v2493
        %v2686 = vadd.f32 %v2426, %v2493
        %v2687 = vadd.f32 %v2427, %v2493
        %v2688 = vadd.f32 %v2428, %v2493
        %v2689 = vadd.f32 %v2429, %v2493
        %v2690 = vadd.f32 %v2430, %v2493
        %v2691 = vadd.f32 %v2431, %v2493
        %v2692 = vadd.f32 %v2432, %v2493
        %v2693 = vadd.f32 %v2433, %v2493
        %v2694 = vadd.f32 %v2434, %v2493
        %v2695 = vadd.f32 %v2435, %v2493
        %v2696 = vadd.f32 %v2436, %v2493
        %v2697 = vadd.f32 %v2437, %v2493
        %v2698 = vadd.f32 %v2438, %v2493
        %v2699 = vadd.f32 %v2439, %v2493
        %v2700 = vadd.f32 %v2440, %v2493
        %v2701 = vadd.f32 %v2441, %v2493
        %v2702 = vadd.f32 %v2442, %v2493
        %v2703 = vadd.f32 %v2443, %v2493
        %v2704 = vadd.f32 %v2444, %v2493
        %v2705 = vadd.f32 %v2445, %v2493
        %v2706 = vadd.f32 %v2446, %v2493
        %v2707 = vadd.f32 %v2447, %v2493
        %v2708 = vadd.f32 %v2448, %v2493
        %v2709 = vadd.f32 %v2449, %v2493
        %v2710 = vadd.f32 %v2450, %v2493
        %v2711 = vadd.f32 %v2451, %v2493
        %v2712 = vadd.f32 %v2452, %v2493
        %v2713 = vadd.f32 %v2453, %v2493
        %v2714 = vadd.f32 %v2454, %v2493
        %v2715 = vadd.f32 %v2455, %v2493
        %v2716 = vadd.f32 %v2456, %v2493
        %v2717 = vadd.f32 %v2457, %v2493
        %v2718 = vadd.f32 %v2458, %v2493
        %v2719 = vadd.f32 %v2459, %v2493
        %v2720 = vadd.f32 %v2460, %v2493
        %v2721 = vadd.f32 %v2461, %v2493
        %v2722 = vadd.f32 %v2462, %v2493
        %v2723 = vadd.f32 %v2463, %v2493
        %v2724 = vadd.f32 %v2464, %v2493
        %v2725 = vadd.f32 %v2465, %v2493
        %v2726 = vadd.f32 %v2466, %v2493
        %v2727 = vadd.f32 %v2467, %v2493
        %v2728 = vadd.f32 %v2468, %v2493
        %v2729 = vadd.f32 %v2469, %v2493
        %v2730 = vadd.f32 %v2470, %v2493
        %v2731 = vadd.f32 %v2471, %v2493
        %v2732 = vadd.f32 %v2472, %v2493
        %v2733 = vadd.f32 %v2473, %v2493
        %v2734 = vadd.f32 %v2474, %v2493
        %v2735 = vadd.f32 %v2475, %v2493
        %v2736 = vadd.f32 %v2476, %v2493
        %v2737 = vadd.f32 %v2477, %v2493
        %v2738 = vadd.f32 %v2478, %v2493
        %v2739 = vadd.f32 %v2479, %v2493
        %v2740 = vadd.f32 %v2480, %v2493
        %v2741 = vadd.f32 %v2481, %v2493
        %v2742 = vadd.f32 %v2482, %v2493
        %v2743 = vadd.f32 %v2483, %v2493
        %v2744 = vadd.f32 %v2484, %v2493
        %v2745 = vadd.f32 %v2485, %v2493
        %v2746 = vadd.f32 %v2486, %v2493
        %v2747 = vadd.f32 %v2487, %v2493
        %v2748 = vadd.f32 %v2488, %v2493
        %v2749 = vadd.f32 %v2489, %v2493
        %v2750 = vadd.f32 %v2490, %v2493
        %v2751 = vmax.f32 %v2495, 0.0
        %v2752 = vmax.f32 %v2496, 0.0
        %v2753 = vmax.f32 %v2497, 0.0
        %v2754 = vmax.f32 %v2498, 0.0
        %v2755 = vmax.f32 %v2499, 0.0
        %v2756 = vmax.f32 %v2500, 0.0
        %v2757 = vmax.f32 %v2501, 0.0
        %v2758 = vmax.f32 %v2502, 0.0
        %v2759 = vmax.f32 %v2503, 0.0
        %v2760 = vmax.f32 %v2504, 0.0
        %v2761 = vmax.f32 %v2505, 0.0
        %v2762 = vmax.f32 %v2506, 0.0
        %v2763 = vmax.f32 %v2507, 0.0
        %v2764 = vmax.f32 %v2508, 0.0
        %v2765 = vmax.f32 %v2509, 0.0
        %v2766 = vmax.f32 %v2510, 0.0
        %v2767 = vmax.f32 %v2511, 0.0
        %v2768 = vmax.f32 %v2512, 0.0
        %v2769 = vmax.f32 %v2513, 0.0
        %v2770 = vmax.f32 %v2514, 0.0
        %v2771 = vmax.f32 %v2515, 0.0
        %v2772 = vmax.f32 %v2516, 0.0
        %v2773 = vmax.f32 %v2517, 0.0
        %v2774 = vmax.f32 %v2518, 0.0
        %v2775 = vmax.f32 %v2519, 0.0
        %v2776 = vmax.f32 %v2520, 0.0
        %v2777 = vmax.f32 %v2521, 0.0
        %v2778 = vmax.f32 %v2522, 0.0
        %v2779 = vmax.f32 %v2523, 0.0
        %v2780 = vmax.f32 %v2524, 0.0
        %v2781 = vmax.f32 %v2525, 0.0
        %v2782 = vmax.f32 %v2526, 0.0
        %v2783 = vmax.f32 %v2527, 0.0
        %v2784 = vmax.f32 %v2528, 0.0
        %v2785 = vmax.f32 %v2529, 0.0
        %v2786 = vmax.f32 %v2530, 0.0
        %v2787 = vmax.f32 %v2531, 0.0
        %v2788 = vmax.f32 %v2532, 0.0
        %v2789 = vmax.f32 %v2533, 0.0
        %v2790 = vmax.f32 %v2534, 0.0
        %v2791 = vmax.f32 %v2535, 0.0
        %v2792 = vmax.f32 %v2536, 0.0
        %v2793 = vmax.f32 %v2537, 0.0
        %v2794 = vmax.f32 %v2538, 0.0
        %v2795 = vmax.f32 %v2539, 0.0
        %v2796 = vmax.f32 %v2540, 0.0
        %v2797 = vmax.f32 %v2541, 0.0
        %v2798 = vmax.f32 %v2542, 0.0
        %v2799 = vmax.f32 %v2543, 0.0
        %v2800 = vmax.f32 %v2544, 0.0
        %v2801 = vmax.f32 %v2545, 0.0
        %v2802 = vmax.f32 %v2546, 0.0
        %v2803 = vmax.f32 %v2547, 0.0
        %v2804 = vmax.f32 %v2548, 0.0
        %v2805 = vmax.f32 %v2549, 0.0
        %v2806 = vmax.f32 %v2550, 0.0
        %v2807 = vmax.f32 %v2551, 0.0
        %v2808 = vmax.f32 %v2552, 0.0
        %v2809 = vmax.f32 %v2553, 0.0
        %v2810 = vmax.f32 %v2554, 0.0
        %v2811 = vmax.f32 %v2555, 0.0
        %v2812 = vmax.f32 %v2556, 0.0
        %v2813 = vmax.f32 %v2557, 0.0
        %v2814 = vmax.f32 %v2558, 0.0
        %v2815 = vmax.f32 %v2559, 0.0
        %v2816 = vmax.f32 %v2560, 0.0
        %v2817 = vmax.f32 %v2561, 0.0
        %v2818 = vmax.f32 %v2562, 0.0
        %v2819 = vmax.f32 %v2563, 0.0
        %v2820 = vmax.f32 %v2564, 0.0
        %v2821 = vmax.f32 %v2565, 0.0
        %v2822 = vmax.f32 %v2566, 0.0
        %v2823 = vmax.f32 %v2567, 0.0
        %v2824 = vmax.f32 %v2568, 0.0
        %v2825 = vmax.f32 %v2569, 0.0
        %v2826 = vmax.f32 %v2570, 0.0
        %v2827 = vmax.f32 %v2571, 0.0
        %v2828 = vmax.f32 %v2572, 0.0
        %v2829 = vmax.f32 %v2573, 0.0
        %v2830 = vmax.f32 %v2574, 0.0
        %v2831 = vmax.f32 %v2575, 0.0
        %v2832 = vmax.f32 %v2576, 0.0
        %v2833 = vmax.f32 %v2577, 0.0
        %v2834 = vmax.f32 %v2578, 0.0
        %v2835 = vmax.f32 %v2579, 0.0
        %v2836 = vmax.f32 %v2580, 0.0
        %v2837 = vmax.f32 %v2581, 0.0
        %v2838 = vmax.f32 %v2582, 0.0
        %v2839 = vmax.f32 %v2583, 0.0
        %v2840 = vmax.f32 %v2584, 0.0
        %v2841 = vmax.f32 %v2585, 0.0
        %v2842 = vmax.f32 %v2586, 0.0
        %v2843 = vmax.f32 %v2587, 0.0
        %v2844 = vmax.f32 %v2588, 0.0
        %v2845 = vmax.f32 %v2589, 0.0
        %v2846 = vmax.f32 %v2590, 0.0
        %v2847 = vmax.f32 %v2591, 0.0
        %v2848 = vmax.f32 %v2592, 0.0
        %v2849 = vmax.f32 %v2593, 0.0
        %v2850 = vmax.f32 %v2594, 0.0
        %v2851 = vmax.f32 %v2595, 0.0
        %v2852 = vmax.f32 %v2596, 0.0
        %v2853 = vmax.f32 %v2597, 0.0
        %v2854 = vmax.f32 %v2598, 0.0
        %v2855 = vmax.f32 %v2599, 0.0
        %v2856 = vmax.f32 %v2600, 0.0
        %v2857 = vmax.f32 %v2601, 0.0
        %v2858 = vmax.f32 %v2602, 0.0
        %v2859 = vmax.f32 %v2603, 0.0
        %v2860 = vmax.f32 %v2604, 0.0
        %v2861 = vmax.f32 %v2605, 0.0
        %v2862 = vmax.f32 %v2606, 0.0
        %v2863 = vmax.f32 %v2607, 0.0
        %v2864 = vmax.f32 %v2608, 0.0
        %v2865 = vmax.f32 %v2609, 0.0
        %v2866 = vmax.f32 %v2610, 0.0
        %v2867 = vmax.f32 %v2611, 0.0
        %v2868 = vmax.f32 %v2612, 0.0
        %v2869 = vmax.f32 %v2613, 0.0
        %v2870 = vmax.f32 %v2614, 0.0
        %v2871 = vmax.f32 %v2615, 0.0
        %v2872 = vmax.f32 %v2616, 0.0
        %v2873 = vmax.f32 %v2617, 0.0
        %v2874 = vmax.f32 %v2618, 0.0
        %v2875 = vmax.f32 %v2619, 0.0
        %v2876 = vmax.f32 %v2620, 0.0
        %v2877 = vmax.f32 %v2621, 0.0
        %v2878 = vmax.f32 %v2622, 0.0
        %v2879 = vmax.f32 %v2623, 0.0
        %v2880 = vmax.f32 %v2624, 0.0
        %v2881 = vmax.f32 %v2625, 0.0
        %v2882 = vmax.f32 %v2626, 0.0
        %v2883 = vmax.f32 %v2627, 0.0
        %v2884 = vmax.f32 %v2628, 0.0
        %v2885 = vmax.f32 %v2629, 0.0
        %v2886 = vmax.f32 %v2630, 0.0
        %v2887 = vmax.f32 %v2631, 0.0
        %v2888 = vmax.f32 %v2632, 0.0
        %v2889 = vmax.f32 %v2633, 0.0
        %v2890 = vmax.f32 %v2634, 0.0
        %v2891 = vmax.f32 %v2635, 0.0
        %v2892 = vmax.f32 %v2636, 0.0
        %v2893 = vmax.f32 %v2637, 0.0
        %v2894 = vmax.f32 %v2638, 0.0
        %v2895 = vmax.f32 %v2639, 0.0
        %v2896 = vmax.f32 %v2640, 0.0
        %v2897 = vmax.f32 %v2641, 0.0
        %v2898 = vmax.f32 %v2642, 0.0
        %v2899 = vmax.f32 %v2643, 0.0
        %v2900 = vmax.f32 %v2644, 0.0
        %v2901 = vmax.f32 %v2645, 0.0
        %v2902 = vmax.f32 %v2646, 0.0
        %v2903 = vmax.f32 %v2647, 0.0
        %v2904 = vmax.f32 %v2648, 0.0
        %v2905 = vmax.f32 %v2649, 0.0
        %v2906 = vmax.f32 %v2650, 0.0
        %v2907 = vmax.f32 %v2651, 0.0
        %v2908 = vmax.f32 %v2652, 0.0
        %v2909 = vmax.f32 %v2653, 0.0
        %v2910 = vmax.f32 %v2654, 0.0
        %v2911 = vmax.f32 %v2655, 0.0
        %v2912 = vmax.f32 %v2656, 0.0
        %v2913 = vmax.f32 %v2657, 0.0
        %v2914 = vmax.f32 %v2658, 0.0
        %v2915 = vmax.f32 %v2659, 0.0
        %v2916 = vmax.f32 %v2660, 0.0
        %v2917 = vmax.f32 %v2661, 0.0
        %v2918 = vmax.f32 %v2662, 0.0
        %v2919 = vmax.f32 %v2663, 0.0
        %v2920 = vmax.f32 %v2664, 0.0
        %v2921 = vmax.f32 %v2665, 0.0
        %v2922 = vmax.f32 %v2666, 0.0
        %v2923 = vmax.f32 %v2667, 0.0
        %v2924 = vmax.f32 %v2668, 0.0
        %v2925 = vmax.f32 %v2669, 0.0
        %v2926 = vmax.f32 %v2670, 0.0
        %v2927 = vmax.f32 %v2671, 0.0
        %v2928 = vmax.f32 %v2672, 0.0
        %v2929 = vmax.f32 %v2673, 0.0
        %v2930 = vmax.f32 %v2674, 0.0
        %v2931 = vmax.f32 %v2675, 0.0
        %v2932 = vmax.f32 %v2676, 0.0
        %v2933 = vmax.f32 %v2677, 0.0
        %v2934 = vmax.f32 %v2678, 0.0
        %v2935 = vmax.f32 %v2679, 0.0
        %v2936 = vmax.f32 %v2680, 0.0
        %v2937 = vmax.f32 %v2681, 0.0
        %v2938 = vmax.f32 %v2682, 0.0
        %v2939 = vmax.f32 %v2683, 0.0
        %v2940 = vmax.f32 %v2684, 0.0
        %v2941 = vmax.f32 %v2685, 0.0
        %v2942 = vmax.f32 %v2686, 0.0
        %v2943 = vmax.f32 %v2687, 0.0
        %v2944 = vmax.f32 %v2688, 0.0
        %v2945 = vmax.f32 %v2689, 0.0
        %v2946 = vmax.f32 %v2690, 0.0
        %v2947 = vmax.f32 %v2691, 0.0
        %v2948 = vmax.f32 %v2692, 0.0
        %v2949 = vmax.f32 %v2693, 0.0
        %v2950 = vmax.f32 %v2694, 0.0
        %v2951 = vmax.f32 %v2695, 0.0
        %v2952 = vmax.f32 %v2696, 0.0
        %v2953 = vmax.f32 %v2697, 0.0
        %v2954 = vmax.f32 %v2698, 0.0
        %v2955 = vmax.f32 %v2699, 0.0
        %v2956 = vmax.f32 %v2700, 0.0
        %v2957 = vmax.f32 %v2701, 0.0
        %v2958 = vmax.f32 %v2702, 0.0
        %v2959 = vmax.f32 %v2703, 0.0
        %v2960 = vmax.f32 %v2704, 0.0
        %v2961 = vmax.f32 %v2705, 0.0
        %v2962 = vmax.f32 %v2706, 0.0
        %v2963 = vmax.f32 %v2707, 0.0
        %v2964 = vmax.f32 %v2708, 0.0
        %v2965 = vmax.f32 %v2709, 0.0
        %v2966 = vmax.f32 %v2710, 0.0
        %v2967 = vmax.f32 %v2711, 0.0
        %v2968 = vmax.f32 %v2712, 0.0
        %v2969 = vmax.f32 %v2713, 0.0
        %v2970 = vmax.f32 %v2714, 0.0
        %v2971 = vmax.f32 %v2715, 0.0
        %v2972 = vmax.f32 %v2716, 0.0
        %v2973 = vmax.f32 %v2717, 0.0
        %v2974 = vmax.f32 %v2718, 0.0
        %v2975 = vmax.f32 %v2719, 0.0
        %v2976 = vmax.f32 %v2720, 0.0
        %v2977 = vmax.f32 %v2721, 0.0
        %v2978 = vmax.f32 %v2722, 0.0
        %v2979 = vmax.f32 %v2723, 0.0
        %v2980 = vmax.f32 %v2724, 0.0
        %v2981 = vmax.f32 %v2725, 0.0
        %v2982 = vmax.f32 %v2726, 0.0
        %v2983 = vmax.f32 %v2727, 0.0
        %v2984 = vmax.f32 %v2728, 0.0
        %v2985 = vmax.f32 %v2729, 0.0
        %v2986 = vmax.f32 %v2730, 0.0
        %v2987 = vmax.f32 %v2731, 0.0
        %v2988 = vmax.f32 %v2732, 0.0
        %v2989 = vmax.f32 %v2733, 0.0
        %v2990 = vmax.f32 %v2734, 0.0
        %v2991 = vmax.f32 %v2735, 0.0
        %v2992 = vmax.f32 %v2736, 0.0
        %v2993 = vmax.f32 %v2737, 0.0
        %v2994 = vmax.f32 %v2738, 0.0
        %v2995 = vmax.f32 %v2739, 0.0
        %v2996 = vmax.f32 %v2740, 0.0
        %v2997 = vmax.f32 %v2741, 0.0
        %v2998 = vmax.f32 %v2742, 0.0
        %v2999 = vmax.f32 %v2743, 0.0
        %v3000 = vmax.f32 %v2744, 0.0
        %v3001 = vmax.f32 %v2745, 0.0
        %v3002 = vmax.f32 %v2746, 0.0
        %v3003 = vmax.f32 %v2747, 0.0
        %v3004 = vmax.f32 %v2748, 0.0
        %v3005 = vmax.f32 %v2749, 0.0
        %v3006 = vmax.f32 %v2750, 0.0
        %v3007 = vpack.c.bf16 %v2751, %v2751
        %v3008 = vpack.c.bf16 %v2752, %v2752
        %v3009 = vpack.c.bf16 %v2753, %v2753
        %v3010 = vpack.c.bf16 %v2754, %v2754
        %v3011 = vpack.c.bf16 %v2755, %v2755
        %v3012 = vpack.c.bf16 %v2756, %v2756
        %v3013 = vpack.c.bf16 %v2757, %v2757
        %v3014 = vpack.c.bf16 %v2758, %v2758
        %v3015 = vpack.c.bf16 %v2759, %v2759
        %v3016 = vpack.c.bf16 %v2760, %v2760
        %v3017 = vpack.c.bf16 %v2761, %v2761
        %v3018 = vpack.c.bf16 %v2762, %v2762
        %v3019 = vpack.c.bf16 %v2763, %v2763
        %v3020 = vpack.c.bf16 %v2764, %v2764
        %v3021 = vpack.c.bf16 %v2765, %v2765
        %v3022 = vpack.c.bf16 %v2766, %v2766
        %v3023 = vpack.c.bf16 %v2767, %v2767
        %v3024 = vpack.c.bf16 %v2768, %v2768
        %v3025 = vpack.c.bf16 %v2769, %v2769
        %v3026 = vpack.c.bf16 %v2770, %v2770
        %v3027 = vpack.c.bf16 %v2771, %v2771
        %v3028 = vpack.c.bf16 %v2772, %v2772
        %v3029 = vpack.c.bf16 %v2773, %v2773
        %v3030 = vpack.c.bf16 %v2774, %v2774
        %v3031 = vpack.c.bf16 %v2775, %v2775
        %v3032 = vpack.c.bf16 %v2776, %v2776
        %v3033 = vpack.c.bf16 %v2777, %v2777
        %v3034 = vpack.c.bf16 %v2778, %v2778
        %v3035 = vpack.c.bf16 %v2779, %v2779
        %v3036 = vpack.c.bf16 %v2780, %v2780
        %v3037 = vpack.c.bf16 %v2781, %v2781
        %v3038 = vpack.c.bf16 %v2782, %v2782
        %v3039 = vpack.c.bf16 %v2783, %v2783
        %v3040 = vpack.c.bf16 %v2784, %v2784
        %v3041 = vpack.c.bf16 %v2785, %v2785
        %v3042 = vpack.c.bf16 %v2786, %v2786
        %v3043 = vpack.c.bf16 %v2787, %v2787
        %v3044 = vpack.c.bf16 %v2788, %v2788
        %v3045 = vpack.c.bf16 %v2789, %v2789
        %v3046 = vpack.c.bf16 %v2790, %v2790
        %v3047 = vpack.c.bf16 %v2791, %v2791
        %v3048 = vpack.c.bf16 %v2792, %v2792
        %v3049 = vpack.c.bf16 %v2793, %v2793
        %v3050 = vpack.c.bf16 %v2794, %v2794
        %v3051 = vpack.c.bf16 %v2795, %v2795
        %v3052 = vpack.c.bf16 %v2796, %v2796
        %v3053 = vpack.c.bf16 %v2797, %v2797
        %v3054 = vpack.c.bf16 %v2798, %v2798
        %v3055 = vpack.c.bf16 %v2799, %v2799
        %v3056 = vpack.c.bf16 %v2800, %v2800
        %v3057 = vpack.c.bf16 %v2801, %v2801
        %v3058 = vpack.c.bf16 %v2802, %v2802
        %v3059 = vpack.c.bf16 %v2803, %v2803
        %v3060 = vpack.c.bf16 %v2804, %v2804
        %v3061 = vpack.c.bf16 %v2805, %v2805
        %v3062 = vpack.c.bf16 %v2806, %v2806
        %v3063 = vpack.c.bf16 %v2807, %v2807
        %v3064 = vpack.c.bf16 %v2808, %v2808
        %v3065 = vpack.c.bf16 %v2809, %v2809
        %v3066 = vpack.c.bf16 %v2810, %v2810
        %v3067 = vpack.c.bf16 %v2811, %v2811
        %v3068 = vpack.c.bf16 %v2812, %v2812
        %v3069 = vpack.c.bf16 %v2813, %v2813
        %v3070 = vpack.c.bf16 %v2814, %v2814
        %v3071 = vpack.c.bf16 %v2815, %v2815
        %v3072 = vpack.c.bf16 %v2816, %v2816
        %v3073 = vpack.c.bf16 %v2817, %v2817
        %v3074 = vpack.c.bf16 %v2818, %v2818
        %v3075 = vpack.c.bf16 %v2819, %v2819
        %v3076 = vpack.c.bf16 %v2820, %v2820
        %v3077 = vpack.c.bf16 %v2821, %v2821
        %v3078 = vpack.c.bf16 %v2822, %v2822
        %v3079 = vpack.c.bf16 %v2823, %v2823
        %v3080 = vpack.c.bf16 %v2824, %v2824
        %v3081 = vpack.c.bf16 %v2825, %v2825
        %v3082 = vpack.c.bf16 %v2826, %v2826
        %v3083 = vpack.c.bf16 %v2827, %v2827
        %v3084 = vpack.c.bf16 %v2828, %v2828
        %v3085 = vpack.c.bf16 %v2829, %v2829
        %v3086 = vpack.c.bf16 %v2830, %v2830
        %v3087 = vpack.c.bf16 %v2831, %v2831
        %v3088 = vpack.c.bf16 %v2832, %v2832
        %v3089 = vpack.c.bf16 %v2833, %v2833
        %v3090 = vpack.c.bf16 %v2834, %v2834
        %v3091 = vpack.c.bf16 %v2835, %v2835
        %v3092 = vpack.c.bf16 %v2836, %v2836
        %v3093 = vpack.c.bf16 %v2837, %v2837
        %v3094 = vpack.c.bf16 %v2838, %v2838
        %v3095 = vpack.c.bf16 %v2839, %v2839
        %v3096 = vpack.c.bf16 %v2840, %v2840
        %v3097 = vpack.c.bf16 %v2841, %v2841
        %v3098 = vpack.c.bf16 %v2842, %v2842
        %v3099 = vpack.c.bf16 %v2843, %v2843
        %v3100 = vpack.c.bf16 %v2844, %v2844
        %v3101 = vpack.c.bf16 %v2845, %v2845
        %v3102 = vpack.c.bf16 %v2846, %v2846
        %v3103 = vpack.c.bf16 %v2847, %v2847
        %v3104 = vpack.c.bf16 %v2848, %v2848
        %v3105 = vpack.c.bf16 %v2849, %v2849
        %v3106 = vpack.c.bf16 %v2850, %v2850
        %v3107 = vpack.c.bf16 %v2851, %v2851
        %v3108 = vpack.c.bf16 %v2852, %v2852
        %v3109 = vpack.c.bf16 %v2853, %v2853
        %v3110 = vpack.c.bf16 %v2854, %v2854
        %v3111 = vpack.c.bf16 %v2855, %v2855
        %v3112 = vpack.c.bf16 %v2856, %v2856
        %v3113 = vpack.c.bf16 %v2857, %v2857
        %v3114 = vpack.c.bf16 %v2858, %v2858
        %v3115 = vpack.c.bf16 %v2859, %v2859
        %v3116 = vpack.c.bf16 %v2860, %v2860
        %v3117 = vpack.c.bf16 %v2861, %v2861
        %v3118 = vpack.c.bf16 %v2862, %v2862
        %v3119 = vpack.c.bf16 %v2863, %v2863
        %v3120 = vpack.c.bf16 %v2864, %v2864
        %v3121 = vpack.c.bf16 %v2865, %v2865
        %v3122 = vpack.c.bf16 %v2866, %v2866
        %v3123 = vpack.c.bf16 %v2867, %v2867
        %v3124 = vpack.c.bf16 %v2868, %v2868
        %v3125 = vpack.c.bf16 %v2869, %v2869
        %v3126 = vpack.c.bf16 %v2870, %v2870
        %v3127 = vpack.c.bf16 %v2871, %v2871
        %v3128 = vpack.c.bf16 %v2872, %v2872
        %v3129 = vpack.c.bf16 %v2873, %v2873
        %v3130 = vpack.c.bf16 %v2874, %v2874
        %v3131 = vpack.c.bf16 %v2875, %v2875
        %v3132 = vpack.c.bf16 %v2876, %v2876
        %v3133 = vpack.c.bf16 %v2877, %v2877
        %v3134 = vpack.c.bf16 %v2878, %v2878
        %v3135 = vpack.c.bf16 %v2879, %v2879
        %v3136 = vpack.c.bf16 %v2880, %v2880
        %v3137 = vpack.c.bf16 %v2881, %v2881
        %v3138 = vpack.c.bf16 %v2882, %v2882
        %v3139 = vpack.c.bf16 %v2883, %v2883
        %v3140 = vpack.c.bf16 %v2884, %v2884
        %v3141 = vpack.c.bf16 %v2885, %v2885
        %v3142 = vpack.c.bf16 %v2886, %v2886
        %v3143 = vpack.c.bf16 %v2887, %v2887
        %v3144 = vpack.c.bf16 %v2888, %v2888
        %v3145 = vpack.c.bf16 %v2889, %v2889
        %v3146 = vpack.c.bf16 %v2890, %v2890
        %v3147 = vpack.c.bf16 %v2891, %v2891
        %v3148 = vpack.c.bf16 %v2892, %v2892
        %v3149 = vpack.c.bf16 %v2893, %v2893
        %v3150 = vpack.c.bf16 %v2894, %v2894
        %v3151 = vpack.c.bf16 %v2895, %v2895
        %v3152 = vpack.c.bf16 %v2896, %v2896
        %v3153 = vpack.c.bf16 %v2897, %v2897
        %v3154 = vpack.c.bf16 %v2898, %v2898
        %v3155 = vpack.c.bf16 %v2899, %v2899
        %v3156 = vpack.c.bf16 %v2900, %v2900
        %v3157 = vpack.c.bf16 %v2901, %v2901
        %v3158 = vpack.c.bf16 %v2902, %v2902
        %v3159 = vpack.c.bf16 %v2903, %v2903
        %v3160 = vpack.c.bf16 %v2904, %v2904
        %v3161 = vpack.c.bf16 %v2905, %v2905
        %v3162 = vpack.c.bf16 %v2906, %v2906
        %v3163 = vpack.c.bf16 %v2907, %v2907
        %v3164 = vpack.c.bf16 %v2908, %v2908
        %v3165 = vpack.c.bf16 %v2909, %v2909
        %v3166 = vpack.c.bf16 %v2910, %v2910
        %v3167 = vpack.c.bf16 %v2911, %v2911
        %v3168 = vpack.c.bf16 %v2912, %v2912
        %v3169 = vpack.c.bf16 %v2913, %v2913
        %v3170 = vpack.c.bf16 %v2914, %v2914
        %v3171 = vpack.c.bf16 %v2915, %v2915
        %v3172 = vpack.c.bf16 %v2916, %v2916
        %v3173 = vpack.c.bf16 %v2917, %v2917
        %v3174 = vpack.c.bf16 %v2918, %v2918
        %v3175 = vpack.c.bf16 %v2919, %v2919
        %v3176 = vpack.c.bf16 %v2920, %v2920
        %v3177 = vpack.c.bf16 %v2921, %v2921
        %v3178 = vpack.c.bf16 %v2922, %v2922
        %v3179 = vpack.c.bf16 %v2923, %v2923
        %v3180 = vpack.c.bf16 %v2924, %v2924
        %v3181 = vpack.c.bf16 %v2925, %v2925
        %v3182 = vpack.c.bf16 %v2926, %v2926
        %v3183 = vpack.c.bf16 %v2927, %v2927
        %v3184 = vpack.c.bf16 %v2928, %v2928
        %v3185 = vpack.c.bf16 %v2929, %v2929
        %v3186 = vpack.c.bf16 %v2930, %v2930
        %v3187 = vpack.c.bf16 %v2931, %v2931
        %v3188 = vpack.c.bf16 %v2932, %v2932
        %v3189 = vpack.c.bf16 %v2933, %v2933
        %v3190 = vpack.c.bf16 %v2934, %v2934
        %v3191 = vpack.c.bf16 %v2935, %v2935
        %v3192 = vpack.c.bf16 %v2936, %v2936
        %v3193 = vpack.c.bf16 %v2937, %v2937
        %v3194 = vpack.c.bf16 %v2938, %v2938
        %v3195 = vpack.c.bf16 %v2939, %v2939
        %v3196 = vpack.c.bf16 %v2940, %v2940
        %v3197 = vpack.c.bf16 %v2941, %v2941
        %v3198 = vpack.c.bf16 %v2942, %v2942
        %v3199 = vpack.c.bf16 %v2943, %v2943
        %v3200 = vpack.c.bf16 %v2944, %v2944
        %v3201 = vpack.c.bf16 %v2945, %v2945
        %v3202 = vpack.c.bf16 %v2946, %v2946
        %v3203 = vpack.c.bf16 %v2947, %v2947
        %v3204 = vpack.c.bf16 %v2948, %v2948
        %v3205 = vpack.c.bf16 %v2949, %v2949
        %v3206 = vpack.c.bf16 %v2950, %v2950
        %v3207 = vpack.c.bf16 %v2951, %v2951
        %v3208 = vpack.c.bf16 %v2952, %v2952
        %v3209 = vpack.c.bf16 %v2953, %v2953
        %v3210 = vpack.c.bf16 %v2954, %v2954
        %v3211 = vpack.c.bf16 %v2955, %v2955
        %v3212 = vpack.c.bf16 %v2956, %v2956
        %v3213 = vpack.c.bf16 %v2957, %v2957
        %v3214 = vpack.c.bf16 %v2958, %v2958
        %v3215 = vpack.c.bf16 %v2959, %v2959
        %v3216 = vpack.c.bf16 %v2960, %v2960
        %v3217 = vpack.c.bf16 %v2961, %v2961
        %v3218 = vpack.c.bf16 %v2962, %v2962
        %v3219 = vpack.c.bf16 %v2963, %v2963
        %v3220 = vpack.c.bf16 %v2964, %v2964
        %v3221 = vpack.c.bf16 %v2965, %v2965
        %v3222 = vpack.c.bf16 %v2966, %v2966
        %v3223 = vpack.c.bf16 %v2967, %v2967
        %v3224 = vpack.c.bf16 %v2968, %v2968
        %v3225 = vpack.c.bf16 %v2969, %v2969
        %v3226 = vpack.c.bf16 %v2970, %v2970
        %v3227 = vpack.c.bf16 %v2971, %v2971
        %v3228 = vpack.c.bf16 %v2972, %v2972
        %v3229 = vpack.c.bf16 %v2973, %v2973
        %v3230 = vpack.c.bf16 %v2974, %v2974
        %v3231 = vpack.c.bf16 %v2975, %v2975
        %v3232 = vpack.c.bf16 %v2976, %v2976
        %v3233 = vpack.c.bf16 %v2977, %v2977
        %v3234 = vpack.c.bf16 %v2978, %v2978
        %v3235 = vpack.c.bf16 %v2979, %v2979
        %v3236 = vpack.c.bf16 %v2980, %v2980
        %v3237 = vpack.c.bf16 %v2981, %v2981
        %v3238 = vpack.c.bf16 %v2982, %v2982
        %v3239 = vpack.c.bf16 %v2983, %v2983
        %v3240 = vpack.c.bf16 %v2984, %v2984
        %v3241 = vpack.c.bf16 %v2985, %v2985
        %v3242 = vpack.c.bf16 %v2986, %v2986
        %v3243 = vpack.c.bf16 %v2987, %v2987
        %v3244 = vpack.c.bf16 %v2988, %v2988
        %v3245 = vpack.c.bf16 %v2989, %v2989
        %v3246 = vpack.c.bf16 %v2990, %v2990
        %v3247 = vpack.c.bf16 %v2991, %v2991
        %v3248 = vpack.c.bf16 %v2992, %v2992
        %v3249 = vpack.c.bf16 %v2993, %v2993
        %v3250 = vpack.c.bf16 %v2994, %v2994
        %v3251 = vpack.c.bf16 %v2995, %v2995
        %v3252 = vpack.c.bf16 %v2996, %v2996
        %v3253 = vpack.c.bf16 %v2997, %v2997
        %v3254 = vpack.c.bf16 %v2998, %v2998
        %v3255 = vpack.c.bf16 %v2999, %v2999
        %v3256 = vpack.c.bf16 %v3000, %v3000
        %v3257 = vpack.c.bf16 %v3001, %v3001
        %v3258 = vpack.c.bf16 %v3002, %v3002
        %v3259 = vpack.c.bf16 %v3003, %v3003
        %v3260 = vpack.c.bf16 %v3004, %v3004
        %v3261 = vpack.c.bf16 %v3005, %v3005
        %v3262 = vpack.c.bf16 %v3006, %v3006
        %vm3263 = vcmask 257024
        %3264 = vst.msk [vmem:[%s248] sm:$0xf] %vm3263, %v3007
        %3265 = vst.msk [vmem:[%s248 + $0x4] sm:$0xf] %vm3263, %v3008
        %3266 = vst.msk [vmem:[%s248 + $0x8] sm:$0xf] %vm3263, %v3009
        %3267 = vst.msk [vmem:[%s248 + $0xc] sm:$0xf] %vm3263, %v3010
        %3268 = vst.msk [vmem:[%s248 + $0x10] sm:$0xf] %vm3263, %v3011
        %3269 = vst.msk [vmem:[%s248 + $0x14] sm:$0xf] %vm3263, %v3012
        %3270 = vst.msk [vmem:[%s248 + $0x18] sm:$0xf] %vm3263, %v3013
        %3271 = vst.msk [vmem:[%s248 + $0x1c] sm:$0xf] %vm3263, %v3014
        %3272 = vst.msk [vmem:[%s248 + $0x20] sm:$0xf] %vm3263, %v3015
        %3273 = vst.msk [vmem:[%s248 + $0x24] sm:$0xf] %vm3263, %v3016
        %3274 = vst.msk [vmem:[%s248 + $0x28] sm:$0xf] %vm3263, %v3017
        %3275 = vst.msk [vmem:[%s248 + $0x2c] sm:$0xf] %vm3263, %v3018
        %3276 = vst.msk [vmem:[%s248 + $0x30] sm:$0xf] %vm3263, %v3019
        %3277 = vst.msk [vmem:[%s248 + $0x34] sm:$0xf] %vm3263, %v3020
        %3278 = vst.msk [vmem:[%s248 + $0x38] sm:$0xf] %vm3263, %v3021
        %3279 = vst.msk [vmem:[%s248 + $0x3c] sm:$0xf] %vm3263, %v3022
        %3280 = vst.msk [vmem:[%s248 + $0x40] sm:$0xf] %vm3263, %v3023
        %3281 = vst.msk [vmem:[%s248 + $0x44] sm:$0xf] %vm3263, %v3024
        %3282 = vst.msk [vmem:[%s248 + $0x48] sm:$0xf] %vm3263, %v3025
        %3283 = vst.msk [vmem:[%s248 + $0x4c] sm:$0xf] %vm3263, %v3026
        %3284 = vst.msk [vmem:[%s248 + $0x50] sm:$0xf] %vm3263, %v3027
        %3285 = vst.msk [vmem:[%s248 + $0x54] sm:$0xf] %vm3263, %v3028
        %3286 = vst.msk [vmem:[%s248 + $0x58] sm:$0xf] %vm3263, %v3029
        %3287 = vst.msk [vmem:[%s248 + $0x5c] sm:$0xf] %vm3263, %v3030
        %3288 = vst.msk [vmem:[%s248 + $0x60] sm:$0xf] %vm3263, %v3031
        %3289 = vst.msk [vmem:[%s248 + $0x64] sm:$0xf] %vm3263, %v3032
        %3290 = vst.msk [vmem:[%s248 + $0x68] sm:$0xf] %vm3263, %v3033
        %3291 = vst.msk [vmem:[%s248 + $0x6c] sm:$0xf] %vm3263, %v3034
        %3292 = vst.msk [vmem:[%s248 + $0x70] sm:$0xf] %vm3263, %v3035
        %3293 = vst.msk [vmem:[%s248 + $0x74] sm:$0xf] %vm3263, %v3036
        %3294 = vst.msk [vmem:[%s248 + $0x78] sm:$0xf] %vm3263, %v3037
        %3295 = vst.msk [vmem:[%s248 + $0x7c] sm:$0xf] %vm3263, %v3038
        %3296 = vst.msk [vmem:[%s248 + $0x80] sm:$0xf] %vm3263, %v3039
        %3297 = vst.msk [vmem:[%s248 + $0x84] sm:$0xf] %vm3263, %v3040
        %3298 = vst.msk [vmem:[%s248 + $0x88] sm:$0xf] %vm3263, %v3041
        %3299 = vst.msk [vmem:[%s248 + $0x8c] sm:$0xf] %vm3263, %v3042
        %3300 = vst.msk [vmem:[%s248 + $0x90] sm:$0xf] %vm3263, %v3043
        %3301 = vst.msk [vmem:[%s248 + $0x94] sm:$0xf] %vm3263, %v3044
        %3302 = vst.msk [vmem:[%s248 + $0x98] sm:$0xf] %vm3263, %v3045
        %3303 = vst.msk [vmem:[%s248 + $0x9c] sm:$0xf] %vm3263, %v3046
        %3304 = vst.msk [vmem:[%s248 + $0xa0] sm:$0xf] %vm3263, %v3047
        %3305 = vst.msk [vmem:[%s248 + $0xa4] sm:$0xf] %vm3263, %v3048
        %3306 = vst.msk [vmem:[%s248 + $0xa8] sm:$0xf] %vm3263, %v3049
        %3307 = vst.msk [vmem:[%s248 + $0xac] sm:$0xf] %vm3263, %v3050
        %3308 = vst.msk [vmem:[%s248 + $0xb0] sm:$0xf] %vm3263, %v3051
        %3309 = vst.msk [vmem:[%s248 + $0xb4] sm:$0xf] %vm3263, %v3052
        %3310 = vst.msk [vmem:[%s248 + $0xb8] sm:$0xf] %vm3263, %v3053
        %3311 = vst.msk [vmem:[%s248 + $0xbc] sm:$0xf] %vm3263, %v3054
        %3312 = vst.msk [vmem:[%s248 + $0xc0] sm:$0xf] %vm3263, %v3055
        %3313 = vst.msk [vmem:[%s248 + $0xc4] sm:$0xf] %vm3263, %v3056
        %3314 = vst.msk [vmem:[%s248 + $0xc8] sm:$0xf] %vm3263, %v3057
        %3315 = vst.msk [vmem:[%s248 + $0xcc] sm:$0xf] %vm3263, %v3058
        %3316 = vst.msk [vmem:[%s248 + $0xd0] sm:$0xf] %vm3263, %v3059
        %3317 = vst.msk [vmem:[%s248 + $0xd4] sm:$0xf] %vm3263, %v3060
        %3318 = vst.msk [vmem:[%s248 + $0xd8] sm:$0xf] %vm3263, %v3061
        %3319 = vst.msk [vmem:[%s248 + $0xdc] sm:$0xf] %vm3263, %v3062
        %3320 = vst.msk [vmem:[%s248 + $0xe0] sm:$0xf] %vm3263, %v3063
        %3321 = vst.msk [vmem:[%s248 + $0xe4] sm:$0xf] %vm3263, %v3064
        %3322 = vst.msk [vmem:[%s248 + $0xe8] sm:$0xf] %vm3263, %v3065
        %3323 = vst.msk [vmem:[%s248 + $0xec] sm:$0xf] %vm3263, %v3066
        %3324 = vst.msk [vmem:[%s248 + $0xf0] sm:$0xf] %vm3263, %v3067
        %3325 = vst.msk [vmem:[%s248 + $0xf4] sm:$0xf] %vm3263, %v3068
        %3326 = vst.msk [vmem:[%s248 + $0xf8] sm:$0xf] %vm3263, %v3069
        %3327 = vst.msk [vmem:[%s248 + $0xfc] sm:$0xf] %vm3263, %v3070
        %3328 = vst.msk [vmem:[%s248 + $0x100] sm:$0xf] %vm3263, %v3071
        %3329 = vst.msk [vmem:[%s248 + $0x104] sm:$0xf] %vm3263, %v3072
        %3330 = vst.msk [vmem:[%s248 + $0x108] sm:$0xf] %vm3263, %v3073
        %3331 = vst.msk [vmem:[%s248 + $0x10c] sm:$0xf] %vm3263, %v3074
        %3332 = vst.msk [vmem:[%s248 + $0x110] sm:$0xf] %vm3263, %v3075
        %3333 = vst.msk [vmem:[%s248 + $0x114] sm:$0xf] %vm3263, %v3076
        %3334 = vst.msk [vmem:[%s248 + $0x118] sm:$0xf] %vm3263, %v3077
        %3335 = vst.msk [vmem:[%s248 + $0x11c] sm:$0xf] %vm3263, %v3078
        %3336 = vst.msk [vmem:[%s248 + $0x120] sm:$0xf] %vm3263, %v3079
        %3337 = vst.msk [vmem:[%s248 + $0x124] sm:$0xf] %vm3263, %v3080
        %3338 = vst.msk [vmem:[%s248 + $0x128] sm:$0xf] %vm3263, %v3081
        %3339 = vst.msk [vmem:[%s248 + $0x12c] sm:$0xf] %vm3263, %v3082
        %3340 = vst.msk [vmem:[%s248 + $0x130] sm:$0xf] %vm3263, %v3083
        %3341 = vst.msk [vmem:[%s248 + $0x134] sm:$0xf] %vm3263, %v3084
        %3342 = vst.msk [vmem:[%s248 + $0x138] sm:$0xf] %vm3263, %v3085
        %3343 = vst.msk [vmem:[%s248 + $0x13c] sm:$0xf] %vm3263, %v3086
        %3344 = vst.msk [vmem:[%s248 + $0x140] sm:$0xf] %vm3263, %v3087
        %3345 = vst.msk [vmem:[%s248 + $0x144] sm:$0xf] %vm3263, %v3088
        %3346 = vst.msk [vmem:[%s248 + $0x148] sm:$0xf] %vm3263, %v3089
        %3347 = vst.msk [vmem:[%s248 + $0x14c] sm:$0xf] %vm3263, %v3090
        %3348 = vst.msk [vmem:[%s248 + $0x150] sm:$0xf] %vm3263, %v3091
        %3349 = vst.msk [vmem:[%s248 + $0x154] sm:$0xf] %vm3263, %v3092
        %3350 = vst.msk [vmem:[%s248 + $0x158] sm:$0xf] %vm3263, %v3093
        %3351 = vst.msk [vmem:[%s248 + $0x15c] sm:$0xf] %vm3263, %v3094
        %3352 = vst.msk [vmem:[%s248 + $0x160] sm:$0xf] %vm3263, %v3095
        %3353 = vst.msk [vmem:[%s248 + $0x164] sm:$0xf] %vm3263, %v3096
        %3354 = vst.msk [vmem:[%s248 + $0x168] sm:$0xf] %vm3263, %v3097
        %3355 = vst.msk [vmem:[%s248 + $0x16c] sm:$0xf] %vm3263, %v3098
        %3356 = vst.msk [vmem:[%s248 + $0x170] sm:$0xf] %vm3263, %v3099
        %3357 = vst.msk [vmem:[%s248 + $0x174] sm:$0xf] %vm3263, %v3100
        %3358 = vst.msk [vmem:[%s248 + $0x178] sm:$0xf] %vm3263, %v3101
        %3359 = vst.msk [vmem:[%s248 + $0x17c] sm:$0xf] %vm3263, %v3102
        %3360 = vst.msk [vmem:[%s248 + $0x180] sm:$0xf] %vm3263, %v3103
        %3361 = vst.msk [vmem:[%s248 + $0x184] sm:$0xf] %vm3263, %v3104
        %3362 = vst.msk [vmem:[%s248 + $0x188] sm:$0xf] %vm3263, %v3105
        %3363 = vst.msk [vmem:[%s248 + $0x18c] sm:$0xf] %vm3263, %v3106
        %3364 = vst.msk [vmem:[%s248 + $0x190] sm:$0xf] %vm3263, %v3107
        %3365 = vst.msk [vmem:[%s248 + $0x194] sm:$0xf] %vm3263, %v3108
        %3366 = vst.msk [vmem:[%s248 + $0x198] sm:$0xf] %vm3263, %v3109
        %3367 = vst.msk [vmem:[%s248 + $0x19c] sm:$0xf] %vm3263, %v3110
        %3368 = vst.msk [vmem:[%s248 + $0x1a0] sm:$0xf] %vm3263, %v3111
        %3369 = vst.msk [vmem:[%s248 + $0x1a4] sm:$0xf] %vm3263, %v3112
        %3370 = vst.msk [vmem:[%s248 + $0x1a8] sm:$0xf] %vm3263, %v3113
        %3371 = vst.msk [vmem:[%s248 + $0x1ac] sm:$0xf] %vm3263, %v3114
        %3372 = vst.msk [vmem:[%s248 + $0x1b0] sm:$0xf] %vm3263, %v3115
        %3373 = vst.msk [vmem:[%s248 + $0x1b4] sm:$0xf] %vm3263, %v3116
        %3374 = vst.msk [vmem:[%s248 + $0x1b8] sm:$0xf] %vm3263, %v3117
        %3375 = vst.msk [vmem:[%s248 + $0x1bc] sm:$0xf] %vm3263, %v3118
        %3376 = vst.msk [vmem:[%s248 + $0x1c0] sm:$0xf] %vm3263, %v3119
        %3377 = vst.msk [vmem:[%s248 + $0x1c4] sm:$0xf] %vm3263, %v3120
        %3378 = vst.msk [vmem:[%s248 + $0x1c8] sm:$0xf] %vm3263, %v3121
        %3379 = vst.msk [vmem:[%s248 + $0x1cc] sm:$0xf] %vm3263, %v3122
        %3380 = vst.msk [vmem:[%s248 + $0x1d0] sm:$0xf] %vm3263, %v3123
        %3381 = vst.msk [vmem:[%s248 + $0x1d4] sm:$0xf] %vm3263, %v3124
        %3382 = vst.msk [vmem:[%s248 + $0x1d8] sm:$0xf] %vm3263, %v3125
        %3383 = vst.msk [vmem:[%s248 + $0x1dc] sm:$0xf] %vm3263, %v3126
        %3384 = vst.msk [vmem:[%s248 + $0x1e0] sm:$0xf] %vm3263, %v3127
        %3385 = vst.msk [vmem:[%s248 + $0x1e4] sm:$0xf] %vm3263, %v3128
        %3386 = vst.msk [vmem:[%s248 + $0x1e8] sm:$0xf] %vm3263, %v3129
        %3387 = vst.msk [vmem:[%s248 + $0x1ec] sm:$0xf] %vm3263, %v3130
        %3388 = vst.msk [vmem:[%s248 + $0x1f0] sm:$0xf] %vm3263, %v3131
        %3389 = vst.msk [vmem:[%s248 + $0x1f4] sm:$0xf] %vm3263, %v3132
        %3390 = vst.msk [vmem:[%s248 + $0x1f8] sm:$0xf] %vm3263, %v3133
        %3391 = vst.msk [vmem:[%s248 + $0x1fc] sm:$0xf] %vm3263, %v3134
        %3392 = vst.msk [vmem:[%s248 + $0x200] sm:$0xf] %vm3263, %v3135
        %3393 = vst.msk [vmem:[%s248 + $0x204] sm:$0xf] %vm3263, %v3136
        %3394 = vst.msk [vmem:[%s248 + $0x208] sm:$0xf] %vm3263, %v3137
        %3395 = vst.msk [vmem:[%s248 + $0x20c] sm:$0xf] %vm3263, %v3138
        %3396 = vst.msk [vmem:[%s248 + $0x210] sm:$0xf] %vm3263, %v3139
        %3397 = vst.msk [vmem:[%s248 + $0x214] sm:$0xf] %vm3263, %v3140
        %3398 = vst.msk [vmem:[%s248 + $0x218] sm:$0xf] %vm3263, %v3141
        %3399 = vst.msk [vmem:[%s248 + $0x21c] sm:$0xf] %vm3263, %v3142
        %3400 = vst.msk [vmem:[%s248 + $0x220] sm:$0xf] %vm3263, %v3143
        %3401 = vst.msk [vmem:[%s248 + $0x224] sm:$0xf] %vm3263, %v3144
        %3402 = vst.msk [vmem:[%s248 + $0x228] sm:$0xf] %vm3263, %v3145
        %3403 = vst.msk [vmem:[%s248 + $0x22c] sm:$0xf] %vm3263, %v3146
        %3404 = vst.msk [vmem:[%s248 + $0x230] sm:$0xf] %vm3263, %v3147
        %3405 = vst.msk [vmem:[%s248 + $0x234] sm:$0xf] %vm3263, %v3148
        %3406 = vst.msk [vmem:[%s248 + $0x238] sm:$0xf] %vm3263, %v3149
        %3407 = vst.msk [vmem:[%s248 + $0x23c] sm:$0xf] %vm3263, %v3150
        %3408 = vst.msk [vmem:[%s248 + $0x240] sm:$0xf] %vm3263, %v3151
        %3409 = vst.msk [vmem:[%s248 + $0x244] sm:$0xf] %vm3263, %v3152
        %3410 = vst.msk [vmem:[%s248 + $0x248] sm:$0xf] %vm3263, %v3153
        %3411 = vst.msk [vmem:[%s248 + $0x24c] sm:$0xf] %vm3263, %v3154
        %3412 = vst.msk [vmem:[%s248 + $0x250] sm:$0xf] %vm3263, %v3155
        %3413 = vst.msk [vmem:[%s248 + $0x254] sm:$0xf] %vm3263, %v3156
        %3414 = vst.msk [vmem:[%s248 + $0x258] sm:$0xf] %vm3263, %v3157
        %3415 = vst.msk [vmem:[%s248 + $0x25c] sm:$0xf] %vm3263, %v3158
        %3416 = vst.msk [vmem:[%s248 + $0x260] sm:$0xf] %vm3263, %v3159
        %3417 = vst.msk [vmem:[%s248 + $0x264] sm:$0xf] %vm3263, %v3160
        %3418 = vst.msk [vmem:[%s248 + $0x268] sm:$0xf] %vm3263, %v3161
        %3419 = vst.msk [vmem:[%s248 + $0x26c] sm:$0xf] %vm3263, %v3162
        %3420 = vst.msk [vmem:[%s248 + $0x270] sm:$0xf] %vm3263, %v3163
        %3421 = vst.msk [vmem:[%s248 + $0x274] sm:$0xf] %vm3263, %v3164
        %3422 = vst.msk [vmem:[%s248 + $0x278] sm:$0xf] %vm3263, %v3165
        %3423 = vst.msk [vmem:[%s248 + $0x27c] sm:$0xf] %vm3263, %v3166
        %3424 = vst.msk [vmem:[%s248 + $0x280] sm:$0xf] %vm3263, %v3167
        %3425 = vst.msk [vmem:[%s248 + $0x284] sm:$0xf] %vm3263, %v3168
        %3426 = vst.msk [vmem:[%s248 + $0x288] sm:$0xf] %vm3263, %v3169
        %3427 = vst.msk [vmem:[%s248 + $0x28c] sm:$0xf] %vm3263, %v3170
        %3428 = vst.msk [vmem:[%s248 + $0x290] sm:$0xf] %vm3263, %v3171
        %3429 = vst.msk [vmem:[%s248 + $0x294] sm:$0xf] %vm3263, %v3172
        %3430 = vst.msk [vmem:[%s248 + $0x298] sm:$0xf] %vm3263, %v3173
        %3431 = vst.msk [vmem:[%s248 + $0x29c] sm:$0xf] %vm3263, %v3174
        %3432 = vst.msk [vmem:[%s248 + $0x2a0] sm:$0xf] %vm3263, %v3175
        %3433 = vst.msk [vmem:[%s248 + $0x2a4] sm:$0xf] %vm3263, %v3176
        %3434 = vst.msk [vmem:[%s248 + $0x2a8] sm:$0xf] %vm3263, %v3177
        %3435 = vst.msk [vmem:[%s248 + $0x2ac] sm:$0xf] %vm3263, %v3178
        %3436 = vst.msk [vmem:[%s248 + $0x2b0] sm:$0xf] %vm3263, %v3179
        %3437 = vst.msk [vmem:[%s248 + $0x2b4] sm:$0xf] %vm3263, %v3180
        %3438 = vst.msk [vmem:[%s248 + $0x2b8] sm:$0xf] %vm3263, %v3181
        %3439 = vst.msk [vmem:[%s248 + $0x2bc] sm:$0xf] %vm3263, %v3182
        %3440 = vst.msk [vmem:[%s248 + $0x2c0] sm:$0xf] %vm3263, %v3183
        %3441 = vst.msk [vmem:[%s248 + $0x2c4] sm:$0xf] %vm3263, %v3184
        %3442 = vst.msk [vmem:[%s248 + $0x2c8] sm:$0xf] %vm3263, %v3185
        %3443 = vst.msk [vmem:[%s248 + $0x2cc] sm:$0xf] %vm3263, %v3186
        %3444 = vst.msk [vmem:[%s248 + $0x2d0] sm:$0xf] %vm3263, %v3187
        %3445 = vst.msk [vmem:[%s248 + $0x2d4] sm:$0xf] %vm3263, %v3188
        %3446 = vst.msk [vmem:[%s248 + $0x2d8] sm:$0xf] %vm3263, %v3189
        %3447 = vst.msk [vmem:[%s248 + $0x2dc] sm:$0xf] %vm3263, %v3190
        %3448 = vst.msk [vmem:[%s248 + $0x2e0] sm:$0xf] %vm3263, %v3191
        %3449 = vst.msk [vmem:[%s248 + $0x2e4] sm:$0xf] %vm3263, %v3192
        %3450 = vst.msk [vmem:[%s248 + $0x2e8] sm:$0xf] %vm3263, %v3193
        %3451 = vst.msk [vmem:[%s248 + $0x2ec] sm:$0xf] %vm3263, %v3194
        %3452 = vst.msk [vmem:[%s248 + $0x2f0] sm:$0xf] %vm3263, %v3195
        %3453 = vst.msk [vmem:[%s248 + $0x2f4] sm:$0xf] %vm3263, %v3196
        %3454 = vst.msk [vmem:[%s248 + $0x2f8] sm:$0xf] %vm3263, %v3197
        %3455 = vst.msk [vmem:[%s248 + $0x2fc] sm:$0xf] %vm3263, %v3198
        %3456 = vst.msk [vmem:[%s248 + $0x300] sm:$0xf] %vm3263, %v3199
        %3457 = vst.msk [vmem:[%s248 + $0x304] sm:$0xf] %vm3263, %v3200
        %3458 = vst.msk [vmem:[%s248 + $0x308] sm:$0xf] %vm3263, %v3201
        %3459 = vst.msk [vmem:[%s248 + $0x30c] sm:$0xf] %vm3263, %v3202
        %3460 = vst.msk [vmem:[%s248 + $0x310] sm:$0xf] %vm3263, %v3203
        %3461 = vst.msk [vmem:[%s248 + $0x314] sm:$0xf] %vm3263, %v3204
        %3462 = vst.msk [vmem:[%s248 + $0x318] sm:$0xf] %vm3263, %v3205
        %3463 = vst.msk [vmem:[%s248 + $0x31c] sm:$0xf] %vm3263, %v3206
        %3464 = vst.msk [vmem:[%s248 + $0x320] sm:$0xf] %vm3263, %v3207
        %3465 = vst.msk [vmem:[%s248 + $0x324] sm:$0xf] %vm3263, %v3208
        %3466 = vst.msk [vmem:[%s248 + $0x328] sm:$0xf] %vm3263, %v3209
        %3467 = vst.msk [vmem:[%s248 + $0x32c] sm:$0xf] %vm3263, %v3210
        %3468 = vst.msk [vmem:[%s248 + $0x330] sm:$0xf] %vm3263, %v3211
        %3469 = vst.msk [vmem:[%s248 + $0x334] sm:$0xf] %vm3263, %v3212
        %3470 = vst.msk [vmem:[%s248 + $0x338] sm:$0xf] %vm3263, %v3213
        %3471 = vst.msk [vmem:[%s248 + $0x33c] sm:$0xf] %vm3263, %v3214
        %3472 = vst.msk [vmem:[%s248 + $0x340] sm:$0xf] %vm3263, %v3215
        %3473 = vst.msk [vmem:[%s248 + $0x344] sm:$0xf] %vm3263, %v3216
        %3474 = vst.msk [vmem:[%s248 + $0x348] sm:$0xf] %vm3263, %v3217
        %3475 = vst.msk [vmem:[%s248 + $0x34c] sm:$0xf] %vm3263, %v3218
        %3476 = vst.msk [vmem:[%s248 + $0x350] sm:$0xf] %vm3263, %v3219
        %3477 = vst.msk [vmem:[%s248 + $0x354] sm:$0xf] %vm3263, %v3220
        %3478 = vst.msk [vmem:[%s248 + $0x358] sm:$0xf] %vm3263, %v3221
        %3479 = vst.msk [vmem:[%s248 + $0x35c] sm:$0xf] %vm3263, %v3222
        %3480 = vst.msk [vmem:[%s248 + $0x360] sm:$0xf] %vm3263, %v3223
        %3481 = vst.msk [vmem:[%s248 + $0x364] sm:$0xf] %vm3263, %v3224
        %3482 = vst.msk [vmem:[%s248 + $0x368] sm:$0xf] %vm3263, %v3225
        %3483 = vst.msk [vmem:[%s248 + $0x36c] sm:$0xf] %vm3263, %v3226
        %3484 = vst.msk [vmem:[%s248 + $0x370] sm:$0xf] %vm3263, %v3227
        %3485 = vst.msk [vmem:[%s248 + $0x374] sm:$0xf] %vm3263, %v3228
        %3486 = vst.msk [vmem:[%s248 + $0x378] sm:$0xf] %vm3263, %v3229
        %3487 = vst.msk [vmem:[%s248 + $0x37c] sm:$0xf] %vm3263, %v3230
        %3488 = vst.msk [vmem:[%s248 + $0x380] sm:$0xf] %vm3263, %v3231
        %3489 = vst.msk [vmem:[%s248 + $0x384] sm:$0xf] %vm3263, %v3232
        %3490 = vst.msk [vmem:[%s248 + $0x388] sm:$0xf] %vm3263, %v3233
        %3491 = vst.msk [vmem:[%s248 + $0x38c] sm:$0xf] %vm3263, %v3234
        %3492 = vst.msk [vmem:[%s248 + $0x390] sm:$0xf] %vm3263, %v3235
        %3493 = vst.msk [vmem:[%s248 + $0x394] sm:$0xf] %vm3263, %v3236
        %3494 = vst.msk [vmem:[%s248 + $0x398] sm:$0xf] %vm3263, %v3237
        %3495 = vst.msk [vmem:[%s248 + $0x39c] sm:$0xf] %vm3263, %v3238
        %3496 = vst.msk [vmem:[%s248 + $0x3a0] sm:$0xf] %vm3263, %v3239
        %3497 = vst.msk [vmem:[%s248 + $0x3a4] sm:$0xf] %vm3263, %v3240
        %3498 = vst.msk [vmem:[%s248 + $0x3a8] sm:$0xf] %vm3263, %v3241
        %3499 = vst.msk [vmem:[%s248 + $0x3ac] sm:$0xf] %vm3263, %v3242
        %3500 = vst.msk [vmem:[%s248 + $0x3b0] sm:$0xf] %vm3263, %v3243
        %3501 = vst.msk [vmem:[%s248 + $0x3b4] sm:$0xf] %vm3263, %v3244
        %3502 = vst.msk [vmem:[%s248 + $0x3b8] sm:$0xf] %vm3263, %v3245
        %3503 = vst.msk [vmem:[%s248 + $0x3bc] sm:$0xf] %vm3263, %v3246
        %3504 = vst.msk [vmem:[%s248 + $0x3c0] sm:$0xf] %vm3263, %v3247
        %3505 = vst.msk [vmem:[%s248 + $0x3c4] sm:$0xf] %vm3263, %v3248
        %3506 = vst.msk [vmem:[%s248 + $0x3c8] sm:$0xf] %vm3263, %v3249
        %3507 = vst.msk [vmem:[%s248 + $0x3cc] sm:$0xf] %vm3263, %v3250
        %3508 = vst.msk [vmem:[%s248 + $0x3d0] sm:$0xf] %vm3263, %v3251
        %3509 = vst.msk [vmem:[%s248 + $0x3d4] sm:$0xf] %vm3263, %v3252
        %3510 = vst.msk [vmem:[%s248 + $0x3d8] sm:$0xf] %vm3263, %v3253
        %3511 = vst.msk [vmem:[%s248 + $0x3dc] sm:$0xf] %vm3263, %v3254
        %3512 = vst.msk [vmem:[%s248 + $0x3e0] sm:$0xf] %vm3263, %v3255
        %3513 = vst.msk [vmem:[%s248 + $0x3e4] sm:$0xf] %vm3263, %v3256
        %3514 = vst.msk [vmem:[%s248 + $0x3e8] sm:$0xf] %vm3263, %v3257
        %3515 = vst.msk [vmem:[%s248 + $0x3ec] sm:$0xf] %vm3263, %v3258
        %3516 = vst.msk [vmem:[%s248 + $0x3f0] sm:$0xf] %vm3263, %v3259
        %3517 = vst.msk [vmem:[%s248 + $0x3f4] sm:$0xf] %vm3263, %v3260
        %3518 = vst.msk [vmem:[%s248 + $0x3f8] sm:$0xf] %vm3263, %v3261
        %3519 = vst.msk [vmem:[%s248 + $0x3fc] sm:$0xf] %vm3263, %v3262
        %s3520 = sand.u32 %s141, 1
        %s3521 = sand.u32 %s141, 1
        %s3522 = smul.addr %s3521, 1024
        %s3523 = scalar_lea.vmem [#allocation2], %s3522
        // Predicated region
        $region37: #{conv_bn_relu.1} parent=35 // pred_check
          %p3524 = pneg %p151
        $region38: #{conv_bn_relu.1} parent=35 // pred_check_branch
          %3526 = sbr.rel (%p3524) target = $region40
        $region39: #{conv_bn_relu.1} parent=35 // pred_region
          %s3527 = smul.u32 256, %s19
          %s3528 = ssub.s32 2776, %s3527
          %p3529 = scmp.lt.s32.totalorder %s3528, 256
          %s3530 = scalar_select %p3529, %s3528, 256
          %s3531 = smul.u32 4, %s3530
          %p3532 = scmp.ne.s32.totalorder 0, %s3531
          %s3533 = sadd.s32 %s20, %s3527
          %s3534 = smul.addr %s3533, 4
          %s3535 = scalar_lea.vmem %s4, %s3534
          // Predicated region
          $region41: #{conv_bn_relu.1} parent=39 // pred_check
            %p3536 = pneg %p3532
          $region42: #{conv_bn_relu.1} parent=39 // pred_check_branch
            %3538 = sbr.rel (%p3536) target = $region44
          $region43: #{conv_bn_relu.1} parent=39 // pred_region
            // Predicated region
            $region45: #{conv_bn_relu.1} parent=43 // pred_check
              _
            $region46: #{conv_bn_relu.1} parent=43 // pred_check_branch
              %3540 = sbr.rel target = $region48
            $region47: #{conv_bn_relu.1} parent=43 // pred_region
              // Predicated region
              $region67: #{conv_bn_relu.1} parent=47 // pred_check
                _
              $region68: #{conv_bn_relu.1} parent=47 // pred_check_branch
                %3652 = sbr.rel (0) target = $region70
              $region69: #{conv_bn_relu.1} parent=47 // pred_region
                %s3654 = ssub.s32 16, 1
                %s3655 = sshrl.u32 %s3530, 5
                // While loop
                $region71: #{conv_bn_relu.1} parent=69 // loop_pre_header
                  _
                $region72: #{conv_bn_relu.1} parent=69 // loop_header
                  %s3657 = sphi 0, %s3659
                  %p3658 = scmp.ge.s32.totalorder %s3657, %s3655
                  %s3662 = sphi 0, %s3731
                  %s3663 = sphi %s3523, %s3734
                  %s3664 = sphi %s3535, %s3735
                $region73: #{conv_bn_relu.1} parent=69 // loop_header_branch
                  %3661 = sbr.rel (%p3658) target = $region77
                $region74: #{conv_bn_relu.1} parent=69 // loop_body
                  %v3665 = vld [vmem:[%s3663] sm:%s3654]
                  %3666 = vst [vmem:[%s3664] sm:%s3654] %v3665
                  %v3667 = vld [vmem:[%s3663 + $0x4] sm:%s3654]
                  %3668 = vst [vmem:[%s3664 + $0x4] sm:%s3654] %v3667
                  %v3669 = vld [vmem:[%s3663 + $0x8] sm:%s3654]
                  %3670 = vst [vmem:[%s3664 + $0x8] sm:%s3654] %v3669
                  %v3671 = vld [vmem:[%s3663 + $0xc] sm:%s3654]
                  %3672 = vst [vmem:[%s3664 + $0xc] sm:%s3654] %v3671
                  %v3673 = vld [vmem:[%s3663 + $0x10] sm:%s3654]
                  %3674 = vst [vmem:[%s3664 + $0x10] sm:%s3654] %v3673
                  %v3675 = vld [vmem:[%s3663 + $0x14] sm:%s3654]
                  %3676 = vst [vmem:[%s3664 + $0x14] sm:%s3654] %v3675
                  %v3677 = vld [vmem:[%s3663 + $0x18] sm:%s3654]
                  %3678 = vst [vmem:[%s3664 + $0x18] sm:%s3654] %v3677
                  %v3679 = vld [vmem:[%s3663 + $0x1c] sm:%s3654]
                  %3680 = vst [vmem:[%s3664 + $0x1c] sm:%s3654] %v3679
                  %v3681 = vld [vmem:[%s3663 + $0x20] sm:%s3654]
                  %3682 = vst [vmem:[%s3664 + $0x20] sm:%s3654] %v3681
                  %v3683 = vld [vmem:[%s3663 + $0x24] sm:%s3654]
                  %3684 = vst [vmem:[%s3664 + $0x24] sm:%s3654] %v3683
                  %v3685 = vld [vmem:[%s3663 + $0x28] sm:%s3654]
                  %3686 = vst [vmem:[%s3664 + $0x28] sm:%s3654] %v3685
                  %v3687 = vld [vmem:[%s3663 + $0x2c] sm:%s3654]
                  %3688 = vst [vmem:[%s3664 + $0x2c] sm:%s3654] %v3687
                  %v3689 = vld [vmem:[%s3663 + $0x30] sm:%s3654]
                  %3690 = vst [vmem:[%s3664 + $0x30] sm:%s3654] %v3689
                  %v3691 = vld [vmem:[%s3663 + $0x34] sm:%s3654]
                  %3692 = vst [vmem:[%s3664 + $0x34] sm:%s3654] %v3691
                  %v3693 = vld [vmem:[%s3663 + $0x38] sm:%s3654]
                  %3694 = vst [vmem:[%s3664 + $0x38] sm:%s3654] %v3693
                  %v3695 = vld [vmem:[%s3663 + $0x3c] sm:%s3654]
                  %3696 = vst [vmem:[%s3664 + $0x3c] sm:%s3654] %v3695
                  %v3697 = vld [vmem:[%s3663 + $0x40] sm:%s3654]
                  %3698 = vst [vmem:[%s3664 + $0x40] sm:%s3654] %v3697
                  %v3699 = vld [vmem:[%s3663 + $0x44] sm:%s3654]
                  %3700 = vst [vmem:[%s3664 + $0x44] sm:%s3654] %v3699
                  %v3701 = vld [vmem:[%s3663 + $0x48] sm:%s3654]
                  %3702 = vst [vmem:[%s3664 + $0x48] sm:%s3654] %v3701
                  %v3703 = vld [vmem:[%s3663 + $0x4c] sm:%s3654]
                  %3704 = vst [vmem:[%s3664 + $0x4c] sm:%s3654] %v3703
                  %v3705 = vld [vmem:[%s3663 + $0x50] sm:%s3654]
                  %3706 = vst [vmem:[%s3664 + $0x50] sm:%s3654] %v3705
                  %v3707 = vld [vmem:[%s3663 + $0x54] sm:%s3654]
                  %3708 = vst [vmem:[%s3664 + $0x54] sm:%s3654] %v3707
                  %v3709 = vld [vmem:[%s3663 + $0x58] sm:%s3654]
                  %3710 = vst [vmem:[%s3664 + $0x58] sm:%s3654] %v3709
                  %v3711 = vld [vmem:[%s3663 + $0x5c] sm:%s3654]
                  %3712 = vst [vmem:[%s3664 + $0x5c] sm:%s3654] %v3711
                  %v3713 = vld [vmem:[%s3663 + $0x60] sm:%s3654]
                  %3714 = vst [vmem:[%s3664 + $0x60] sm:%s3654] %v3713
                  %v3715 = vld [vmem:[%s3663 + $0x64] sm:%s3654]
                  %3716 = vst [vmem:[%s3664 + $0x64] sm:%s3654] %v3715
                  %v3717 = vld [vmem:[%s3663 + $0x68] sm:%s3654]
                  %3718 = vst [vmem:[%s3664 + $0x68] sm:%s3654] %v3717
                  %v3719 = vld [vmem:[%s3663 + $0x6c] sm:%s3654]
                  %3720 = vst [vmem:[%s3664 + $0x6c] sm:%s3654] %v3719
                  %v3721 = vld [vmem:[%s3663 + $0x70] sm:%s3654]
                  %3722 = vst [vmem:[%s3664 + $0x70] sm:%s3654] %v3721
                  %v3723 = vld [vmem:[%s3663 + $0x74] sm:%s3654]
                  %3724 = vst [vmem:[%s3664 + $0x74] sm:%s3654] %v3723
                  %v3725 = vld [vmem:[%s3663 + $0x78] sm:%s3654]
                  %3726 = vst [vmem:[%s3664 + $0x78] sm:%s3654] %v3725
                  %v3727 = vld [vmem:[%s3663 + $0x7c] sm:%s3654]
                  %3728 = vst [vmem:[%s3664 + $0x7c] sm:%s3654] %v3727
                  %s3729 = sadd.s32 1, %s3662
                  %p3730 = scmp.ge.s32.totalorder %s3729, %s3655
                  %s3731 = scalar_select %p3730, 0, %s3729
                  %s3732 = smul.u32 %s3731, 128
                  %s3733 = smul.u32 %s3731, 128
                  %s3734 = scalar_lea.vmem %s3523, %s3732 [#allocation2]
                  %s3735 = scalar_lea.vmem %s3535, %s3733
                $region75: #{conv_bn_relu.1} parent=69 // loop_footer
                  %s3659 = sadd.s32 %s3657, 1
                $region76: #{conv_bn_relu.1} parent=69 // loop_footer_branch
                  %3656 = sbr.rel target = $region72
                $region77: #{conv_bn_relu.1} parent=69 // loop_exit
                  _
                %s3736 = sshrl.u32 %s3530, 5
                %s3737 = sand.u32 %s3530, 31
                %s3738 = smul.u32 %s3736, 32
                %s3739 = smul.u32 4, %s3738
                %s3740 = scalar_lea.vmem %s3523, %s3739 [#allocation2]
                %s3741 = smul.u32 4, %s3738
                %s3742 = scalar_lea.vmem %s3535, %s3741
                // While loop
                $region78: #{conv_bn_relu.1} parent=69 // loop_pre_header
                  _
                $region79: #{conv_bn_relu.1} parent=69 // loop_header
                  %s3744 = sphi 0, %s3746
                  %p3745 = scmp.ge.s32.totalorder %s3744, %s3737
                  %s3749 = sphi 0, %s3756
                  %s3750 = sphi %s3740, %s3759
                  %s3751 = sphi %s3742, %s3760
                $region80: #{conv_bn_relu.1} parent=69 // loop_header_branch
                  %3748 = sbr.rel (%p3745) target = $region84
                $region81: #{conv_bn_relu.1} parent=69 // loop_body
                  %v3752 = vld [vmem:[%s3750] sm:%s3654]
                  %3753 = vst [vmem:[%s3751] sm:%s3654] %v3752
                  %s3754 = sadd.s32 1, %s3749
                  %p3755 = scmp.ge.s32.totalorder %s3754, %s3737
                  %s3756 = scalar_select %p3755, 0, %s3754
                  %s3757 = smul.u32 %s3756, 4
                  %s3758 = smul.u32 %s3756, 4
                  %s3759 = scalar_lea.vmem %s3740, %s3757 [#allocation2]
                  %s3760 = scalar_lea.vmem %s3742, %s3758
                $region82: #{conv_bn_relu.1} parent=69 // loop_footer
                  %s3746 = sadd.s32 %s3744, 1
                $region83: #{conv_bn_relu.1} parent=69 // loop_footer_branch
                  %3743 = sbr.rel target = $region79
                $region84: #{conv_bn_relu.1} parent=69 // loop_exit
                  _
              $region70: #{conv_bn_relu.1} parent=47 // pred_fallthru
                _
            $region48: #{conv_bn_relu.1} parent=43 // pred_fallthru
              _
            // Predicated region
            $region49: #{conv_bn_relu.1} parent=43 // pred_check
              _
            $region50: #{conv_bn_relu.1} parent=43 // pred_check_branch
              %3542 = sbr.rel (0) target = $region52
            $region51: #{conv_bn_relu.1} parent=43 // pred_region
              %s3544 = ssub.s32 16, 1
              %s3545 = sshrl.u32 %s3530, 5
              // While loop
              $region53: #{conv_bn_relu.1} parent=51 // loop_pre_header
                _
              $region54: #{conv_bn_relu.1} parent=51 // loop_header
                %s3547 = sphi 0, %s3549
                %p3548 = scmp.ge.s32.totalorder %s3547, %s3545
                %s3552 = sphi 0, %s3621
                %s3553 = sphi %s3523, %s3624
                %s3554 = sphi %s3535, %s3625
              $region55: #{conv_bn_relu.1} parent=51 // loop_header_branch
                %3551 = sbr.rel (%p3548) target = $region59
              $region56: #{conv_bn_relu.1} parent=51 // loop_body
                %v3555 = vld [vmem:[%s3553] sm:%s3544]
                %3556 = vst [vmem:[%s3554] sm:%s3544] %v3555
                %v3557 = vld [vmem:[%s3553 + $0x4] sm:%s3544]
                %3558 = vst [vmem:[%s3554 + $0x4] sm:%s3544] %v3557
                %v3559 = vld [vmem:[%s3553 + $0x8] sm:%s3544]
                %3560 = vst [vmem:[%s3554 + $0x8] sm:%s3544] %v3559
                %v3561 = vld [vmem:[%s3553 + $0xc] sm:%s3544]
                %3562 = vst [vmem:[%s3554 + $0xc] sm:%s3544] %v3561
                %v3563 = vld [vmem:[%s3553 + $0x10] sm:%s3544]
                %3564 = vst [vmem:[%s3554 + $0x10] sm:%s3544] %v3563
                %v3565 = vld [vmem:[%s3553 + $0x14] sm:%s3544]
                %3566 = vst [vmem:[%s3554 + $0x14] sm:%s3544] %v3565
                %v3567 = vld [vmem:[%s3553 + $0x18] sm:%s3544]
                %3568 = vst [vmem:[%s3554 + $0x18] sm:%s3544] %v3567
                %v3569 = vld [vmem:[%s3553 + $0x1c] sm:%s3544]
                %3570 = vst [vmem:[%s3554 + $0x1c] sm:%s3544] %v3569
                %v3571 = vld [vmem:[%s3553 + $0x20] sm:%s3544]
                %3572 = vst [vmem:[%s3554 + $0x20] sm:%s3544] %v3571
                %v3573 = vld [vmem:[%s3553 + $0x24] sm:%s3544]
                %3574 = vst [vmem:[%s3554 + $0x24] sm:%s3544] %v3573
                %v3575 = vld [vmem:[%s3553 + $0x28] sm:%s3544]
                %3576 = vst [vmem:[%s3554 + $0x28] sm:%s3544] %v3575
                %v3577 = vld [vmem:[%s3553 + $0x2c] sm:%s3544]
                %3578 = vst [vmem:[%s3554 + $0x2c] sm:%s3544] %v3577
                %v3579 = vld [vmem:[%s3553 + $0x30] sm:%s3544]
                %3580 = vst [vmem:[%s3554 + $0x30] sm:%s3544] %v3579
                %v3581 = vld [vmem:[%s3553 + $0x34] sm:%s3544]
                %3582 = vst [vmem:[%s3554 + $0x34] sm:%s3544] %v3581
                %v3583 = vld [vmem:[%s3553 + $0x38] sm:%s3544]
                %3584 = vst [vmem:[%s3554 + $0x38] sm:%s3544] %v3583
                %v3585 = vld [vmem:[%s3553 + $0x3c] sm:%s3544]
                %3586 = vst [vmem:[%s3554 + $0x3c] sm:%s3544] %v3585
                %v3587 = vld [vmem:[%s3553 + $0x40] sm:%s3544]
                %3588 = vst [vmem:[%s3554 + $0x40] sm:%s3544] %v3587
                %v3589 = vld [vmem:[%s3553 + $0x44] sm:%s3544]
                %3590 = vst [vmem:[%s3554 + $0x44] sm:%s3544] %v3589
                %v3591 = vld [vmem:[%s3553 + $0x48] sm:%s3544]
                %3592 = vst [vmem:[%s3554 + $0x48] sm:%s3544] %v3591
                %v3593 = vld [vmem:[%s3553 + $0x4c] sm:%s3544]
                %3594 = vst [vmem:[%s3554 + $0x4c] sm:%s3544] %v3593
                %v3595 = vld [vmem:[%s3553 + $0x50] sm:%s3544]
                %3596 = vst [vmem:[%s3554 + $0x50] sm:%s3544] %v3595
                %v3597 = vld [vmem:[%s3553 + $0x54] sm:%s3544]
                %3598 = vst [vmem:[%s3554 + $0x54] sm:%s3544] %v3597
                %v3599 = vld [vmem:[%s3553 + $0x58] sm:%s3544]
                %3600 = vst [vmem:[%s3554 + $0x58] sm:%s3544] %v3599
                %v3601 = vld [vmem:[%s3553 + $0x5c] sm:%s3544]
                %3602 = vst [vmem:[%s3554 + $0x5c] sm:%s3544] %v3601
                %v3603 = vld [vmem:[%s3553 + $0x60] sm:%s3544]
                %3604 = vst [vmem:[%s3554 + $0x60] sm:%s3544] %v3603
                %v3605 = vld [vmem:[%s3553 + $0x64] sm:%s3544]
                %3606 = vst [vmem:[%s3554 + $0x64] sm:%s3544] %v3605
                %v3607 = vld [vmem:[%s3553 + $0x68] sm:%s3544]
                %3608 = vst [vmem:[%s3554 + $0x68] sm:%s3544] %v3607
                %v3609 = vld [vmem:[%s3553 + $0x6c] sm:%s3544]
                %3610 = vst [vmem:[%s3554 + $0x6c] sm:%s3544] %v3609
                %v3611 = vld [vmem:[%s3553 + $0x70] sm:%s3544]
                %3612 = vst [vmem:[%s3554 + $0x70] sm:%s3544] %v3611
                %v3613 = vld [vmem:[%s3553 + $0x74] sm:%s3544]
                %3614 = vst [vmem:[%s3554 + $0x74] sm:%s3544] %v3613
                %v3615 = vld [vmem:[%s3553 + $0x78] sm:%s3544]
                %3616 = vst [vmem:[%s3554 + $0x78] sm:%s3544] %v3615
                %v3617 = vld [vmem:[%s3553 + $0x7c] sm:%s3544]
                %3618 = vst [vmem:[%s3554 + $0x7c] sm:%s3544] %v3617
                %s3619 = sadd.s32 1, %s3552
                %p3620 = scmp.ge.s32.totalorder %s3619, %s3545
                %s3621 = scalar_select %p3620, 0, %s3619
                %s3622 = smul.u32 %s3621, 128
                %s3623 = smul.u32 %s3621, 128
                %s3624 = scalar_lea.vmem %s3523, %s3622 [#allocation2]
                %s3625 = scalar_lea.vmem %s3535, %s3623
              $region57: #{conv_bn_relu.1} parent=51 // loop_footer
                %s3549 = sadd.s32 %s3547, 1
              $region58: #{conv_bn_relu.1} parent=51 // loop_footer_branch
                %3546 = sbr.rel target = $region54
              $region59: #{conv_bn_relu.1} parent=51 // loop_exit
                _
              %s3626 = sshrl.u32 %s3530, 5
              %s3627 = sand.u32 %s3530, 31
              %s3628 = smul.u32 %s3626, 32
              %s3629 = smul.u32 4, %s3628
              %s3630 = scalar_lea.vmem %s3523, %s3629 [#allocation2]
              %s3631 = smul.u32 4, %s3628
              %s3632 = scalar_lea.vmem %s3535, %s3631
              // While loop
              $region60: #{conv_bn_relu.1} parent=51 // loop_pre_header
                _
              $region61: #{conv_bn_relu.1} parent=51 // loop_header
                %s3634 = sphi 0, %s3636
                %p3635 = scmp.ge.s32.totalorder %s3634, %s3627
                %s3639 = sphi 0, %s3646
                %s3640 = sphi %s3630, %s3649
                %s3641 = sphi %s3632, %s3650
              $region62: #{conv_bn_relu.1} parent=51 // loop_header_branch
                %3638 = sbr.rel (%p3635) target = $region66
              $region63: #{conv_bn_relu.1} parent=51 // loop_body
                %v3642 = vld [vmem:[%s3640] sm:%s3544]
                %3643 = vst [vmem:[%s3641] sm:%s3544] %v3642
                %s3644 = sadd.s32 1, %s3639
                %p3645 = scmp.ge.s32.totalorder %s3644, %s3627
                %s3646 = scalar_select %p3645, 0, %s3644
                %s3647 = smul.u32 %s3646, 4
                %s3648 = smul.u32 %s3646, 4
                %s3649 = scalar_lea.vmem %s3630, %s3647 [#allocation2]
                %s3650 = scalar_lea.vmem %s3632, %s3648
              $region64: #{conv_bn_relu.1} parent=51 // loop_footer
                %s3636 = sadd.s32 %s3634, 1
              $region65: #{conv_bn_relu.1} parent=51 // loop_footer_branch
                %3633 = sbr.rel target = $region61
              $region66: #{conv_bn_relu.1} parent=51 // loop_exit
                _
            $region52: #{conv_bn_relu.1} parent=43 // pred_fallthru
              _
          $region44: #{conv_bn_relu.1} parent=39 // pred_fallthru
            _
          %3761 = vnop
        $region40: #{conv_bn_relu.1} parent=35 // pred_fallthru
          _
      $region36: #{conv_bn_relu.1} parent=5 // pred_fallthru
        _
      %p3762 = scmp.le.s32.totalorder 2, %s10
      // Predicated region
      $region85: #{conv_bn_relu.1} parent=5 // pred_check
        %p3763 = pneg %p3762
      $region86: #{conv_bn_relu.1} parent=5 // pred_check_branch
        %3765 = sbr.rel (%p3763) target = $region88
      $region87: #{conv_bn_relu.1} parent=5 // pred_region
        %s3766 = ssub.s32 %s10, 2
        // Predicated region
        $region89: #{conv_bn_relu.1} parent=87 // pred_check
          %p3767 = pneg %p157
        $region90: #{conv_bn_relu.1} parent=87 // pred_check_branch
          %3769 = sbr.rel (%p3767) target = $region92
        $region91: #{conv_bn_relu.1} parent=87 // pred_region
          %s3770 = sand.u32 %s142, 1
          %s3771 = sand.u32 %s142, 1
          %s3772 = smul.addr %s3771, 1024
          %s3773 = scalar_lea.vmem [#allocation2], %s3772
        $region92: #{conv_bn_relu.1} parent=87 // pred_fallthru
          _
      $region88: #{conv_bn_relu.1} parent=5 // pred_fallthru
        _
    $region6: #{conv_bn_relu.1} parent=1 // loop_footer
      %s14 = sadd.s32 1, %s10
    $region7: #{conv_bn_relu.1} parent=1 // loop_footer_branch
      %9 = sbr.rel target = $region3
    $region8: #{conv_bn_relu.1} parent=1 // loop_exit
      _

</llo_original>
